<compile_context>
chip_gen: v5e
topology: v5e:2x2
jax: 0.10.0
libtpu: 0.0.40
codegen_flags: <defaults>
</compile_context>

<pallas_src>
import jax
import jax.numpy as jnp
from jax import lax
from jax.experimental import pallas as pl
from jax.experimental.pallas import tpu as pltpu

EPS = 1e-5
NO_CLASSES = 10

KH = KW = 5            # conv kernel size
PK, PS = 3, 2          # max-pool kernel / stride
C1P = 8                # padded input channels  (3  -> 8)
CP = 128               # padded conv channels   (32 / 64 -> 128), lane-dense
NCLS_P = 128           # padded FC outputs      (10 -> 128), lane-dense


def _layer_sizes(ip):
    oh1 = ip - KH + 1
    p1 = (oh1 - PK) // PS + 1
    oh2 = p1 - KH + 1
    p2 = (oh2 - PK) // PS + 1
    return oh1, p1, oh2, p2


# ---------------------------------------------------------------------------
# In-kernel building blocks
# ---------------------------------------------------------------------------
def _conv_bn_relu_rows(read_row, w_ref, s_ref, t_ref, y_ref):
    """5x5 VALID conv + folded bias/BN affine + ReLU, one output row at a time.

    read_row(r) returns input row r as a (W, Cin_p) bf16 value. 25 small MXU
    matmuls accumulate into an f32 accumulator; no im2col is ever built.
    """
    oh, ow, _ = y_ref.shape

    @pl.loop(0, oh)
    def _(r):
        acc = jnp.zeros((ow, w_ref.shape[3]), jnp.float32)
        for kh in range(w_ref.shape[0]):
            xrow = read_row(r + kh)                          # (W, Cin_p) bf16
            for kw in range(w_ref.shape[1]):
                acc = acc + jnp.dot(xrow[kw:kw + ow, :], w_ref[kh, kw],
                                    preferred_element_type=jnp.float32)
        y = jnp.maximum(acc * s_ref[...] + t_ref[...], 0.0)
        y_ref[r] = y.astype(y_ref.dtype)


def _maxpool_3x3_s2(src_ref, dst_ref):
    """Fused 3x3 / stride-2 max-pool.

    Row window: 3 dynamic row loads + elementwise max (VPU).
    Col window: running 3-max over shifted sublane slices, then an exact 0/1
    selection matmul picks every second column (keeps stores lane-dense and
    avoids strided slicing / relayouts). Selection by 1.0/0.0 is exact.
    """
    ph, pw, _ = dst_ref.shape
    ow = src_ref.shape[1]
    wsel = ow - (PK - 1)
    qi = lax.broadcasted_iota(jnp.int32, (pw, wsel), 0)
    wi = lax.broadcasted_iota(jnp.int32, (pw, wsel), 1)
    sel = (wi == PS * qi).astype(src_ref.dtype)              # (pw, ow-2)

    @pl.loop(0, ph)
    def _(p):
        r0 = src_ref[PS * p]
        r1 = src_ref[PS * p + 1]
        r2 = src_ref[PS * p + 2]
        hmax = jnp.maximum(jnp.maximum(r0, r1), r2)          # (ow, C)
        wmax = jnp.maximum(jnp.maximum(hmax[0:wsel, :], hmax[1:wsel + 1, :]),
                           hmax[2:wsel + 2, :])              # (ow-2, C)
        dst_ref[p] = jnp.dot(
            sel, wmax, preferred_element_type=jnp.float32).astype(dst_ref.dtype)


def _convnet_kernel(x_ref, w1_ref, s1_ref, t1_ref, w2_ref, s2_ref, t2_ref,
                    wfc_ref, bfc_ref, o_ref,
                    y1_ref, a1_ref, y2_ref, a2_ref):
    # Stage 1: conv + BN + ReLU, then max-pool (all in VMEM).
    _conv_bn_relu_rows(lambda r: x_ref[0, r], w1_ref, s1_ref, t1_ref, y1_ref)
    _maxpool_3x3_s2(y1_ref, a1_ref)
    # Stage 2.
    _conv_bn_relu_rows(lambda r: a1_ref[r], w2_ref, s2_ref, t2_ref, y2_ref)
    _maxpool_3x3_s2(y2_ref, a2_ref)
    # FC: weights pre-permuted to NHWC flatten order, padded 10 -> 128 outputs.
    p2h, p2w, _ = a2_ref.shape
    acc = jnp.zeros((1, wfc_ref.shape[3]), jnp.float32)
    for hh in range(p2h):
        slab = a2_ref[hh]                                    # (p2w, CP) bf16
        for ww in range(p2w):
            acc = acc + jnp.dot(slab[ww:ww + 1, :], wfc_ref[hh, ww],
                                preferred_element_type=jnp.float32)
    o_ref[0] = acc + bfc_ref[...]


# ---------------------------------------------------------------------------
# Host-side parameter folding / layout prep (one time, plain JAX)
# ---------------------------------------------------------------------------
def prepare_params(p, ip_image_size):
    _, _, _, p2 = _layer_sizes(ip_image_size)

    def fold_bn(b, g, be, m, v):
        s = g / jnp.sqrt(v + EPS)
        return s, (b - m) * s + be

    def prep_conv_w(w, cin_p, cout_p):
        cout, cin = w.shape[0], w.shape[1]
        w = jnp.transpose(w, (2, 3, 1, 0))                   # (KH, KW, Cin, Cout)
        w = jnp.pad(w, ((0, 0), (0, 0), (0, cin_p - cin), (0, cout_p - cout)))
        return w.astype(jnp.bfloat16)

    def pad_row(v, width):
        return jnp.pad(v.astype(jnp.float32),
                       (0, width - v.shape[0])).reshape(1, width)

    s1, t1 = fold_bn(p["b1"], p["g1"], p["be1"], p["m1"], p["v1"])
    s2, t2 = fold_bn(p["b2"], p["g2"], p["be2"], p["m2"], p["v2"])

    # PyTorch flattens NCHW (idx = c*P*P + h*P + w); permute the FC columns once
    # to NHWC order and zero-pad Cin 64->128, Cout 10->128.
    cout2 = p["w2"].shape[0]
    wfc = p["wfc"].reshape(NO_CLASSES, cout2, p2, p2)
    wfc = jnp.transpose(wfc, (2, 3, 1, 0))                   # (h, w, c, o)
    wfc = jnp.pad(wfc, ((0, 0), (0, 0), (0, CP - cout2),
                        (0, NCLS_P - NO_CLASSES)))

    return {
        "w1": prep_conv_w(p["w1"], C1P, CP),
        "s1": pad_row(s1, CP), "t1": pad_row(t1, CP),
        "w2": prep_conv_w(p["w2"], CP, CP),
        "s2": pad_row(s2, CP), "t2": pad_row(t2, CP),
        "wfc": wfc.astype(jnp.bfloat16),
        "bfc": pad_row(p["bfc"], NCLS_P),
    }


# ---------------------------------------------------------------------------
# Forward pass (single fused pallas_call, grid over batch)
# ---------------------------------------------------------------------------
def convnet_forward(x_nchw, pp):
    n, cin, hh, ww = x_nchw.shape
    oh1, p1, oh2, p2 = _layer_sizes(hh)

    x = jnp.transpose(x_nchw, (0, 2, 3, 1))                  # NCHW -> NHWC
    x = jnp.pad(x, ((0, 0), (0, 0), (0, 0), (0, C1P - cin))).astype(jnp.bfloat16)

    flops = 2 * n * (oh1 * oh1 * KH * KW * C1P * CP
                     + oh2 * oh2 * KH * KW * CP * CP
                     + p2 * p2 * CP * NCLS_P)
    bytes_accessed = (x.size * 2 + pp["w1"].size * 2 + pp["w2"].size * 2
                      + pp["wfc"].size * 2 + n * NCLS_P * 4)

    out = pl.pallas_call(
        _convnet_kernel,
        out_shape=jax.ShapeDtypeStruct((n, 1, NCLS_P), jnp.float32),
        grid=(n,),
        in_specs=[
            pl.BlockSpec((1, hh, ww, C1P), lambda i: (i, 0, 0, 0)),
            pl.BlockSpec((KH, KW, C1P, CP), lambda i: (0, 0, 0, 0)),
            pl.BlockSpec((1, CP), lambda i: (0, 0)),
            pl.BlockSpec((1, CP), lambda i: (0, 0)),
            pl.BlockSpec((KH, KW, CP, CP), lambda i: (0, 0, 0, 0)),
            pl.BlockSpec((1, CP), lambda i: (0, 0)),
            pl.BlockSpec((1, CP), lambda i: (0, 0)),
            pl.BlockSpec((p2, p2, CP, NCLS_P), lambda i: (0, 0, 0, 0)),
            pl.BlockSpec((1, NCLS_P), lambda i: (0, 0)),
        ],
        out_specs=pl.BlockSpec((1, 1, NCLS_P), lambda i: (i, 0, 0)),
        scratch_shapes=[
            pltpu.VMEM((oh1, oh1, CP), jnp.bfloat16),        # conv1 post-act
            pltpu.VMEM((p1, p1, CP), jnp.bfloat16),          # stage-1 pooled
            pltpu.VMEM((oh2, oh2, CP), jnp.bfloat16),        # conv2 post-act
            pltpu.VMEM((p2, p2, CP), jnp.bfloat16),          # stage-2 pooled
        ],
        compiler_params=pltpu.CompilerParams(
            dimension_semantics=("parallel",)),
        cost_estimate=pl.CostEstimate(flops=flops, transcendentals=0,
                                      bytes_accessed=bytes_accessed),
    )(x, pp["w1"], pp["s1"], pp["t1"], pp["w2"], pp["s2"], pp["t2"],
      pp["wfc"], pp["bfc"])
    return out[:, 0, :NO_CLASSES]


# ---------------------------------------------------------------------------
# Pure-JAX f32 reference (the spec) for correctness checking
# ---------------------------------------------------------------------------
def reference_forward(x_nchw, p):
    def conv(x, w, b):
        y = lax.conv_general_dilated(
            x, w, (1, 1), "VALID", dimension_numbers=("NCHW", "OIHW", "NCHW"))
        return y + b[None, :, None, None]

    def bn(x, g, be, m, v):
        return ((x - m[None, :, None, None])
                / jnp.sqrt(v[None, :, None, None] + EPS)
                * g[None, :, None, None] + be[None, :, None, None])

    def pool(x):
        return lax.reduce_window(x, -jnp.inf, lax.max,
                                 (1, 1, PK, PK), (1, 1, PS, PS), "VALID")

    x = pool(jnp.maximum(bn(conv(x_nchw, p["w1"], p["b1"]),
                            p["g1"], p["be1"], p["m1"], p["v1"]), 0.0))
    x = pool(jnp.maximum(bn(conv(x, p["w2"], p["b2"]),
                            p["g2"], p["be2"], p["m2"], p["v2"]), 0.0))
    x = x.reshape(x.shape[0], -1)
    return x @ p["wfc"].T + p["bfc"]


# ---------------------------------------------------------------------------
def init_params(key, ip_image_size):
    _, _, _, p2 = _layer_sizes(ip_image_size)
    fc_size = p2 * p2 * 64
    ks = jax.random.split(key, 12)
    f = lambda k, shape, sc=0.1: sc * jax.random.normal(k, shape, jnp.float32)
    params = {
        "w1": f(ks[0], (32, 3, 5, 5)),
        "b1": f(ks[1], (32,)),
        "g1": 1.0 + f(ks[2], (32,)),
        "be1": f(ks[3], (32,)),
        "m1": f(ks[4], (32,)),
        "v1": jax.random.uniform(ks[5], (32,), jnp.float32, 0.5, 1.5),
        "w2": f(ks[6], (64, 32, 5, 5)),
        "b2": f(ks[7], (64,)),
        "g2": 1.0 + f(ks[8], (64,)),
        "be2": f(ks[9], (64,)),
        "m2": f(ks[10], (64,)),
        "v2": jax.random.uniform(ks[11], (64,), jnp.float32, 0.5, 1.5),
    }
    kfc1, kfc2 = jax.random.split(jax.random.fold_in(key, 99))
    params["wfc"] = 0.05 * jax.random.normal(kfc1, (NO_CLASSES, fc_size),
                                             jnp.float32)
    params["bfc"] = 0.05 * jax.random.normal(kfc2, (NO_CLASSES,), jnp.float32)
    return params, fc_size


if __name__ == "__main__":
    key = jax.random.PRNGKey(0)
    ip_image_size = 32          # CIFAR-10 image size implied by the module
    batch = 2
    params, fc_size = init_params(key, ip_image_size)
    prepped = prepare_params(params, ip_image_size)

    x = jax.random.normal(jax.random.fold_in(key, 7),
                          (batch, 3, ip_image_size, ip_image_size), jnp.float32)

    logits = jax.block_until_ready(jax.jit(convnet_forward)(x, prepped))
    assert logits.shape == (batch, NO_CLASSES), logits.shape

    ref = jax.block_until_ready(jax.jit(reference_forward)(x, params))
    # Tolerance deliberately loosened vs. f32 reference: the kernel feeds the
    # MXU bf16 operands (f32 accumulation) per the performance review.
    err = float(jnp.max(jnp.abs(logits - ref)))
    assert jnp.allclose(logits, ref, rtol=8e-2, atol=8e-2), err

    print("KERNEL_OK")
</pallas_src>

<mosaic_0001>
module attributes {stable_mosaic.version = 11 : i64} {
  func.func @_convnet_kernel(%arg0: i32, %arg1: memref<1x32x32x8xbf16, #tpu.memory_space<vmem>>, %arg2: memref<5x5x8x128xbf16, #tpu.memory_space<vmem>>, %arg3: memref<1x128xf32, #tpu.memory_space<vmem>>, %arg4: memref<1x128xf32, #tpu.memory_space<vmem>>, %arg5: memref<5x5x128x128xbf16, #tpu.memory_space<vmem>>, %arg6: memref<1x128xf32, #tpu.memory_space<vmem>>, %arg7: memref<1x128xf32, #tpu.memory_space<vmem>>, %arg8: memref<4x4x128x128xbf16, #tpu.memory_space<vmem>>, %arg9: memref<1x128xf32, #tpu.memory_space<vmem>>, %arg10: memref<1x1x128xf32, #tpu.memory_space<vmem>>, %arg11: memref<28x28x128xbf16, #tpu.memory_space<vmem>>, %arg12: memref<13x13x128xbf16, #tpu.memory_space<vmem>>, %arg13: memref<9x9x128xbf16, #tpu.memory_space<vmem>>, %arg14: memref<4x4x128xbf16, #tpu.memory_space<vmem>>) attributes {dimension_semantics = [#tpu.dimension_semantics<parallel>], iteration_bounds = array<i64: 2>, scalar_prefetch = 0 : i64, scratch_operands = 4 : i64, tpu.core_type = #tpu.core_type<tc>, window_params = [{transform_indices = @transform_0, window_bounds = array<i64: 1, 32, 32, 8>}, {pipeline_mode = #tpu.pipeline_mode<synchronous>, transform_indices = @transform_1, window_bounds = array<i64: 5, 5, 8, 128>}, {pipeline_mode = #tpu.pipeline_mode<synchronous>, transform_indices = @transform_2, window_bounds = array<i64: 1, 128>}, {pipeline_mode = #tpu.pipeline_mode<synchronous>, transform_indices = @transform_3, window_bounds = array<i64: 1, 128>}, {pipeline_mode = #tpu.pipeline_mode<synchronous>, transform_indices = @transform_4, window_bounds = array<i64: 5, 5, 128, 128>}, {pipeline_mode = #tpu.pipeline_mode<synchronous>, transform_indices = @transform_5, window_bounds = array<i64: 1, 128>}, {pipeline_mode = #tpu.pipeline_mode<synchronous>, transform_indices = @transform_6, window_bounds = array<i64: 1, 128>}, {pipeline_mode = #tpu.pipeline_mode<synchronous>, transform_indices = @transform_7, window_bounds = array<i64: 4, 4, 128, 128>}, {pipeline_mode = #tpu.pipeline_mode<synchronous>, transform_indices = @transform_8, window_bounds = array<i64: 1, 128>}, {transform_indices = @transform_9, window_bounds = array<i64: 1, 1, 128>}]} {
    %c0_i32 = arith.constant 0 : i32
    %c28_i32 = arith.constant 28 : i32
    %0 = arith.addi %c0_i32, %c28_i32 : i32
    %c1_i32 = arith.constant 1 : i32
    scf.for %arg15 = %c0_i32 to %0 step %c1_i32  : i32 {
      %c1_i32_104 = arith.constant 1 : i32
      %114 = arith.muli %arg15, %c1_i32_104 : i32
      %c0_i32_105 = arith.constant 0 : i32
      %115 = arith.addi %c0_i32_105, %114 : i32
      %cst_106 = arith.constant 0.000000e+00 : f32
      %116 = vector.broadcast %cst_106 : f32 to vector<28x128xf32>
      %c0_i32_107 = arith.constant 0 : i32
      %117 = arith.addi %115, %c0_i32_107 : i32
      %c0_108 = arith.constant 0 : index
      %118 = arith.index_cast %117 : i32 to index
      %c0_109 = arith.constant 0 : index
      %c0_110 = arith.constant 0 : index
      %119 = vector.load %arg1[%c0_108, %118, %c0_109, %c0_110] : memref<1x32x32x8xbf16, #tpu.memory_space<vmem>>, vector<1x1x32x8xbf16>
      %120 = vector.shape_cast %119 : vector<1x1x32x8xbf16> to vector<32x8xbf16>
      %121 = vector.extract_strided_slice %120 {offsets = [0, 0], sizes = [28, 8], strides = [1, 1]} : vector<32x8xbf16> to vector<28x8xbf16>
      %c0_111 = arith.constant 0 : index
      %c0_112 = arith.constant 0 : index
      %c0_113 = arith.constant 0 : index
      %c0_114 = arith.constant 0 : index
      %122 = vector.load %arg2[%c0_111, %c0_112, %c0_113, %c0_114] : memref<5x5x8x128xbf16, #tpu.memory_space<vmem>>, vector<1x1x8x128xbf16>
      %123 = vector.shape_cast %122 : vector<1x1x8x128xbf16> to vector<8x128xbf16>
      %cst_115 = arith.constant dense<0.000000e+00> : vector<28x128xf32>
      %124 = tpu.matmul %121, %123, %cst_115 {dimension_numbers = #tpu.dot_dimension_numbers<[1], [0], [0], [1], [0, 0, 1, 1], [], []>} : vector<28x8xbf16>, vector<8x128xbf16>, vector<28x128xf32> -> vector<28x128xf32>
      %125 = arith.addf %116, %124 : vector<28x128xf32>
      %126 = vector.extract_strided_slice %120 {offsets = [1, 0], sizes = [28, 8], strides = [1, 1]} : vector<32x8xbf16> to vector<28x8xbf16>
      %c0_116 = arith.constant 0 : index
      %c1_117 = arith.constant 1 : index
      %c0_118 = arith.constant 0 : index
      %c0_119 = arith.constant 0 : index
      %127 = vector.load %arg2[%c0_116, %c1_117, %c0_118, %c0_119] : memref<5x5x8x128xbf16, #tpu.memory_space<vmem>>, vector<1x1x8x128xbf16>
      %128 = vector.shape_cast %127 : vector<1x1x8x128xbf16> to vector<8x128xbf16>
      %cst_120 = arith.constant dense<0.000000e+00> : vector<28x128xf32>
      %129 = tpu.matmul %126, %128, %cst_120 {dimension_numbers = #tpu.dot_dimension_numbers<[1], [0], [0], [1], [0, 0, 1, 1], [], []>} : vector<28x8xbf16>, vector<8x128xbf16>, vector<28x128xf32> -> vector<28x128xf32>
      %130 = arith.addf %125, %129 : vector<28x128xf32>
      %131 = vector.extract_strided_slice %120 {offsets = [2, 0], sizes = [28, 8], strides = [1, 1]} : vector<32x8xbf16> to vector<28x8xbf16>
      %c0_121 = arith.constant 0 : index
      %c2_122 = arith.constant 2 : index
      %c0_123 = arith.constant 0 : index
      %c0_124 = arith.constant 0 : index
      %132 = vector.load %arg2[%c0_121, %c2_122, %c0_123, %c0_124] : memref<5x5x8x128xbf16, #tpu.memory_space<vmem>>, vector<1x1x8x128xbf16>
      %133 = vector.shape_cast %132 : vector<1x1x8x128xbf16> to vector<8x128xbf16>
      %cst_125 = arith.constant dense<0.000000e+00> : vector<28x128xf32>
      %134 = tpu.matmul %131, %133, %cst_125 {dimension_numbers = #tpu.dot_dimension_numbers<[1], [0], [0], [1], [0, 0, 1, 1], [], []>} : vector<28x8xbf16>, vector<8x128xbf16>, vector<28x128xf32> -> vector<28x128xf32>
      %135 = arith.addf %130, %134 : vector<28x128xf32>
      %136 = vector.extract_strided_slice %120 {offsets = [3, 0], sizes = [28, 8], strides = [1, 1]} : vector<32x8xbf16> to vector<28x8xbf16>
      %c0_126 = arith.constant 0 : index
      %c3_127 = arith.constant 3 : index
      %c0_128 = arith.constant 0 : index
      %c0_129 = arith.constant 0 : index
      %137 = vector.load %arg2[%c0_126, %c3_127, %c0_128, %c0_129] : memref<5x5x8x128xbf16, #tpu.memory_space<vmem>>, vector<1x1x8x128xbf16>
      %138 = vector.shape_cast %137 : vector<1x1x8x128xbf16> to vector<8x128xbf16>
      %cst_130 = arith.constant dense<0.000000e+00> : vector<28x128xf32>
      %139 = tpu.matmul %136, %138, %cst_130 {dimension_numbers = #tpu.dot_dimension_numbers<[1], [0], [0], [1], [0, 0, 1, 1], [], []>} : vector<28x8xbf16>, vector<8x128xbf16>, vector<28x128xf32> -> vector<28x128xf32>
      %140 = arith.addf %135, %139 : vector<28x128xf32>
      %141 = vector.extract_strided_slice %120 {offsets = [4, 0], sizes = [28, 8], strides = [1, 1]} : vector<32x8xbf16> to vector<28x8xbf16>
      %c0_131 = arith.constant 0 : index
      %c4 = arith.constant 4 : index
      %c0_132 = arith.constant 0 : index
      %c0_133 = arith.constant 0 : index
      %142 = vector.load %arg2[%c0_131, %c4, %c0_132, %c0_133] : memref<5x5x8x128xbf16, #tpu.memory_space<vmem>>, vector<1x1x8x128xbf16>
      %143 = vector.shape_cast %142 : vector<1x1x8x128xbf16> to vector<8x128xbf16>
      %cst_134 = arith.constant dense<0.000000e+00> : vector<28x128xf32>
      %144 = tpu.matmul %141, %143, %cst_134 {dimension_numbers = #tpu.dot_dimension_numbers<[1], [0], [0], [1], [0, 0, 1, 1], [], []>} : vector<28x8xbf16>, vector<8x128xbf16>, vector<28x128xf32> -> vector<28x128xf32>
      %145 = arith.addf %140, %144 : vector<28x128xf32>
      %c1_i32_135 = arith.constant 1 : i32
      %146 = arith.addi %115, %c1_i32_135 : i32
      %c0_136 = arith.constant 0 : index
      %147 = arith.index_cast %146 : i32 to index
      %c0_137 = arith.constant 0 : index
      %c0_138 = arith.constant 0 : index
      %148 = vector.load %arg1[%c0_136, %147, %c0_137, %c0_138] : memref<1x32x32x8xbf16, #tpu.memory_space<vmem>>, vector<1x1x32x8xbf16>
      %149 = vector.shape_cast %148 : vector<1x1x32x8xbf16> to vector<32x8xbf16>
      %150 = vector.extract_strided_slice %149 {offsets = [0, 0], sizes = [28, 8], strides = [1, 1]} : vector<32x8xbf16> to vector<28x8xbf16>
      %c1_139 = arith.constant 1 : index
      %c0_140 = arith.constant 0 : index
      %c0_141 = arith.constant 0 : index
      %c0_142 = arith.constant 0 : index
      %151 = vector.load %arg2[%c1_139, %c0_140, %c0_141, %c0_142] : memref<5x5x8x128xbf16, #tpu.memory_space<vmem>>, vector<1x1x8x128xbf16>
      %152 = vector.shape_cast %151 : vector<1x1x8x128xbf16> to vector<8x128xbf16>
      %cst_143 = arith.constant dense<0.000000e+00> : vector<28x128xf32>
      %153 = tpu.matmul %150, %152, %cst_143 {dimension_numbers = #tpu.dot_dimension_numbers<[1], [0], [0], [1], [0, 0, 1, 1], [], []>} : vector<28x8xbf16>, vector<8x128xbf16>, vector<28x128xf32> -> vector<28x128xf32>
      %154 = arith.addf %145, %153 : vector<28x128xf32>
      %155 = vector.extract_strided_slice %149 {offsets = [1, 0], sizes = [28, 8], strides = [1, 1]} : vector<32x8xbf16> to vector<28x8xbf16>
      %c1_144 = arith.constant 1 : index
      %c1_145 = arith.constant 1 : index
      %c0_146 = arith.constant 0 : index
      %c0_147 = arith.constant 0 : index
      %156 = vector.load %arg2[%c1_144, %c1_145, %c0_146, %c0_147] : memref<5x5x8x128xbf16, #tpu.memory_space<vmem>>, vector<1x1x8x128xbf16>
      %157 = vector.shape_cast %156 : vector<1x1x8x128xbf16> to vector<8x128xbf16>
      %cst_148 = arith.constant dense<0.000000e+00> : vector<28x128xf32>
      %158 = tpu.matmul %155, %157, %cst_148 {dimension_numbers = #tpu.dot_dimension_numbers<[1], [0], [0], [1], [0, 0, 1, 1], [], []>} : vector<28x8xbf16>, vector<8x128xbf16>, vector<28x128xf32> -> vector<28x128xf32>
      %159 = arith.addf %154, %158 : vector<28x128xf32>
      %160 = vector.extract_strided_slice %149 {offsets = [2, 0], sizes = [28, 8], strides = [1, 1]} : vector<32x8xbf16> to vector<28x8xbf16>
      %c1_149 = arith.constant 1 : index
      %c2_150 = arith.constant 2 : index
      %c0_151 = arith.constant 0 : index
      %c0_152 = arith.constant 0 : index
      %161 = vector.load %arg2[%c1_149, %c2_150, %c0_151, %c0_152] : memref<5x5x8x128xbf16, #tpu.memory_space<vmem>>, vector<1x1x8x128xbf16>
      %162 = vector.shape_cast %161 : vector<1x1x8x128xbf16> to vector<8x128xbf16>
      %cst_153 = arith.constant dense<0.000000e+00> : vector<28x128xf32>
      %163 = tpu.matmul %160, %162, %cst_153 {dimension_numbers = #tpu.dot_dimension_numbers<[1], [0], [0], [1], [0, 0, 1, 1], [], []>} : vector<28x8xbf16>, vector<8x128xbf16>, vector<28x128xf32> -> vector<28x128xf32>
      %164 = arith.addf %159, %163 : vector<28x128xf32>
      %165 = vector.extract_strided_slice %149 {offsets = [3, 0], sizes = [28, 8], strides = [1, 1]} : vector<32x8xbf16> to vector<28x8xbf16>
      %c1_154 = arith.constant 1 : index
      %c3_155 = arith.constant 3 : index
      %c0_156 = arith.constant 0 : index
      %c0_157 = arith.constant 0 : index
      %166 = vector.load %arg2[%c1_154, %c3_155, %c0_156, %c0_157] : memref<5x5x8x128xbf16, #tpu.memory_space<vmem>>, vector<1x1x8x128xbf16>
      %167 = vector.shape_cast %166 : vector<1x1x8x128xbf16> to vector<8x128xbf16>
      %cst_158 = arith.constant dense<0.000000e+00> : vector<28x128xf32>
      %168 = tpu.matmul %165, %167, %cst_158 {dimension_numbers = #tpu.dot_dimension_numbers<[1], [0], [0], [1], [0, 0, 1, 1], [], []>} : vector<28x8xbf16>, vector<8x128xbf16>, vector<28x128xf32> -> vector<28x128xf32>
      %169 = arith.addf %164, %168 : vector<28x128xf32>
      %170 = vector.extract_strided_slice %149 {offsets = [4, 0], sizes = [28, 8], strides = [1, 1]} : vector<32x8xbf16> to vector<28x8xbf16>
      %c1_159 = arith.constant 1 : index
      %c4_160 = arith.constant 4 : index
      %c0_161 = arith.constant 0 : index
      %c0_162 = arith.constant 0 : index
      %171 = vector.load %arg2[%c1_159, %c4_160, %c0_161, %c0_162] : memref<5x5x8x128xbf16, #tpu.memory_space<vmem>>, vector<1x1x8x128xbf16>
      %172 = vector.shape_cast %171 : vector<1x1x8x128xbf16> to vector<8x128xbf16>
      %cst_163 = arith.constant dense<0.000000e+00> : vector<28x128xf32>
      %173 = tpu.matmul %170, %172, %cst_163 {dimension_numbers = #tpu.dot_dimension_numbers<[1], [0], [0], [1], [0, 0, 1, 1], [], []>} : vector<28x8xbf16>, vector<8x128xbf16>, vector<28x128xf32> -> vector<28x128xf32>
      %174 = arith.addf %169, %173 : vector<28x128xf32>
      %c2_i32_164 = arith.constant 2 : i32
      %175 = arith.addi %115, %c2_i32_164 : i32
      %c0_165 = arith.constant 0 : index
      %176 = arith.index_cast %175 : i32 to index
      %c0_166 = arith.constant 0 : index
      %c0_167 = arith.constant 0 : index
      %177 = vector.load %arg1[%c0_165, %176, %c0_166, %c0_167] : memref<1x32x32x8xbf16, #tpu.memory_space<vmem>>, vector<1x1x32x8xbf16>
      %178 = vector.shape_cast %177 : vector<1x1x32x8xbf16> to vector<32x8xbf16>
      %179 = vector.extract_strided_slice %178 {offsets = [0, 0], sizes = [28, 8], strides = [1, 1]} : vector<32x8xbf16> to vector<28x8xbf16>
      %c2_168 = arith.constant 2 : index
      %c0_169 = arith.constant 0 : index
      %c0_170 = arith.constant 0 : index
      %c0_171 = arith.constant 0 : index
      %180 = vector.load %arg2[%c2_168, %c0_169, %c0_170, %c0_171] : memref<5x5x8x128xbf16, #tpu.memory_space<vmem>>, vector<1x1x8x128xbf16>
      %181 = vector.shape_cast %180 : vector<1x1x8x128xbf16> to vector<8x128xbf16>
      %cst_172 = arith.constant dense<0.000000e+00> : vector<28x128xf32>
      %182 = tpu.matmul %179, %181, %cst_172 {dimension_numbers = #tpu.dot_dimension_numbers<[1], [0], [0], [1], [0, 0, 1, 1], [], []>} : vector<28x8xbf16>, vector<8x128xbf16>, vector<28x128xf32> -> vector<28x128xf32>
      %183 = arith.addf %174, %182 : vector<28x128xf32>
      %184 = vector.extract_strided_slice %178 {offsets = [1, 0], sizes = [28, 8], strides = [1, 1]} : vector<32x8xbf16> to vector<28x8xbf16>
      %c2_173 = arith.constant 2 : index
      %c1_174 = arith.constant 1 : index
      %c0_175 = arith.constant 0 : index
      %c0_176 = arith.constant 0 : index
      %185 = vector.load %arg2[%c2_173, %c1_174, %c0_175, %c0_176] : memref<5x5x8x128xbf16, #tpu.memory_space<vmem>>, vector<1x1x8x128xbf16>
      %186 = vector.shape_cast %185 : vector<1x1x8x128xbf16> to vector<8x128xbf16>
      %cst_177 = arith.constant dense<0.000000e+00> : vector<28x128xf32>
      %187 = tpu.matmul %184, %186, %cst_177 {dimension_numbers = #tpu.dot_dimension_numbers<[1], [0], [0], [1], [0, 0, 1, 1], [], []>} : vector<28x8xbf16>, vector<8x128xbf16>, vector<28x128xf32> -> vector<28x128xf32>
      %188 = arith.addf %183, %187 : vector<28x128xf32>
      %189 = vector.extract_strided_slice %178 {offsets = [2, 0], sizes = [28, 8], strides = [1, 1]} : vector<32x8xbf16> to vector<28x8xbf16>
      %c2_178 = arith.constant 2 : index
      %c2_179 = arith.constant 2 : index
      %c0_180 = arith.constant 0 : index
      %c0_181 = arith.constant 0 : index
      %190 = vector.load %arg2[%c2_178, %c2_179, %c0_180, %c0_181] : memref<5x5x8x128xbf16, #tpu.memory_space<vmem>>, vector<1x1x8x128xbf16>
      %191 = vector.shape_cast %190 : vector<1x1x8x128xbf16> to vector<8x128xbf16>
      %cst_182 = arith.constant dense<0.000000e+00> : vector<28x128xf32>
      %192 = tpu.matmul %189, %191, %cst_182 {dimension_numbers = #tpu.dot_dimension_numbers<[1], [0], [0], [1], [0, 0, 1, 1], [], []>} : vector<28x8xbf16>, vector<8x128xbf16>, vector<28x128xf32> -> vector<28x128xf32>
      %193 = arith.addf %188, %192 : vector<28x128xf32>
      %194 = vector.extract_strided_slice %178 {offsets = [3, 0], sizes = [28, 8], strides = [1, 1]} : vector<32x8xbf16> to vector<28x8xbf16>
      %c2_183 = arith.constant 2 : index
      %c3_184 = arith.constant 3 : index
      %c0_185 = arith.constant 0 : index
      %c0_186 = arith.constant 0 : index
      %195 = vector.load %arg2[%c2_183, %c3_184, %c0_185, %c0_186] : memref<5x5x8x128xbf16, #tpu.memory_space<vmem>>, vector<1x1x8x128xbf16>
      %196 = vector.shape_cast %195 : vector<1x1x8x128xbf16> to vector<8x128xbf16>
      %cst_187 = arith.constant dense<0.000000e+00> : vector<28x128xf32>
      %197 = tpu.matmul %194, %196, %cst_187 {dimension_numbers = #tpu.dot_dimension_numbers<[1], [0], [0], [1], [0, 0, 1, 1], [], []>} : vector<28x8xbf16>, vector<8x128xbf16>, vector<28x128xf32> -> vector<28x128xf32>
      %198 = arith.addf %193, %197 : vector<28x128xf32>
      %199 = vector.extract_strided_slice %178 {offsets = [4, 0], sizes = [28, 8], strides = [1, 1]} : vector<32x8xbf16> to vector<28x8xbf16>
      %c2_188 = arith.constant 2 : index
      %c4_189 = arith.constant 4 : index
      %c0_190 = arith.constant 0 : index
      %c0_191 = arith.constant 0 : index
      %200 = vector.load %arg2[%c2_188, %c4_189, %c0_190, %c0_191] : memref<5x5x8x128xbf16, #tpu.memory_space<vmem>>, vector<1x1x8x128xbf16>
      %201 = vector.shape_cast %200 : vector<1x1x8x128xbf16> to vector<8x128xbf16>
      %cst_192 = arith.constant dense<0.000000e+00> : vector<28x128xf32>
      %202 = tpu.matmul %199, %201, %cst_192 {dimension_numbers = #tpu.dot_dimension_numbers<[1], [0], [0], [1], [0, 0, 1, 1], [], []>} : vector<28x8xbf16>, vector<8x128xbf16>, vector<28x128xf32> -> vector<28x128xf32>
      %203 = arith.addf %198, %202 : vector<28x128xf32>
      %c3_i32 = arith.constant 3 : i32
      %204 = arith.addi %115, %c3_i32 : i32
      %c0_193 = arith.constant 0 : index
      %205 = arith.index_cast %204 : i32 to index
      %c0_194 = arith.constant 0 : index
      %c0_195 = arith.constant 0 : index
      %206 = vector.load %arg1[%c0_193, %205, %c0_194, %c0_195] : memref<1x32x32x8xbf16, #tpu.memory_space<vmem>>, vector<1x1x32x8xbf16>
      %207 = vector.shape_cast %206 : vector<1x1x32x8xbf16> to vector<32x8xbf16>
      %208 = vector.extract_strided_slice %207 {offsets = [0, 0], sizes = [28, 8], strides = [1, 1]} : vector<32x8xbf16> to vector<28x8xbf16>
      %c3_196 = arith.constant 3 : index
      %c0_197 = arith.constant 0 : index
      %c0_198 = arith.constant 0 : index
      %c0_199 = arith.constant 0 : index
      %209 = vector.load %arg2[%c3_196, %c0_197, %c0_198, %c0_199] : memref<5x5x8x128xbf16, #tpu.memory_space<vmem>>, vector<1x1x8x128xbf16>
      %210 = vector.shape_cast %209 : vector<1x1x8x128xbf16> to vector<8x128xbf16>
      %cst_200 = arith.constant dense<0.000000e+00> : vector<28x128xf32>
      %211 = tpu.matmul %208, %210, %cst_200 {dimension_numbers = #tpu.dot_dimension_numbers<[1], [0], [0], [1], [0, 0, 1, 1], [], []>} : vector<28x8xbf16>, vector<8x128xbf16>, vector<28x128xf32> -> vector<28x128xf32>
      %212 = arith.addf %203, %211 : vector<28x128xf32>
      %213 = vector.extract_strided_slice %207 {offsets = [1, 0], sizes = [28, 8], strides = [1, 1]} : vector<32x8xbf16> to vector<28x8xbf16>
      %c3_201 = arith.constant 3 : index
      %c1_202 = arith.constant 1 : index
      %c0_203 = arith.constant 0 : index
      %c0_204 = arith.constant 0 : index
      %214 = vector.load %arg2[%c3_201, %c1_202, %c0_203, %c0_204] : memref<5x5x8x128xbf16, #tpu.memory_space<vmem>>, vector<1x1x8x128xbf16>
      %215 = vector.shape_cast %214 : vector<1x1x8x128xbf16> to vector<8x128xbf16>
      %cst_205 = arith.constant dense<0.000000e+00> : vector<28x128xf32>
      %216 = tpu.matmul %213, %215, %cst_205 {dimension_numbers = #tpu.dot_dimension_numbers<[1], [0], [0], [1], [0, 0, 1, 1], [], []>} : vector<28x8xbf16>, vector<8x128xbf16>, vector<28x128xf32> -> vector<28x128xf32>
      %217 = arith.addf %212, %216 : vector<28x128xf32>
      %218 = vector.extract_strided_slice %207 {offsets = [2, 0], sizes = [28, 8], strides = [1, 1]} : vector<32x8xbf16> to vector<28x8xbf16>
      %c3_206 = arith.constant 3 : index
      %c2_207 = arith.constant 2 : index
      %c0_208 = arith.constant 0 : index
      %c0_209 = arith.constant 0 : index
      %219 = vector.load %arg2[%c3_206, %c2_207, %c0_208, %c0_209] : memref<5x5x8x128xbf16, #tpu.memory_space<vmem>>, vector<1x1x8x128xbf16>
      %220 = vector.shape_cast %219 : vector<1x1x8x128xbf16> to vector<8x128xbf16>
      %cst_210 = arith.constant dense<0.000000e+00> : vector<28x128xf32>
      %221 = tpu.matmul %218, %220, %cst_210 {dimension_numbers = #tpu.dot_dimension_numbers<[1], [0], [0], [1], [0, 0, 1, 1], [], []>} : vector<28x8xbf16>, vector<8x128xbf16>, vector<28x128xf32> -> vector<28x128xf32>
      %222 = arith.addf %217, %221 : vector<28x128xf32>
      %223 = vector.extract_strided_slice %207 {offsets = [3, 0], sizes = [28, 8], strides = [1, 1]} : vector<32x8xbf16> to vector<28x8xbf16>
      %c3_211 = arith.constant 3 : index
      %c3_212 = arith.constant 3 : index
      %c0_213 = arith.constant 0 : index
      %c0_214 = arith.constant 0 : index
      %224 = vector.load %arg2[%c3_211, %c3_212, %c0_213, %c0_214] : memref<5x5x8x128xbf16, #tpu.memory_space<vmem>>, vector<1x1x8x128xbf16>
      %225 = vector.shape_cast %224 : vector<1x1x8x128xbf16> to vector<8x128xbf16>
      %cst_215 = arith.constant dense<0.000000e+00> : vector<28x128xf32>
      %226 = tpu.matmul %223, %225, %cst_215 {dimension_numbers = #tpu.dot_dimension_numbers<[1], [0], [0], [1], [0, 0, 1, 1], [], []>} : vector<28x8xbf16>, vector<8x128xbf16>, vector<28x128xf32> -> vector<28x128xf32>
      %227 = arith.addf %222, %226 : vector<28x128xf32>
      %228 = vector.extract_strided_slice %207 {offsets = [4, 0], sizes = [28, 8], strides = [1, 1]} : vector<32x8xbf16> to vector<28x8xbf16>
      %c3_216 = arith.constant 3 : index
      %c4_217 = arith.constant 4 : index
      %c0_218 = arith.constant 0 : index
      %c0_219 = arith.constant 0 : index
      %229 = vector.load %arg2[%c3_216, %c4_217, %c0_218, %c0_219] : memref<5x5x8x128xbf16, #tpu.memory_space<vmem>>, vector<1x1x8x128xbf16>
      %230 = vector.shape_cast %229 : vector<1x1x8x128xbf16> to vector<8x128xbf16>
      %cst_220 = arith.constant dense<0.000000e+00> : vector<28x128xf32>
      %231 = tpu.matmul %228, %230, %cst_220 {dimension_numbers = #tpu.dot_dimension_numbers<[1], [0], [0], [1], [0, 0, 1, 1], [], []>} : vector<28x8xbf16>, vector<8x128xbf16>, vector<28x128xf32> -> vector<28x128xf32>
      %232 = arith.addf %227, %231 : vector<28x128xf32>
      %c4_i32_221 = arith.constant 4 : i32
      %233 = arith.addi %115, %c4_i32_221 : i32
      %c0_222 = arith.constant 0 : index
      %234 = arith.index_cast %233 : i32 to index
      %c0_223 = arith.constant 0 : index
      %c0_224 = arith.constant 0 : index
      %235 = vector.load %arg1[%c0_222, %234, %c0_223, %c0_224] : memref<1x32x32x8xbf16, #tpu.memory_space<vmem>>, vector<1x1x32x8xbf16>
      %236 = vector.shape_cast %235 : vector<1x1x32x8xbf16> to vector<32x8xbf16>
      %237 = vector.extract_strided_slice %236 {offsets = [0, 0], sizes = [28, 8], strides = [1, 1]} : vector<32x8xbf16> to vector<28x8xbf16>
      %c4_225 = arith.constant 4 : index
      %c0_226 = arith.constant 0 : index
      %c0_227 = arith.constant 0 : index
      %c0_228 = arith.constant 0 : index
      %238 = vector.load %arg2[%c4_225, %c0_226, %c0_227, %c0_228] : memref<5x5x8x128xbf16, #tpu.memory_space<vmem>>, vector<1x1x8x128xbf16>
      %239 = vector.shape_cast %238 : vector<1x1x8x128xbf16> to vector<8x128xbf16>
      %cst_229 = arith.constant dense<0.000000e+00> : vector<28x128xf32>
      %240 = tpu.matmul %237, %239, %cst_229 {dimension_numbers = #tpu.dot_dimension_numbers<[1], [0], [0], [1], [0, 0, 1, 1], [], []>} : vector<28x8xbf16>, vector<8x128xbf16>, vector<28x128xf32> -> vector<28x128xf32>
      %241 = arith.addf %232, %240 : vector<28x128xf32>
      %242 = vector.extract_strided_slice %236 {offsets = [1, 0], sizes = [28, 8], strides = [1, 1]} : vector<32x8xbf16> to vector<28x8xbf16>
      %c4_230 = arith.constant 4 : index
      %c1_231 = arith.constant 1 : index
      %c0_232 = arith.constant 0 : index
      %c0_233 = arith.constant 0 : index
      %243 = vector.load %arg2[%c4_230, %c1_231, %c0_232, %c0_233] : memref<5x5x8x128xbf16, #tpu.memory_space<vmem>>, vector<1x1x8x128xbf16>
      %244 = vector.shape_cast %243 : vector<1x1x8x128xbf16> to vector<8x128xbf16>
      %cst_234 = arith.constant dense<0.000000e+00> : vector<28x128xf32>
      %245 = tpu.matmul %242, %244, %cst_234 {dimension_numbers = #tpu.dot_dimension_numbers<[1], [0], [0], [1], [0, 0, 1, 1], [], []>} : vector<28x8xbf16>, vector<8x128xbf16>, vector<28x128xf32> -> vector<28x128xf32>
      %246 = arith.addf %241, %245 : vector<28x128xf32>
      %247 = vector.extract_strided_slice %236 {offsets = [2, 0], sizes = [28, 8], strides = [1, 1]} : vector<32x8xbf16> to vector<28x8xbf16>
      %c4_235 = arith.constant 4 : index
      %c2_236 = arith.constant 2 : index
      %c0_237 = arith.constant 0 : index
      %c0_238 = arith.constant 0 : index
      %248 = vector.load %arg2[%c4_235, %c2_236, %c0_237, %c0_238] : memref<5x5x8x128xbf16, #tpu.memory_space<vmem>>, vector<1x1x8x128xbf16>
      %249 = vector.shape_cast %248 : vector<1x1x8x128xbf16> to vector<8x128xbf16>
      %cst_239 = arith.constant dense<0.000000e+00> : vector<28x128xf32>
      %250 = tpu.matmul %247, %249, %cst_239 {dimension_numbers = #tpu.dot_dimension_numbers<[1], [0], [0], [1], [0, 0, 1, 1], [], []>} : vector<28x8xbf16>, vector<8x128xbf16>, vector<28x128xf32> -> vector<28x128xf32>
      %251 = arith.addf %246, %250 : vector<28x128xf32>
      %252 = vector.extract_strided_slice %236 {offsets = [3, 0], sizes = [28, 8], strides = [1, 1]} : vector<32x8xbf16> to vector<28x8xbf16>
      %c4_240 = arith.constant 4 : index
      %c3_241 = arith.constant 3 : index
      %c0_242 = arith.constant 0 : index
      %c0_243 = arith.constant 0 : index
      %253 = vector.load %arg2[%c4_240, %c3_241, %c0_242, %c0_243] : memref<5x5x8x128xbf16, #tpu.memory_space<vmem>>, vector<1x1x8x128xbf16>
      %254 = vector.shape_cast %253 : vector<1x1x8x128xbf16> to vector<8x128xbf16>
      %cst_244 = arith.constant dense<0.000000e+00> : vector<28x128xf32>
      %255 = tpu.matmul %252, %254, %cst_244 {dimension_numbers = #tpu.dot_dimension_numbers<[1], [0], [0], [1], [0, 0, 1, 1], [], []>} : vector<28x8xbf16>, vector<8x128xbf16>, vector<28x128xf32> -> vector<28x128xf32>
      %256 = arith.addf %251, %255 : vector<28x128xf32>
      %257 = vector.extract_strided_slice %236 {offsets = [4, 0], sizes = [28, 8], strides = [1, 1]} : vector<32x8xbf16> to vector<28x8xbf16>
      %c4_245 = arith.constant 4 : index
      %c4_246 = arith.constant 4 : index
      %c0_247 = arith.constant 0 : index
      %c0_248 = arith.constant 0 : index
      %258 = vector.load %arg2[%c4_245, %c4_246, %c0_247, %c0_248] : memref<5x5x8x128xbf16, #tpu.memory_space<vmem>>, vector<1x1x8x128xbf16>
      %259 = vector.shape_cast %258 : vector<1x1x8x128xbf16> to vector<8x128xbf16>
      %cst_249 = arith.constant dense<0.000000e+00> : vector<28x128xf32>
      %260 = tpu.matmul %257, %259, %cst_249 {dimension_numbers = #tpu.dot_dimension_numbers<[1], [0], [0], [1], [0, 0, 1, 1], [], []>} : vector<28x8xbf16>, vector<8x128xbf16>, vector<28x128xf32> -> vector<28x128xf32>
      %261 = arith.addf %256, %260 : vector<28x128xf32>
      %c0_250 = arith.constant 0 : index
      %c0_251 = arith.constant 0 : index
      %262 = vector.load %arg3[%c0_250, %c0_251] : memref<1x128xf32, #tpu.memory_space<vmem>>, vector<1x128xf32>
      %263 = vector.broadcast %262 : vector<1x128xf32> to vector<28x128xf32>
      %264 = arith.mulf %261, %263 : vector<28x128xf32>
      %c0_252 = arith.constant 0 : index
      %c0_253 = arith.constant 0 : index
      %265 = vector.load %arg4[%c0_252, %c0_253] : memref<1x128xf32, #tpu.memory_space<vmem>>, vector<1x128xf32>
      %266 = vector.broadcast %265 : vector<1x128xf32> to vector<28x128xf32>
      %267 = arith.addf %264, %266 : vector<28x128xf32>
      %cst_254 = arith.constant 0.000000e+00 : f32
      %268 = vector.broadcast %cst_254 : f32 to vector<28x128xf32>
      %269 = arith.maximumf %267, %268 : vector<28x128xf32>
      %270 = arith.truncf %269 : vector<28x128xf32> to vector<28x128xbf16>
      %271 = arith.index_cast %115 : i32 to index
      %c0_255 = arith.constant 0 : index
      %c0_256 = arith.constant 0 : index
      %272 = vector.load %arg11[%271, %c0_255, %c0_256] : memref<28x28x128xbf16, #tpu.memory_space<vmem>>, vector<1x28x128xbf16>
      %273 = vector.shape_cast %272 : vector<1x28x128xbf16> to vector<28x128xbf16>
      %274 = vector.shape_cast %270 : vector<28x128xbf16> to vector<1x28x128xbf16>
      tpu.vector_store %arg11[%271, %c0_255, %c0_256], %274 {strides = array<i32>} : memref<28x28x128xbf16, #tpu.memory_space<vmem>>, vector<1x28x128xbf16>,
    }
    %c28_i32_0 = arith.constant 28 : i32
    %1 = tpu.iota {dimensions = array<i32: 0>} : vector<13x26xi32>
    %2 = tpu.iota {dimensions = array<i32: 1>} : vector<13x26xi32>
    %c2_i32 = arith.constant 2 : i32
    %3 = vector.broadcast %c2_i32 : i32 to vector<13x26xi32>
    %4 = arith.muli %3, %1 : vector<13x26xi32>
    %5 = arith.cmpi eq, %2, %4 : vector<13x26xi32>
    %6 = arith.extui %5 : vector<13x26xi1> to vector<13x26xi32>
    %7 = arith.sitofp %6 : vector<13x26xi32> to vector<13x26xf32>
    %8 = arith.truncf %7 : vector<13x26xf32> to vector<13x26xbf16>
    %c0_i32_1 = arith.constant 0 : i32
    %c13_i32 = arith.constant 13 : i32
    %9 = arith.addi %c0_i32_1, %c13_i32 : i32
    %c1_i32_2 = arith.constant 1 : i32
    scf.for %arg15 = %c0_i32_1 to %9 step %c1_i32_2  : i32 {
      %c1_i32_104 = arith.constant 1 : i32
      %114 = arith.muli %arg15, %c1_i32_104 : i32
      %c0_i32_105 = arith.constant 0 : i32
      %115 = arith.addi %c0_i32_105, %114 : i32
      %c2_i32_106 = arith.constant 2 : i32
      %116 = arith.muli %c2_i32_106, %115 : i32
      %117 = arith.index_cast %116 : i32 to index
      %c0_107 = arith.constant 0 : index
      %c0_108 = arith.constant 0 : index
      %118 = vector.load %arg11[%117, %c0_107, %c0_108] : memref<28x28x128xbf16, #tpu.memory_space<vmem>>, vector<1x28x128xbf16>
      %119 = vector.shape_cast %118 : vector<1x28x128xbf16> to vector<28x128xbf16>
      %c2_i32_109 = arith.constant 2 : i32
      %120 = arith.muli %c2_i32_109, %115 : i32
      %c1_i32_110 = arith.constant 1 : i32
      %121 = arith.addi %120, %c1_i32_110 : i32
      %122 = arith.index_cast %121 : i32 to index
      %c0_111 = arith.constant 0 : index
      %c0_112 = arith.constant 0 : index
      %123 = vector.load %arg11[%122, %c0_111, %c0_112] : memref<28x28x128xbf16, #tpu.memory_space<vmem>>, vector<1x28x128xbf16>
      %124 = vector.shape_cast %123 : vector<1x28x128xbf16> to vector<28x128xbf16>
      %c2_i32_113 = arith.constant 2 : i32
      %125 = arith.muli %c2_i32_113, %115 : i32
      %c2_i32_114 = arith.constant 2 : i32
      %126 = arith.addi %125, %c2_i32_114 : i32
      %127 = arith.index_cast %126 : i32 to index
      %c0_115 = arith.constant 0 : index
      %c0_116 = arith.constant 0 : index
      %128 = vector.load %arg11[%127, %c0_115, %c0_116] : memref<28x28x128xbf16, #tpu.memory_space<vmem>>, vector<1x28x128xbf16>
      %129 = vector.shape_cast %128 : vector<1x28x128xbf16> to vector<28x128xbf16>
      %130 = arith.maximumf %119, %124 : vector<28x128xbf16>
      %131 = arith.maximumf %130, %129 : vector<28x128xbf16>
      %132 = vector.extract_strided_slice %131 {offsets = [0, 0], sizes = [26, 128], strides = [1, 1]} : vector<28x128xbf16> to vector<26x128xbf16>
      %133 = vector.extract_strided_slice %131 {offsets = [1, 0], sizes = [26, 128], strides = [1, 1]} : vector<28x128xbf16> to vector<26x128xbf16>
      %134 = arith.maximumf %132, %133 : vector<26x128xbf16>
      %135 = vector.extract_strided_slice %131 {offsets = [2, 0], sizes = [26, 128], strides = [1, 1]} : vector<28x128xbf16> to vector<26x128xbf16>
      %136 = arith.maximumf %134, %135 : vector<26x128xbf16>
      %cst_117 = arith.constant dense<0.000000e+00> : vector<13x128xf32>
      %137 = tpu.matmul %8, %136, %cst_117 {dimension_numbers = #tpu.dot_dimension_numbers<[1], [0], [0], [1], [0, 0, 1, 1], [], []>} : vector<13x26xbf16>, vector<26x128xbf16>, vector<13x128xf32> -> vector<13x128xf32>
      %138 = arith.truncf %137 : vector<13x128xf32> to vector<13x128xbf16>
      %139 = arith.index_cast %115 : i32 to index
      %c0_118 = arith.constant 0 : index
      %c0_119 = arith.constant 0 : index
      %140 = vector.load %arg12[%139, %c0_118, %c0_119] : memref<13x13x128xbf16, #tpu.memory_space<vmem>>, vector<1x13x128xbf16>
      %141 = vector.shape_cast %140 : vector<1x13x128xbf16> to vector<13x128xbf16>
      %142 = vector.shape_cast %138 : vector<13x128xbf16> to vector<1x13x128xbf16>
      tpu.vector_store %arg12[%139, %c0_118, %c0_119], %142 {strides = array<i32>} : memref<13x13x128xbf16, #tpu.memory_space<vmem>>, vector<1x13x128xbf16>,
    }
    %c13_i32_3 = arith.constant 13 : i32
    %c0_i32_4 = arith.constant 0 : i32
    %c9_i32 = arith.constant 9 : i32
    %10 = arith.addi %c0_i32_4, %c9_i32 : i32
    %c1_i32_5 = arith.constant 1 : i32
    scf.for %arg15 = %c0_i32_4 to %10 step %c1_i32_5  : i32 {
      %c1_i32_104 = arith.constant 1 : i32
      %114 = arith.muli %arg15, %c1_i32_104 : i32
      %c0_i32_105 = arith.constant 0 : i32
      %115 = arith.addi %c0_i32_105, %114 : i32
      %cst_106 = arith.constant 0.000000e+00 : f32
      %116 = vector.broadcast %cst_106 : f32 to vector<9x128xf32>
      %c0_i32_107 = arith.constant 0 : i32
      %117 = arith.addi %115, %c0_i32_107 : i32
      %118 = arith.index_cast %117 : i32 to index
      %c0_108 = arith.constant 0 : index
      %c0_109 = arith.constant 0 : index
      %119 = vector.load %arg12[%118, %c0_108, %c0_109] : memref<13x13x128xbf16, #tpu.memory_space<vmem>>, vector<1x13x128xbf16>
      %120 = vector.shape_cast %119 : vector<1x13x128xbf16> to vector<13x128xbf16>
      %121 = vector.extract_strided_slice %120 {offsets = [0, 0], sizes = [9, 128], strides = [1, 1]} : vector<13x128xbf16> to vector<9x128xbf16>
      %c0_110 = arith.constant 0 : index
      %c0_111 = arith.constant 0 : index
      %c0_112 = arith.constant 0 : index
      %c0_113 = arith.constant 0 : index
      %122 = vector.load %arg5[%c0_110, %c0_111, %c0_112, %c0_113] : memref<5x5x128x128xbf16, #tpu.memory_space<vmem>>, vector<1x1x128x128xbf16>
      %123 = vector.shape_cast %122 : vector<1x1x128x128xbf16> to vector<128x128xbf16>
      %cst_114 = arith.constant dense<0.000000e+00> : vector<9x128xf32>
      %124 = tpu.matmul %121, %123, %cst_114 {dimension_numbers = #tpu.dot_dimension_numbers<[1], [0], [0], [1], [0, 0, 1, 1], [], []>} : vector<9x128xbf16>, vector<128x128xbf16>, vector<9x128xf32> -> vector<9x128xf32>
      %125 = arith.addf %116, %124 : vector<9x128xf32>
      %126 = vector.extract_strided_slice %120 {offsets = [1, 0], sizes = [9, 128], strides = [1, 1]} : vector<13x128xbf16> to vector<9x128xbf16>
      %c0_115 = arith.constant 0 : index
      %c1_116 = arith.constant 1 : index
      %c0_117 = arith.constant 0 : index
      %c0_118 = arith.constant 0 : index
      %127 = vector.load %arg5[%c0_115, %c1_116, %c0_117, %c0_118] : memref<5x5x128x128xbf16, #tpu.memory_space<vmem>>, vector<1x1x128x128xbf16>
      %128 = vector.shape_cast %127 : vector<1x1x128x128xbf16> to vector<128x128xbf16>
      %cst_119 = arith.constant dense<0.000000e+00> : vector<9x128xf32>
      %129 = tpu.matmul %126, %128, %cst_119 {dimension_numbers = #tpu.dot_dimension_numbers<[1], [0], [0], [1], [0, 0, 1, 1], [], []>} : vector<9x128xbf16>, vector<128x128xbf16>, vector<9x128xf32> -> vector<9x128xf32>
      %130 = arith.addf %125, %129 : vector<9x128xf32>
      %131 = vector.extract_strided_slice %120 {offsets = [2, 0], sizes = [9, 128], strides = [1, 1]} : vector<13x128xbf16> to vector<9x128xbf16>
      %c0_120 = arith.constant 0 : index
      %c2_121 = arith.constant 2 : index
      %c0_122 = arith.constant 0 : index
      %c0_123 = arith.constant 0 : index
      %132 = vector.load %arg5[%c0_120, %c2_121, %c0_122, %c0_123] : memref<5x5x128x128xbf16, #tpu.memory_space<vmem>>, vector<1x1x128x128xbf16>
      %133 = vector.shape_cast %132 : vector<1x1x128x128xbf16> to vector<128x128xbf16>
      %cst_124 = arith.constant dense<0.000000e+00> : vector<9x128xf32>
      %134 = tpu.matmul %131, %133, %cst_124 {dimension_numbers = #tpu.dot_dimension_numbers<[1], [0], [0], [1], [0, 0, 1, 1], [], []>} : vector<9x128xbf16>, vector<128x128xbf16>, vector<9x128xf32> -> vector<9x128xf32>
      %135 = arith.addf %130, %134 : vector<9x128xf32>
      %136 = vector.extract_strided_slice %120 {offsets = [3, 0], sizes = [9, 128], strides = [1, 1]} : vector<13x128xbf16> to vector<9x128xbf16>
      %c0_125 = arith.constant 0 : index
      %c3_126 = arith.constant 3 : index
      %c0_127 = arith.constant 0 : index
      %c0_128 = arith.constant 0 : index
      %137 = vector.load %arg5[%c0_125, %c3_126, %c0_127, %c0_128] : memref<5x5x128x128xbf16, #tpu.memory_space<vmem>>, vector<1x1x128x128xbf16>
      %138 = vector.shape_cast %137 : vector<1x1x128x128xbf16> to vector<128x128xbf16>
      %cst_129 = arith.constant dense<0.000000e+00> : vector<9x128xf32>
      %139 = tpu.matmul %136, %138, %cst_129 {dimension_numbers = #tpu.dot_dimension_numbers<[1], [0], [0], [1], [0, 0, 1, 1], [], []>} : vector<9x128xbf16>, vector<128x128xbf16>, vector<9x128xf32> -> vector<9x128xf32>
      %140 = arith.addf %135, %139 : vector<9x128xf32>
      %141 = vector.extract_strided_slice %120 {offsets = [4, 0], sizes = [9, 128], strides = [1, 1]} : vector<13x128xbf16> to vector<9x128xbf16>
      %c0_130 = arith.constant 0 : index
      %c4 = arith.constant 4 : index
      %c0_131 = arith.constant 0 : index
      %c0_132 = arith.constant 0 : index
      %142 = vector.load %arg5[%c0_130, %c4, %c0_131, %c0_132] : memref<5x5x128x128xbf16, #tpu.memory_space<vmem>>, vector<1x1x128x128xbf16>
      %143 = vector.shape_cast %142 : vector<1x1x128x128xbf16> to vector<128x128xbf16>
      %cst_133 = arith.constant dense<0.000000e+00> : vector<9x128xf32>
      %144 = tpu.matmul %141, %143, %cst_133 {dimension_numbers = #tpu.dot_dimension_numbers<[1], [0], [0], [1], [0, 0, 1, 1], [], []>} : vector<9x128xbf16>, vector<128x128xbf16>, vector<9x128xf32> -> vector<9x128xf32>
      %145 = arith.addf %140, %144 : vector<9x128xf32>
      %c1_i32_134 = arith.constant 1 : i32
      %146 = arith.addi %115, %c1_i32_134 : i32
      %147 = arith.index_cast %146 : i32 to index
      %c0_135 = arith.constant 0 : index
      %c0_136 = arith.constant 0 : index
      %148 = vector.load %arg12[%147, %c0_135, %c0_136] : memref<13x13x128xbf16, #tpu.memory_space<vmem>>, vector<1x13x128xbf16>
      %149 = vector.shape_cast %148 : vector<1x13x128xbf16> to vector<13x128xbf16>
      %150 = vector.extract_strided_slice %149 {offsets = [0, 0], sizes = [9, 128], strides = [1, 1]} : vector<13x128xbf16> to vector<9x128xbf16>
      %c1_137 = arith.constant 1 : index
      %c0_138 = arith.constant 0 : index
      %c0_139 = arith.constant 0 : index
      %c0_140 = arith.constant 0 : index
      %151 = vector.load %arg5[%c1_137, %c0_138, %c0_139, %c0_140] : memref<5x5x128x128xbf16, #tpu.memory_space<vmem>>, vector<1x1x128x128xbf16>
      %152 = vector.shape_cast %151 : vector<1x1x128x128xbf16> to vector<128x128xbf16>
      %cst_141 = arith.constant dense<0.000000e+00> : vector<9x128xf32>
      %153 = tpu.matmul %150, %152, %cst_141 {dimension_numbers = #tpu.dot_dimension_numbers<[1], [0], [0], [1], [0, 0, 1, 1], [], []>} : vector<9x128xbf16>, vector<128x128xbf16>, vector<9x128xf32> -> vector<9x128xf32>
      %154 = arith.addf %145, %153 : vector<9x128xf32>
      %155 = vector.extract_strided_slice %149 {offsets = [1, 0], sizes = [9, 128], strides = [1, 1]} : vector<13x128xbf16> to vector<9x128xbf16>
      %c1_142 = arith.constant 1 : index
      %c1_143 = arith.constant 1 : index
      %c0_144 = arith.constant 0 : index
      %c0_145 = arith.constant 0 : index
      %156 = vector.load %arg5[%c1_142, %c1_143, %c0_144, %c0_145] : memref<5x5x128x128xbf16, #tpu.memory_space<vmem>>, vector<1x1x128x128xbf16>
      %157 = vector.shape_cast %156 : vector<1x1x128x128xbf16> to vector<128x128xbf16>
      %cst_146 = arith.constant dense<0.000000e+00> : vector<9x128xf32>
      %158 = tpu.matmul %155, %157, %cst_146 {dimension_numbers = #tpu.dot_dimension_numbers<[1], [0], [0], [1], [0, 0, 1, 1], [], []>} : vector<9x128xbf16>, vector<128x128xbf16>, vector<9x128xf32> -> vector<9x128xf32>
      %159 = arith.addf %154, %158 : vector<9x128xf32>
      %160 = vector.extract_strided_slice %149 {offsets = [2, 0], sizes = [9, 128], strides = [1, 1]} : vector<13x128xbf16> to vector<9x128xbf16>
      %c1_147 = arith.constant 1 : index
      %c2_148 = arith.constant 2 : index
      %c0_149 = arith.constant 0 : index
      %c0_150 = arith.constant 0 : index
      %161 = vector.load %arg5[%c1_147, %c2_148, %c0_149, %c0_150] : memref<5x5x128x128xbf16, #tpu.memory_space<vmem>>, vector<1x1x128x128xbf16>
      %162 = vector.shape_cast %161 : vector<1x1x128x128xbf16> to vector<128x128xbf16>
      %cst_151 = arith.constant dense<0.000000e+00> : vector<9x128xf32>
      %163 = tpu.matmul %160, %162, %cst_151 {dimension_numbers = #tpu.dot_dimension_numbers<[1], [0], [0], [1], [0, 0, 1, 1], [], []>} : vector<9x128xbf16>, vector<128x128xbf16>, vector<9x128xf32> -> vector<9x128xf32>
      %164 = arith.addf %159, %163 : vector<9x128xf32>
      %165 = vector.extract_strided_slice %149 {offsets = [3, 0], sizes = [9, 128], strides = [1, 1]} : vector<13x128xbf16> to vector<9x128xbf16>
      %c1_152 = arith.constant 1 : index
      %c3_153 = arith.constant 3 : index
      %c0_154 = arith.constant 0 : index
      %c0_155 = arith.constant 0 : index
      %166 = vector.load %arg5[%c1_152, %c3_153, %c0_154, %c0_155] : memref<5x5x128x128xbf16, #tpu.memory_space<vmem>>, vector<1x1x128x128xbf16>
      %167 = vector.shape_cast %166 : vector<1x1x128x128xbf16> to vector<128x128xbf16>
      %cst_156 = arith.constant dense<0.000000e+00> : vector<9x128xf32>
      %168 = tpu.matmul %165, %167, %cst_156 {dimension_numbers = #tpu.dot_dimension_numbers<[1], [0], [0], [1], [0, 0, 1, 1], [], []>} : vector<9x128xbf16>, vector<128x128xbf16>, vector<9x128xf32> -> vector<9x128xf32>
      %169 = arith.addf %164, %168 : vector<9x128xf32>
      %170 = vector.extract_strided_slice %149 {offsets = [4, 0], sizes = [9, 128], strides = [1, 1]} : vector<13x128xbf16> to vector<9x128xbf16>
      %c1_157 = arith.constant 1 : index
      %c4_158 = arith.constant 4 : index
      %c0_159 = arith.constant 0 : index
      %c0_160 = arith.constant 0 : index
      %171 = vector.load %arg5[%c1_157, %c4_158, %c0_159, %c0_160] : memref<5x5x128x128xbf16, #tpu.memory_space<vmem>>, vector<1x1x128x128xbf16>
      %172 = vector.shape_cast %171 : vector<1x1x128x128xbf16> to vector<128x128xbf16>
      %cst_161 = arith.constant dense<0.000000e+00> : vector<9x128xf32>
      %173 = tpu.matmul %170, %172, %cst_161 {dimension_numbers = #tpu.dot_dimension_numbers<[1], [0], [0], [1], [0, 0, 1, 1], [], []>} : vector<9x128xbf16>, vector<128x128xbf16>, vector<9x128xf32> -> vector<9x128xf32>
      %174 = arith.addf %169, %173 : vector<9x128xf32>
      %c2_i32_162 = arith.constant 2 : i32
      %175 = arith.addi %115, %c2_i32_162 : i32
      %176 = arith.index_cast %175 : i32 to index
      %c0_163 = arith.constant 0 : index
      %c0_164 = arith.constant 0 : index
      %177 = vector.load %arg12[%176, %c0_163, %c0_164] : memref<13x13x128xbf16, #tpu.memory_space<vmem>>, vector<1x13x128xbf16>
      %178 = vector.shape_cast %177 : vector<1x13x128xbf16> to vector<13x128xbf16>
      %179 = vector.extract_strided_slice %178 {offsets = [0, 0], sizes = [9, 128], strides = [1, 1]} : vector<13x128xbf16> to vector<9x128xbf16>
      %c2_165 = arith.constant 2 : index
      %c0_166 = arith.constant 0 : index
      %c0_167 = arith.constant 0 : index
      %c0_168 = arith.constant 0 : index
      %180 = vector.load %arg5[%c2_165, %c0_166, %c0_167, %c0_168] : memref<5x5x128x128xbf16, #tpu.memory_space<vmem>>, vector<1x1x128x128xbf16>
      %181 = vector.shape_cast %180 : vector<1x1x128x128xbf16> to vector<128x128xbf16>
      %cst_169 = arith.constant dense<0.000000e+00> : vector<9x128xf32>
      %182 = tpu.matmul %179, %181, %cst_169 {dimension_numbers = #tpu.dot_dimension_numbers<[1], [0], [0], [1], [0, 0, 1, 1], [], []>} : vector<9x128xbf16>, vector<128x128xbf16>, vector<9x128xf32> -> vector<9x128xf32>
      %183 = arith.addf %174, %182 : vector<9x128xf32>
      %184 = vector.extract_strided_slice %178 {offsets = [1, 0], sizes = [9, 128], strides = [1, 1]} : vector<13x128xbf16> to vector<9x128xbf16>
      %c2_170 = arith.constant 2 : index
      %c1_171 = arith.constant 1 : index
      %c0_172 = arith.constant 0 : index
      %c0_173 = arith.constant 0 : index
      %185 = vector.load %arg5[%c2_170, %c1_171, %c0_172, %c0_173] : memref<5x5x128x128xbf16, #tpu.memory_space<vmem>>, vector<1x1x128x128xbf16>
      %186 = vector.shape_cast %185 : vector<1x1x128x128xbf16> to vector<128x128xbf16>
      %cst_174 = arith.constant dense<0.000000e+00> : vector<9x128xf32>
      %187 = tpu.matmul %184, %186, %cst_174 {dimension_numbers = #tpu.dot_dimension_numbers<[1], [0], [0], [1], [0, 0, 1, 1], [], []>} : vector<9x128xbf16>, vector<128x128xbf16>, vector<9x128xf32> -> vector<9x128xf32>
      %188 = arith.addf %183, %187 : vector<9x128xf32>
      %189 = vector.extract_strided_slice %178 {offsets = [2, 0], sizes = [9, 128], strides = [1, 1]} : vector<13x128xbf16> to vector<9x128xbf16>
      %c2_175 = arith.constant 2 : index
      %c2_176 = arith.constant 2 : index
      %c0_177 = arith.constant 0 : index
      %c0_178 = arith.constant 0 : index
      %190 = vector.load %arg5[%c2_175, %c2_176, %c0_177, %c0_178] : memref<5x5x128x128xbf16, #tpu.memory_space<vmem>>, vector<1x1x128x128xbf16>
      %191 = vector.shape_cast %190 : vector<1x1x128x128xbf16> to vector<128x128xbf16>
      %cst_179 = arith.constant dense<0.000000e+00> : vector<9x128xf32>
      %192 = tpu.matmul %189, %191, %cst_179 {dimension_numbers = #tpu.dot_dimension_numbers<[1], [0], [0], [1], [0, 0, 1, 1], [], []>} : vector<9x128xbf16>, vector<128x128xbf16>, vector<9x128xf32> -> vector<9x128xf32>
      %193 = arith.addf %188, %192 : vector<9x128xf32>
      %194 = vector.extract_strided_slice %178 {offsets = [3, 0], sizes = [9, 128], strides = [1, 1]} : vector<13x128xbf16> to vector<9x128xbf16>
      %c2_180 = arith.constant 2 : index
      %c3_181 = arith.constant 3 : index
      %c0_182 = arith.constant 0 : index
      %c0_183 = arith.constant 0 : index
      %195 = vector.load %arg5[%c2_180, %c3_181, %c0_182, %c0_183] : memref<5x5x128x128xbf16, #tpu.memory_space<vmem>>, vector<1x1x128x128xbf16>
      %196 = vector.shape_cast %195 : vector<1x1x128x128xbf16> to vector<128x128xbf16>
      %cst_184 = arith.constant dense<0.000000e+00> : vector<9x128xf32>
      %197 = tpu.matmul %194, %196, %cst_184 {dimension_numbers = #tpu.dot_dimension_numbers<[1], [0], [0], [1], [0, 0, 1, 1], [], []>} : vector<9x128xbf16>, vector<128x128xbf16>, vector<9x128xf32> -> vector<9x128xf32>
      %198 = arith.addf %193, %197 : vector<9x128xf32>
      %199 = vector.extract_strided_slice %178 {offsets = [4, 0], sizes = [9, 128], strides = [1, 1]} : vector<13x128xbf16> to vector<9x128xbf16>
      %c2_185 = arith.constant 2 : index
      %c4_186 = arith.constant 4 : index
      %c0_187 = arith.constant 0 : index
      %c0_188 = arith.constant 0 : index
      %200 = vector.load %arg5[%c2_185, %c4_186, %c0_187, %c0_188] : memref<5x5x128x128xbf16, #tpu.memory_space<vmem>>, vector<1x1x128x128xbf16>
      %201 = vector.shape_cast %200 : vector<1x1x128x128xbf16> to vector<128x128xbf16>
      %cst_189 = arith.constant dense<0.000000e+00> : vector<9x128xf32>
      %202 = tpu.matmul %199, %201, %cst_189 {dimension_numbers = #tpu.dot_dimension_numbers<[1], [0], [0], [1], [0, 0, 1, 1], [], []>} : vector<9x128xbf16>, vector<128x128xbf16>, vector<9x128xf32> -> vector<9x128xf32>
      %203 = arith.addf %198, %202 : vector<9x128xf32>
      %c3_i32 = arith.constant 3 : i32
      %204 = arith.addi %115, %c3_i32 : i32
      %205 = arith.index_cast %204 : i32 to index
      %c0_190 = arith.constant 0 : index
      %c0_191 = arith.constant 0 : index
      %206 = vector.load %arg12[%205, %c0_190, %c0_191] : memref<13x13x128xbf16, #tpu.memory_space<vmem>>, vector<1x13x128xbf16>
      %207 = vector.shape_cast %206 : vector<1x13x128xbf16> to vector<13x128xbf16>
      %208 = vector.extract_strided_slice %207 {offsets = [0, 0], sizes = [9, 128], strides = [1, 1]} : vector<13x128xbf16> to vector<9x128xbf16>
      %c3_192 = arith.constant 3 : index
      %c0_193 = arith.constant 0 : index
      %c0_194 = arith.constant 0 : index
      %c0_195 = arith.constant 0 : index
      %209 = vector.load %arg5[%c3_192, %c0_193, %c0_194, %c0_195] : memref<5x5x128x128xbf16, #tpu.memory_space<vmem>>, vector<1x1x128x128xbf16>
      %210 = vector.shape_cast %209 : vector<1x1x128x128xbf16> to vector<128x128xbf16>
      %cst_196 = arith.constant dense<0.000000e+00> : vector<9x128xf32>
      %211 = tpu.matmul %208, %210, %cst_196 {dimension_numbers = #tpu.dot_dimension_numbers<[1], [0], [0], [1], [0, 0, 1, 1], [], []>} : vector<9x128xbf16>, vector<128x128xbf16>, vector<9x128xf32> -> vector<9x128xf32>
      %212 = arith.addf %203, %211 : vector<9x128xf32>
      %213 = vector.extract_strided_slice %207 {offsets = [1, 0], sizes = [9, 128], strides = [1, 1]} : vector<13x128xbf16> to vector<9x128xbf16>
      %c3_197 = arith.constant 3 : index
      %c1_198 = arith.constant 1 : index
      %c0_199 = arith.constant 0 : index
      %c0_200 = arith.constant 0 : index
      %214 = vector.load %arg5[%c3_197, %c1_198, %c0_199, %c0_200] : memref<5x5x128x128xbf16, #tpu.memory_space<vmem>>, vector<1x1x128x128xbf16>
      %215 = vector.shape_cast %214 : vector<1x1x128x128xbf16> to vector<128x128xbf16>
      %cst_201 = arith.constant dense<0.000000e+00> : vector<9x128xf32>
      %216 = tpu.matmul %213, %215, %cst_201 {dimension_numbers = #tpu.dot_dimension_numbers<[1], [0], [0], [1], [0, 0, 1, 1], [], []>} : vector<9x128xbf16>, vector<128x128xbf16>, vector<9x128xf32> -> vector<9x128xf32>
      %217 = arith.addf %212, %216 : vector<9x128xf32>
      %218 = vector.extract_strided_slice %207 {offsets = [2, 0], sizes = [9, 128], strides = [1, 1]} : vector<13x128xbf16> to vector<9x128xbf16>
      %c3_202 = arith.constant 3 : index
      %c2_203 = arith.constant 2 : index
      %c0_204 = arith.constant 0 : index
      %c0_205 = arith.constant 0 : index
      %219 = vector.load %arg5[%c3_202, %c2_203, %c0_204, %c0_205] : memref<5x5x128x128xbf16, #tpu.memory_space<vmem>>, vector<1x1x128x128xbf16>
      %220 = vector.shape_cast %219 : vector<1x1x128x128xbf16> to vector<128x128xbf16>
      %cst_206 = arith.constant dense<0.000000e+00> : vector<9x128xf32>
      %221 = tpu.matmul %218, %220, %cst_206 {dimension_numbers = #tpu.dot_dimension_numbers<[1], [0], [0], [1], [0, 0, 1, 1], [], []>} : vector<9x128xbf16>, vector<128x128xbf16>, vector<9x128xf32> -> vector<9x128xf32>
      %222 = arith.addf %217, %221 : vector<9x128xf32>
      %223 = vector.extract_strided_slice %207 {offsets = [3, 0], sizes = [9, 128], strides = [1, 1]} : vector<13x128xbf16> to vector<9x128xbf16>
      %c3_207 = arith.constant 3 : index
      %c3_208 = arith.constant 3 : index
      %c0_209 = arith.constant 0 : index
      %c0_210 = arith.constant 0 : index
      %224 = vector.load %arg5[%c3_207, %c3_208, %c0_209, %c0_210] : memref<5x5x128x128xbf16, #tpu.memory_space<vmem>>, vector<1x1x128x128xbf16>
      %225 = vector.shape_cast %224 : vector<1x1x128x128xbf16> to vector<128x128xbf16>
      %cst_211 = arith.constant dense<0.000000e+00> : vector<9x128xf32>
      %226 = tpu.matmul %223, %225, %cst_211 {dimension_numbers = #tpu.dot_dimension_numbers<[1], [0], [0], [1], [0, 0, 1, 1], [], []>} : vector<9x128xbf16>, vector<128x128xbf16>, vector<9x128xf32> -> vector<9x128xf32>
      %227 = arith.addf %222, %226 : vector<9x128xf32>
      %228 = vector.extract_strided_slice %207 {offsets = [4, 0], sizes = [9, 128], strides = [1, 1]} : vector<13x128xbf16> to vector<9x128xbf16>
      %c3_212 = arith.constant 3 : index
      %c4_213 = arith.constant 4 : index
      %c0_214 = arith.constant 0 : index
      %c0_215 = arith.constant 0 : index
      %229 = vector.load %arg5[%c3_212, %c4_213, %c0_214, %c0_215] : memref<5x5x128x128xbf16, #tpu.memory_space<vmem>>, vector<1x1x128x128xbf16>
      %230 = vector.shape_cast %229 : vector<1x1x128x128xbf16> to vector<128x128xbf16>
      %cst_216 = arith.constant dense<0.000000e+00> : vector<9x128xf32>
      %231 = tpu.matmul %228, %230, %cst_216 {dimension_numbers = #tpu.dot_dimension_numbers<[1], [0], [0], [1], [0, 0, 1, 1], [], []>} : vector<9x128xbf16>, vector<128x128xbf16>, vector<9x128xf32> -> vector<9x128xf32>
      %232 = arith.addf %227, %231 : vector<9x128xf32>
      %c4_i32_217 = arith.constant 4 : i32
      %233 = arith.addi %115, %c4_i32_217 : i32
      %234 = arith.index_cast %233 : i32 to index
      %c0_218 = arith.constant 0 : index
      %c0_219 = arith.constant 0 : index
      %235 = vector.load %arg12[%234, %c0_218, %c0_219] : memref<13x13x128xbf16, #tpu.memory_space<vmem>>, vector<1x13x128xbf16>
      %236 = vector.shape_cast %235 : vector<1x13x128xbf16> to vector<13x128xbf16>
      %237 = vector.extract_strided_slice %236 {offsets = [0, 0], sizes = [9, 128], strides = [1, 1]} : vector<13x128xbf16> to vector<9x128xbf16>
      %c4_220 = arith.constant 4 : index
      %c0_221 = arith.constant 0 : index
      %c0_222 = arith.constant 0 : index
      %c0_223 = arith.constant 0 : index
      %238 = vector.load %arg5[%c4_220, %c0_221, %c0_222, %c0_223] : memref<5x5x128x128xbf16, #tpu.memory_space<vmem>>, vector<1x1x128x128xbf16>
      %239 = vector.shape_cast %238 : vector<1x1x128x128xbf16> to vector<128x128xbf16>
      %cst_224 = arith.constant dense<0.000000e+00> : vector<9x128xf32>
      %240 = tpu.matmul %237, %239, %cst_224 {dimension_numbers = #tpu.dot_dimension_numbers<[1], [0], [0], [1], [0, 0, 1, 1], [], []>} : vector<9x128xbf16>, vector<128x128xbf16>, vector<9x128xf32> -> vector<9x128xf32>
      %241 = arith.addf %232, %240 : vector<9x128xf32>
      %242 = vector.extract_strided_slice %236 {offsets = [1, 0], sizes = [9, 128], strides = [1, 1]} : vector<13x128xbf16> to vector<9x128xbf16>
      %c4_225 = arith.constant 4 : index
      %c1_226 = arith.constant 1 : index
      %c0_227 = arith.constant 0 : index
      %c0_228 = arith.constant 0 : index
      %243 = vector.load %arg5[%c4_225, %c1_226, %c0_227, %c0_228] : memref<5x5x128x128xbf16, #tpu.memory_space<vmem>>, vector<1x1x128x128xbf16>
      %244 = vector.shape_cast %243 : vector<1x1x128x128xbf16> to vector<128x128xbf16>
      %cst_229 = arith.constant dense<0.000000e+00> : vector<9x128xf32>
      %245 = tpu.matmul %242, %244, %cst_229 {dimension_numbers = #tpu.dot_dimension_numbers<[1], [0], [0], [1], [0, 0, 1, 1], [], []>} : vector<9x128xbf16>, vector<128x128xbf16>, vector<9x128xf32> -> vector<9x128xf32>
      %246 = arith.addf %241, %245 : vector<9x128xf32>
      %247 = vector.extract_strided_slice %236 {offsets = [2, 0], sizes = [9, 128], strides = [1, 1]} : vector<13x128xbf16> to vector<9x128xbf16>
      %c4_230 = arith.constant 4 : index
      %c2_231 = arith.constant 2 : index
      %c0_232 = arith.constant 0 : index
      %c0_233 = arith.constant 0 : index
      %248 = vector.load %arg5[%c4_230, %c2_231, %c0_232, %c0_233] : memref<5x5x128x128xbf16, #tpu.memory_space<vmem>>, vector<1x1x128x128xbf16>
      %249 = vector.shape_cast %248 : vector<1x1x128x128xbf16> to vector<128x128xbf16>
      %cst_234 = arith.constant dense<0.000000e+00> : vector<9x128xf32>
      %250 = tpu.matmul %247, %249, %cst_234 {dimension_numbers = #tpu.dot_dimension_numbers<[1], [0], [0], [1], [0, 0, 1, 1], [], []>} : vector<9x128xbf16>, vector<128x128xbf16>, vector<9x128xf32> -> vector<9x128xf32>
      %251 = arith.addf %246, %250 : vector<9x128xf32>
      %252 = vector.extract_strided_slice %236 {offsets = [3, 0], sizes = [9, 128], strides = [1, 1]} : vector<13x128xbf16> to vector<9x128xbf16>
      %c4_235 = arith.constant 4 : index
      %c3_236 = arith.constant 3 : index
      %c0_237 = arith.constant 0 : index
      %c0_238 = arith.constant 0 : index
      %253 = vector.load %arg5[%c4_235, %c3_236, %c0_237, %c0_238] : memref<5x5x128x128xbf16, #tpu.memory_space<vmem>>, vector<1x1x128x128xbf16>
      %254 = vector.shape_cast %253 : vector<1x1x128x128xbf16> to vector<128x128xbf16>
      %cst_239 = arith.constant dense<0.000000e+00> : vector<9x128xf32>
      %255 = tpu.matmul %252, %254, %cst_239 {dimension_numbers = #tpu.dot_dimension_numbers<[1], [0], [0], [1], [0, 0, 1, 1], [], []>} : vector<9x128xbf16>, vector<128x128xbf16>, vector<9x128xf32> -> vector<9x128xf32>
      %256 = arith.addf %251, %255 : vector<9x128xf32>
      %257 = vector.extract_strided_slice %236 {offsets = [4, 0], sizes = [9, 128], strides = [1, 1]} : vector<13x128xbf16> to vector<9x128xbf16>
      %c4_240 = arith.constant 4 : index
      %c4_241 = arith.constant 4 : index
      %c0_242 = arith.constant 0 : index
      %c0_243 = arith.constant 0 : index
      %258 = vector.load %arg5[%c4_240, %c4_241, %c0_242, %c0_243] : memref<5x5x128x128xbf16, #tpu.memory_space<vmem>>, vector<1x1x128x128xbf16>
      %259 = vector.shape_cast %258 : vector<1x1x128x128xbf16> to vector<128x128xbf16>
      %cst_244 = arith.constant dense<0.000000e+00> : vector<9x128xf32>
      %260 = tpu.matmul %257, %259, %cst_244 {dimension_numbers = #tpu.dot_dimension_numbers<[1], [0], [0], [1], [0, 0, 1, 1], [], []>} : vector<9x128xbf16>, vector<128x128xbf16>, vector<9x128xf32> -> vector<9x128xf32>
      %261 = arith.addf %256, %260 : vector<9x128xf32>
      %c0_245 = arith.constant 0 : index
      %c0_246 = arith.constant 0 : index
      %262 = vector.load %arg6[%c0_245, %c0_246] : memref<1x128xf32, #tpu.memory_space<vmem>>, vector<1x128xf32>
      %263 = vector.broadcast %262 : vector<1x128xf32> to vector<9x128xf32>
      %264 = arith.mulf %261, %263 : vector<9x128xf32>
      %c0_247 = arith.constant 0 : index
      %c0_248 = arith.constant 0 : index
      %265 = vector.load %arg7[%c0_247, %c0_248] : memref<1x128xf32, #tpu.memory_space<vmem>>, vector<1x128xf32>
      %266 = vector.broadcast %265 : vector<1x128xf32> to vector<9x128xf32>
      %267 = arith.addf %264, %266 : vector<9x128xf32>
      %cst_249 = arith.constant 0.000000e+00 : f32
      %268 = vector.broadcast %cst_249 : f32 to vector<9x128xf32>
      %269 = arith.maximumf %267, %268 : vector<9x128xf32>
      %270 = arith.truncf %269 : vector<9x128xf32> to vector<9x128xbf16>
      %271 = arith.index_cast %115 : i32 to index
      %c0_250 = arith.constant 0 : index
      %c0_251 = arith.constant 0 : index
      %272 = vector.load %arg13[%271, %c0_250, %c0_251] : memref<9x9x128xbf16, #tpu.memory_space<vmem>>, vector<1x9x128xbf16>
      %273 = vector.shape_cast %272 : vector<1x9x128xbf16> to vector<9x128xbf16>
      %274 = vector.shape_cast %270 : vector<9x128xbf16> to vector<1x9x128xbf16>
      tpu.vector_store %arg13[%271, %c0_250, %c0_251], %274 {strides = array<i32>} : memref<9x9x128xbf16, #tpu.memory_space<vmem>>, vector<1x9x128xbf16>,
    }
    %c9_i32_6 = arith.constant 9 : i32
    %11 = tpu.iota {dimensions = array<i32: 0>} : vector<4x7xi32>
    %12 = tpu.iota {dimensions = array<i32: 1>} : vector<4x7xi32>
    %c2_i32_7 = arith.constant 2 : i32
    %13 = vector.broadcast %c2_i32_7 : i32 to vector<4x7xi32>
    %14 = arith.muli %13, %11 : vector<4x7xi32>
    %15 = arith.cmpi eq, %12, %14 : vector<4x7xi32>
    %16 = arith.extui %15 : vector<4x7xi1> to vector<4x7xi32>
    %17 = arith.sitofp %16 : vector<4x7xi32> to vector<4x7xf32>
    %18 = arith.truncf %17 : vector<4x7xf32> to vector<4x7xbf16>
    %c0_i32_8 = arith.constant 0 : i32
    %c4_i32 = arith.constant 4 : i32
    %19 = arith.addi %c0_i32_8, %c4_i32 : i32
    %c1_i32_9 = arith.constant 1 : i32
    scf.for %arg15 = %c0_i32_8 to %19 step %c1_i32_9  : i32 {
      %c1_i32_104 = arith.constant 1 : i32
      %114 = arith.muli %arg15, %c1_i32_104 : i32
      %c0_i32_105 = arith.constant 0 : i32
      %115 = arith.addi %c0_i32_105, %114 : i32
      %c2_i32_106 = arith.constant 2 : i32
      %116 = arith.muli %c2_i32_106, %115 : i32
      %117 = arith.index_cast %116 : i32 to index
      %c0_107 = arith.constant 0 : index
      %c0_108 = arith.constant 0 : index
      %118 = vector.load %arg13[%117, %c0_107, %c0_108] : memref<9x9x128xbf16, #tpu.memory_space<vmem>>, vector<1x9x128xbf16>
      %119 = vector.shape_cast %118 : vector<1x9x128xbf16> to vector<9x128xbf16>
      %c2_i32_109 = arith.constant 2 : i32
      %120 = arith.muli %c2_i32_109, %115 : i32
      %c1_i32_110 = arith.constant 1 : i32
      %121 = arith.addi %120, %c1_i32_110 : i32
      %122 = arith.index_cast %121 : i32 to index
      %c0_111 = arith.constant 0 : index
      %c0_112 = arith.constant 0 : index
      %123 = vector.load %arg13[%122, %c0_111, %c0_112] : memref<9x9x128xbf16, #tpu.memory_space<vmem>>, vector<1x9x128xbf16>
      %124 = vector.shape_cast %123 : vector<1x9x128xbf16> to vector<9x128xbf16>
      %c2_i32_113 = arith.constant 2 : i32
      %125 = arith.muli %c2_i32_113, %115 : i32
      %c2_i32_114 = arith.constant 2 : i32
      %126 = arith.addi %125, %c2_i32_114 : i32
      %127 = arith.index_cast %126 : i32 to index
      %c0_115 = arith.constant 0 : index
      %c0_116 = arith.constant 0 : index
      %128 = vector.load %arg13[%127, %c0_115, %c0_116] : memref<9x9x128xbf16, #tpu.memory_space<vmem>>, vector<1x9x128xbf16>
      %129 = vector.shape_cast %128 : vector<1x9x128xbf16> to vector<9x128xbf16>
      %130 = arith.maximumf %119, %124 : vector<9x128xbf16>
      %131 = arith.maximumf %130, %129 : vector<9x128xbf16>
      %132 = vector.extract_strided_slice %131 {offsets = [0, 0], sizes = [7, 128], strides = [1, 1]} : vector<9x128xbf16> to vector<7x128xbf16>
      %133 = vector.extract_strided_slice %131 {offsets = [1, 0], sizes = [7, 128], strides = [1, 1]} : vector<9x128xbf16> to vector<7x128xbf16>
      %134 = arith.maximumf %132, %133 : vector<7x128xbf16>
      %135 = vector.extract_strided_slice %131 {offsets = [2, 0], sizes = [7, 128], strides = [1, 1]} : vector<9x128xbf16> to vector<7x128xbf16>
      %136 = arith.maximumf %134, %135 : vector<7x128xbf16>
      %cst_117 = arith.constant dense<0.000000e+00> : vector<4x128xf32>
      %137 = tpu.matmul %18, %136, %cst_117 {dimension_numbers = #tpu.dot_dimension_numbers<[1], [0], [0], [1], [0, 0, 1, 1], [], []>} : vector<4x7xbf16>, vector<7x128xbf16>, vector<4x128xf32> -> vector<4x128xf32>
      %138 = arith.truncf %137 : vector<4x128xf32> to vector<4x128xbf16>
      %139 = arith.index_cast %115 : i32 to index
      %c0_118 = arith.constant 0 : index
      %c0_119 = arith.constant 0 : index
      %140 = vector.load %arg14[%139, %c0_118, %c0_119] : memref<4x4x128xbf16, #tpu.memory_space<vmem>>, vector<1x4x128xbf16>
      %141 = vector.shape_cast %140 : vector<1x4x128xbf16> to vector<4x128xbf16>
      %142 = vector.shape_cast %138 : vector<4x128xbf16> to vector<1x4x128xbf16>
      tpu.vector_store %arg14[%139, %c0_118, %c0_119], %142 {strides = array<i32>} : memref<4x4x128xbf16, #tpu.memory_space<vmem>>, vector<1x4x128xbf16>,
    }
    %c4_i32_10 = arith.constant 4 : i32
    %cst = arith.constant 0.000000e+00 : f32
    %20 = vector.broadcast %cst : f32 to vector<1x128xf32>
    %c0 = arith.constant 0 : index
    %c0_11 = arith.constant 0 : index
    %c0_12 = arith.constant 0 : index
    %21 = vector.load %arg14[%c0, %c0_11, %c0_12] : memref<4x4x128xbf16, #tpu.memory_space<vmem>>, vector<1x4x128xbf16>
    %22 = vector.shape_cast %21 : vector<1x4x128xbf16> to vector<4x128xbf16>
    %23 = vector.extract_strided_slice %22 {offsets = [0, 0], sizes = [1, 128], strides = [1, 1]} : vector<4x128xbf16> to vector<1x128xbf16>
    %c0_13 = arith.constant 0 : index
    %c0_14 = arith.constant 0 : index
    %c0_15 = arith.constant 0 : index
    %c0_16 = arith.constant 0 : index
    %24 = vector.load %arg8[%c0_13, %c0_14, %c0_15, %c0_16] : memref<4x4x128x128xbf16, #tpu.memory_space<vmem>>, vector<1x1x128x128xbf16>
    %25 = vector.shape_cast %24 : vector<1x1x128x128xbf16> to vector<128x128xbf16>
    %cst_17 = arith.constant dense<0.000000e+00> : vector<1x128xf32>
    %26 = tpu.matmul %23, %25, %cst_17 {dimension_numbers = #tpu.dot_dimension_numbers<[1], [0], [0], [1], [0, 0, 1, 1], [], []>} : vector<1x128xbf16>, vector<128x128xbf16>, vector<1x128xf32> -> vector<1x128xf32>
    %27 = arith.addf %20, %26 : vector<1x128xf32>
    %28 = vector.extract_strided_slice %22 {offsets = [1, 0], sizes = [1, 128], strides = [1, 1]} : vector<4x128xbf16> to vector<1x128xbf16>
    %c0_18 = arith.constant 0 : index
    %c1 = arith.constant 1 : index
    %c0_19 = arith.constant 0 : index
    %c0_20 = arith.constant 0 : index
    %29 = vector.load %arg8[%c0_18, %c1, %c0_19, %c0_20] : memref<4x4x128x128xbf16, #tpu.memory_space<vmem>>, vector<1x1x128x128xbf16>
    %30 = vector.shape_cast %29 : vector<1x1x128x128xbf16> to vector<128x128xbf16>
    %cst_21 = arith.constant dense<0.000000e+00> : vector<1x128xf32>
    %31 = tpu.matmul %28, %30, %cst_21 {dimension_numbers = #tpu.dot_dimension_numbers<[1], [0], [0], [1], [0, 0, 1, 1], [], []>} : vector<1x128xbf16>, vector<128x128xbf16>, vector<1x128xf32> -> vector<1x128xf32>
    %32 = arith.addf %27, %31 : vector<1x128xf32>
    %33 = vector.extract_strided_slice %22 {offsets = [2, 0], sizes = [1, 128], strides = [1, 1]} : vector<4x128xbf16> to vector<1x128xbf16>
    %c0_22 = arith.constant 0 : index
    %c2 = arith.constant 2 : index
    %c0_23 = arith.constant 0 : index
    %c0_24 = arith.constant 0 : index
    %34 = vector.load %arg8[%c0_22, %c2, %c0_23, %c0_24] : memref<4x4x128x128xbf16, #tpu.memory_space<vmem>>, vector<1x1x128x128xbf16>
    %35 = vector.shape_cast %34 : vector<1x1x128x128xbf16> to vector<128x128xbf16>
    %cst_25 = arith.constant dense<0.000000e+00> : vector<1x128xf32>
    %36 = tpu.matmul %33, %35, %cst_25 {dimension_numbers = #tpu.dot_dimension_numbers<[1], [0], [0], [1], [0, 0, 1, 1], [], []>} : vector<1x128xbf16>, vector<128x128xbf16>, vector<1x128xf32> -> vector<1x128xf32>
    %37 = arith.addf %32, %36 : vector<1x128xf32>
    %38 = vector.extract_strided_slice %22 {offsets = [3, 0], sizes = [1, 128], strides = [1, 1]} : vector<4x128xbf16> to vector<1x128xbf16>
    %c0_26 = arith.constant 0 : index
    %c3 = arith.constant 3 : index
    %c0_27 = arith.constant 0 : index
    %c0_28 = arith.constant 0 : index
    %39 = vector.load %arg8[%c0_26, %c3, %c0_27, %c0_28] : memref<4x4x128x128xbf16, #tpu.memory_space<vmem>>, vector<1x1x128x128xbf16>
    %40 = vector.shape_cast %39 : vector<1x1x128x128xbf16> to vector<128x128xbf16>
    %cst_29 = arith.constant dense<0.000000e+00> : vector<1x128xf32>
    %41 = tpu.matmul %38, %40, %cst_29 {dimension_numbers = #tpu.dot_dimension_numbers<[1], [0], [0], [1], [0, 0, 1, 1], [], []>} : vector<1x128xbf16>, vector<128x128xbf16>, vector<1x128xf32> -> vector<1x128xf32>
    %42 = arith.addf %37, %41 : vector<1x128xf32>
    %c1_30 = arith.constant 1 : index
    %c0_31 = arith.constant 0 : index
    %c0_32 = arith.constant 0 : index
    %43 = vector.load %arg14[%c1_30, %c0_31, %c0_32] : memref<4x4x128xbf16, #tpu.memory_space<vmem>>, vector<1x4x128xbf16>
    %44 = vector.shape_cast %43 : vector<1x4x128xbf16> to vector<4x128xbf16>
    %45 = vector.extract_strided_slice %44 {offsets = [0, 0], sizes = [1, 128], strides = [1, 1]} : vector<4x128xbf16> to vector<1x128xbf16>
    %c1_33 = arith.constant 1 : index
    %c0_34 = arith.constant 0 : index
    %c0_35 = arith.constant 0 : index
    %c0_36 = arith.constant 0 : index
    %46 = vector.load %arg8[%c1_33, %c0_34, %c0_35, %c0_36] : memref<4x4x128x128xbf16, #tpu.memory_space<vmem>>, vector<1x1x128x128xbf16>
    %47 = vector.shape_cast %46 : vector<1x1x128x128xbf16> to vector<128x128xbf16>
    %cst_37 = arith.constant dense<0.000000e+00> : vector<1x128xf32>
    %48 = tpu.matmul %45, %47, %cst_37 {dimension_numbers = #tpu.dot_dimension_numbers<[1], [0], [0], [1], [0, 0, 1, 1], [], []>} : vector<1x128xbf16>, vector<128x128xbf16>, vector<1x128xf32> -> vector<1x128xf32>
    %49 = arith.addf %42, %48 : vector<1x128xf32>
    %50 = vector.extract_strided_slice %44 {offsets = [1, 0], sizes = [1, 128], strides = [1, 1]} : vector<4x128xbf16> to vector<1x128xbf16>
    %c1_38 = arith.constant 1 : index
    %c1_39 = arith.constant 1 : index
    %c0_40 = arith.constant 0 : index
    %c0_41 = arith.constant 0 : index
    %51 = vector.load %arg8[%c1_38, %c1_39, %c0_40, %c0_41] : memref<4x4x128x128xbf16, #tpu.memory_space<vmem>>, vector<1x1x128x128xbf16>
    %52 = vector.shape_cast %51 : vector<1x1x128x128xbf16> to vector<128x128xbf16>
    %cst_42 = arith.constant dense<0.000000e+00> : vector<1x128xf32>
    %53 = tpu.matmul %50, %52, %cst_42 {dimension_numbers = #tpu.dot_dimension_numbers<[1], [0], [0], [1], [0, 0, 1, 1], [], []>} : vector<1x128xbf16>, vector<128x128xbf16>, vector<1x128xf32> -> vector<1x128xf32>
    %54 = arith.addf %49, %53 : vector<1x128xf32>
    %55 = vector.extract_strided_slice %44 {offsets = [2, 0], sizes = [1, 128], strides = [1, 1]} : vector<4x128xbf16> to vector<1x128xbf16>
    %c1_43 = arith.constant 1 : index
    %c2_44 = arith.constant 2 : index
    %c0_45 = arith.constant 0 : index
    %c0_46 = arith.constant 0 : index
    %56 = vector.load %arg8[%c1_43, %c2_44, %c0_45, %c0_46] : memref<4x4x128x128xbf16, #tpu.memory_space<vmem>>, vector<1x1x128x128xbf16>
    %57 = vector.shape_cast %56 : vector<1x1x128x128xbf16> to vector<128x128xbf16>
    %cst_47 = arith.constant dense<0.000000e+00> : vector<1x128xf32>
    %58 = tpu.matmul %55, %57, %cst_47 {dimension_numbers = #tpu.dot_dimension_numbers<[1], [0], [0], [1], [0, 0, 1, 1], [], []>} : vector<1x128xbf16>, vector<128x128xbf16>, vector<1x128xf32> -> vector<1x128xf32>
    %59 = arith.addf %54, %58 : vector<1x128xf32>
    %60 = vector.extract_strided_slice %44 {offsets = [3, 0], sizes = [1, 128], strides = [1, 1]} : vector<4x128xbf16> to vector<1x128xbf16>
    %c1_48 = arith.constant 1 : index
    %c3_49 = arith.constant 3 : index
    %c0_50 = arith.constant 0 : index
    %c0_51 = arith.constant 0 : index
    %61 = vector.load %arg8[%c1_48, %c3_49, %c0_50, %c0_51] : memref<4x4x128x128xbf16, #tpu.memory_space<vmem>>, vector<1x1x128x128xbf16>
    %62 = vector.shape_cast %61 : vector<1x1x128x128xbf16> to vector<128x128xbf16>
    %cst_52 = arith.constant dense<0.000000e+00> : vector<1x128xf32>
    %63 = tpu.matmul %60, %62, %cst_52 {dimension_numbers = #tpu.dot_dimension_numbers<[1], [0], [0], [1], [0, 0, 1, 1], [], []>} : vector<1x128xbf16>, vector<128x128xbf16>, vector<1x128xf32> -> vector<1x128xf32>
    %64 = arith.addf %59, %63 : vector<1x128xf32>
    %c2_53 = arith.constant 2 : index
    %c0_54 = arith.constant 0 : index
    %c0_55 = arith.constant 0 : index
    %65 = vector.load %arg14[%c2_53, %c0_54, %c0_55] : memref<4x4x128xbf16, #tpu.memory_space<vmem>>, vector<1x4x128xbf16>
    %66 = vector.shape_cast %65 : vector<1x4x128xbf16> to vector<4x128xbf16>
    %67 = vector.extract_strided_slice %66 {offsets = [0, 0], sizes = [1, 128], strides = [1, 1]} : vector<4x128xbf16> to vector<1x128xbf16>
    %c2_56 = arith.constant 2 : index
    %c0_57 = arith.constant 0 : index
    %c0_58 = arith.constant 0 : index
    %c0_59 = arith.constant 0 : index
    %68 = vector.load %arg8[%c2_56, %c0_57, %c0_58, %c0_59] : memref<4x4x128x128xbf16, #tpu.memory_space<vmem>>, vector<1x1x128x128xbf16>
    %69 = vector.shape_cast %68 : vector<1x1x128x128xbf16> to vector<128x128xbf16>
    %cst_60 = arith.constant dense<0.000000e+00> : vector<1x128xf32>
    %70 = tpu.matmul %67, %69, %cst_60 {dimension_numbers = #tpu.dot_dimension_numbers<[1], [0], [0], [1], [0, 0, 1, 1], [], []>} : vector<1x128xbf16>, vector<128x128xbf16>, vector<1x128xf32> -> vector<1x128xf32>
    %71 = arith.addf %64, %70 : vector<1x128xf32>
    %72 = vector.extract_strided_slice %66 {offsets = [1, 0], sizes = [1, 128], strides = [1, 1]} : vector<4x128xbf16> to vector<1x128xbf16>
    %c2_61 = arith.constant 2 : index
    %c1_62 = arith.constant 1 : index
    %c0_63 = arith.constant 0 : index
    %c0_64 = arith.constant 0 : index
    %73 = vector.load %arg8[%c2_61, %c1_62, %c0_63, %c0_64] : memref<4x4x128x128xbf16, #tpu.memory_space<vmem>>, vector<1x1x128x128xbf16>
    %74 = vector.shape_cast %73 : vector<1x1x128x128xbf16> to vector<128x128xbf16>
    %cst_65 = arith.constant dense<0.000000e+00> : vector<1x128xf32>
    %75 = tpu.matmul %72, %74, %cst_65 {dimension_numbers = #tpu.dot_dimension_numbers<[1], [0], [0], [1], [0, 0, 1, 1], [], []>} : vector<1x128xbf16>, vector<128x128xbf16>, vector<1x128xf32> -> vector<1x128xf32>
    %76 = arith.addf %71, %75 : vector<1x128xf32>
    %77 = vector.extract_strided_slice %66 {offsets = [2, 0], sizes = [1, 128], strides = [1, 1]} : vector<4x128xbf16> to vector<1x128xbf16>
    %c2_66 = arith.constant 2 : index
    %c2_67 = arith.constant 2 : index
    %c0_68 = arith.constant 0 : index
    %c0_69 = arith.constant 0 : index
    %78 = vector.load %arg8[%c2_66, %c2_67, %c0_68, %c0_69] : memref<4x4x128x128xbf16, #tpu.memory_space<vmem>>, vector<1x1x128x128xbf16>
    %79 = vector.shape_cast %78 : vector<1x1x128x128xbf16> to vector<128x128xbf16>
    %cst_70 = arith.constant dense<0.000000e+00> : vector<1x128xf32>
    %80 = tpu.matmul %77, %79, %cst_70 {dimension_numbers = #tpu.dot_dimension_numbers<[1], [0], [0], [1], [0, 0, 1, 1], [], []>} : vector<1x128xbf16>, vector<128x128xbf16>, vector<1x128xf32> -> vector<1x128xf32>
    %81 = arith.addf %76, %80 : vector<1x128xf32>
    %82 = vector.extract_strided_slice %66 {offsets = [3, 0], sizes = [1, 128], strides = [1, 1]} : vector<4x128xbf16> to vector<1x128xbf16>
    %c2_71 = arith.constant 2 : index
    %c3_72 = arith.constant 3 : index
    %c0_73 = arith.constant 0 : index
    %c0_74 = arith.constant 0 : index
    %83 = vector.load %arg8[%c2_71, %c3_72, %c0_73, %c0_74] : memref<4x4x128x128xbf16, #tpu.memory_space<vmem>>, vector<1x1x128x128xbf16>
    %84 = vector.shape_cast %83 : vector<1x1x128x128xbf16> to vector<128x128xbf16>
    %cst_75 = arith.constant dense<0.000000e+00> : vector<1x128xf32>
    %85 = tpu.matmul %82, %84, %cst_75 {dimension_numbers = #tpu.dot_dimension_numbers<[1], [0], [0], [1], [0, 0, 1, 1], [], []>} : vector<1x128xbf16>, vector<128x128xbf16>, vector<1x128xf32> -> vector<1x128xf32>
    %86 = arith.addf %81, %85 : vector<1x128xf32>
    %c3_76 = arith.constant 3 : index
    %c0_77 = arith.constant 0 : index
    %c0_78 = arith.constant 0 : index
    %87 = vector.load %arg14[%c3_76, %c0_77, %c0_78] : memref<4x4x128xbf16, #tpu.memory_space<vmem>>, vector<1x4x128xbf16>
    %88 = vector.shape_cast %87 : vector<1x4x128xbf16> to vector<4x128xbf16>
    %89 = vector.extract_strided_slice %88 {offsets = [0, 0], sizes = [1, 128], strides = [1, 1]} : vector<4x128xbf16> to vector<1x128xbf16>
    %c3_79 = arith.constant 3 : index
    %c0_80 = arith.constant 0 : index
    %c0_81 = arith.constant 0 : index
    %c0_82 = arith.constant 0 : index
    %90 = vector.load %arg8[%c3_79, %c0_80, %c0_81, %c0_82] : memref<4x4x128x128xbf16, #tpu.memory_space<vmem>>, vector<1x1x128x128xbf16>
    %91 = vector.shape_cast %90 : vector<1x1x128x128xbf16> to vector<128x128xbf16>
    %cst_83 = arith.constant dense<0.000000e+00> : vector<1x128xf32>
    %92 = tpu.matmul %89, %91, %cst_83 {dimension_numbers = #tpu.dot_dimension_numbers<[1], [0], [0], [1], [0, 0, 1, 1], [], []>} : vector<1x128xbf16>, vector<128x128xbf16>, vector<1x128xf32> -> vector<1x128xf32>
    %93 = arith.addf %86, %92 : vector<1x128xf32>
    %94 = vector.extract_strided_slice %88 {offsets = [1, 0], sizes = [1, 128], strides = [1, 1]} : vector<4x128xbf16> to vector<1x128xbf16>
    %c3_84 = arith.constant 3 : index
    %c1_85 = arith.constant 1 : index
    %c0_86 = arith.constant 0 : index
    %c0_87 = arith.constant 0 : index
    %95 = vector.load %arg8[%c3_84, %c1_85, %c0_86, %c0_87] : memref<4x4x128x128xbf16, #tpu.memory_space<vmem>>, vector<1x1x128x128xbf16>
    %96 = vector.shape_cast %95 : vector<1x1x128x128xbf16> to vector<128x128xbf16>
    %cst_88 = arith.constant dense<0.000000e+00> : vector<1x128xf32>
    %97 = tpu.matmul %94, %96, %cst_88 {dimension_numbers = #tpu.dot_dimension_numbers<[1], [0], [0], [1], [0, 0, 1, 1], [], []>} : vector<1x128xbf16>, vector<128x128xbf16>, vector<1x128xf32> -> vector<1x128xf32>
    %98 = arith.addf %93, %97 : vector<1x128xf32>
    %99 = vector.extract_strided_slice %88 {offsets = [2, 0], sizes = [1, 128], strides = [1, 1]} : vector<4x128xbf16> to vector<1x128xbf16>
    %c3_89 = arith.constant 3 : index
    %c2_90 = arith.constant 2 : index
    %c0_91 = arith.constant 0 : index
    %c0_92 = arith.constant 0 : index
    %100 = vector.load %arg8[%c3_89, %c2_90, %c0_91, %c0_92] : memref<4x4x128x128xbf16, #tpu.memory_space<vmem>>, vector<1x1x128x128xbf16>
    %101 = vector.shape_cast %100 : vector<1x1x128x128xbf16> to vector<128x128xbf16>
    %cst_93 = arith.constant dense<0.000000e+00> : vector<1x128xf32>
    %102 = tpu.matmul %99, %101, %cst_93 {dimension_numbers = #tpu.dot_dimension_numbers<[1], [0], [0], [1], [0, 0, 1, 1], [], []>} : vector<1x128xbf16>, vector<128x128xbf16>, vector<1x128xf32> -> vector<1x128xf32>
    %103 = arith.addf %98, %102 : vector<1x128xf32>
    %104 = vector.extract_strided_slice %88 {offsets = [3, 0], sizes = [1, 128], strides = [1, 1]} : vector<4x128xbf16> to vector<1x128xbf16>
    %c3_94 = arith.constant 3 : index
    %c3_95 = arith.constant 3 : index
    %c0_96 = arith.constant 0 : index
    %c0_97 = arith.constant 0 : index
    %105 = vector.load %arg8[%c3_94, %c3_95, %c0_96, %c0_97] : memref<4x4x128x128xbf16, #tpu.memory_space<vmem>>, vector<1x1x128x128xbf16>
    %106 = vector.shape_cast %105 : vector<1x1x128x128xbf16> to vector<128x128xbf16>
    %cst_98 = arith.constant dense<0.000000e+00> : vector<1x128xf32>
    %107 = tpu.matmul %104, %106, %cst_98 {dimension_numbers = #tpu.dot_dimension_numbers<[1], [0], [0], [1], [0, 0, 1, 1], [], []>} : vector<1x128xbf16>, vector<128x128xbf16>, vector<1x128xf32> -> vector<1x128xf32>
    %108 = arith.addf %103, %107 : vector<1x128xf32>
    %c0_99 = arith.constant 0 : index
    %c0_100 = arith.constant 0 : index
    %109 = vector.load %arg9[%c0_99, %c0_100] : memref<1x128xf32, #tpu.memory_space<vmem>>, vector<1x128xf32>
    %110 = arith.addf %108, %109 : vector<1x128xf32>
    %c0_101 = arith.constant 0 : index
    %c0_102 = arith.constant 0 : index
    %c0_103 = arith.constant 0 : index
    %111 = vector.load %arg10[%c0_101, %c0_102, %c0_103] : memref<1x1x128xf32, #tpu.memory_space<vmem>>, vector<1x1x128xf32>
    %112 = vector.shape_cast %111 : vector<1x1x128xf32> to vector<1x128xf32>
    %113 = vector.shape_cast %110 : vector<1x128xf32> to vector<1x1x128xf32>
    tpu.vector_store %arg10[%c0_101, %c0_102, %c0_103], %113 {strides = array<i32>} : memref<1x1x128xf32, #tpu.memory_space<vmem>>, vector<1x1x128xf32>,
    return
  }
  func.func @transform_0(%arg0: i32) -> (i32, i32, i32, i32) {
    %c0_i32 = arith.constant 0 : i32
    %c0_i32_0 = arith.constant 0 : i32
    %c0_i32_1 = arith.constant 0 : i32
    %c0_i32_2 = arith.constant 0 : i32
    return %arg0, %c0_i32, %c0_i32_0, %c0_i32_1 : i32, i32, i32, i32
  }
  func.func @transform_1(%arg0: i32) -> (i32, i32, i32, i32) {
    %c0_i32 = arith.constant 0 : i32
    %c0_i32_0 = arith.constant 0 : i32
    %c0_i32_1 = arith.constant 0 : i32
    %c0_i32_2 = arith.constant 0 : i32
    %c0_i32_3 = arith.constant 0 : i32
    return %c0_i32, %c0_i32_0, %c0_i32_1, %c0_i32_2 : i32, i32, i32, i32
  }
  func.func @transform_2(%arg0: i32) -> (i32, i32) {
    %c0_i32 = arith.constant 0 : i32
    %c0_i32_0 = arith.constant 0 : i32
    %c0_i32_1 = arith.constant 0 : i32
    return %c0_i32, %c0_i32_0 : i32, i32
  }
  func.func @transform_3(%arg0: i32) -> (i32, i32) {
    %c0_i32 = arith.constant 0 : i32
    %c0_i32_0 = arith.constant 0 : i32
    %c0_i32_1 = arith.constant 0 : i32
    return %c0_i32, %c0_i32_0 : i32, i32
  }
  func.func @transform_4(%arg0: i32) -> (i32, i32, i32, i32) {
    %c0_i32 = arith.constant 0 : i32
    %c0_i32_0 = arith.constant 0 : i32
    %c0_i32_1 = arith.constant 0 : i32
    %c0_i32_2 = arith.constant 0 : i32
    %c0_i32_3 = arith.constant 0 : i32
    return %c0_i32, %c0_i32_0, %c0_i32_1, %c0_i32_2 : i32, i32, i32, i32
  }
  func.func @transform_5(%arg0: i32) -> (i32, i32) {
    %c0_i32 = arith.constant 0 : i32
    %c0_i32_0 = arith.constant 0 : i32
    %c0_i32_1 = arith.constant 0 : i32
    return %c0_i32, %c0_i32_0 : i32, i32
  }
  func.func @transform_6(%arg0: i32) -> (i32, i32) {
    %c0_i32 = arith.constant 0 : i32
    %c0_i32_0 = arith.constant 0 : i32
    %c0_i32_1 = arith.constant 0 : i32
    return %c0_i32, %c0_i32_0 : i32, i32
  }
  func.func @transform_7(%arg0: i32) -> (i32, i32, i32, i32) {
    %c0_i32 = arith.constant 0 : i32
    %c0_i32_0 = arith.constant 0 : i32
    %c0_i32_1 = arith.constant 0 : i32
    %c0_i32_2 = arith.constant 0 : i32
    %c0_i32_3 = arith.constant 0 : i32
    return %c0_i32, %c0_i32_0, %c0_i32_1, %c0_i32_2 : i32, i32, i32, i32
  }
  func.func @transform_8(%arg0: i32) -> (i32, i32) {
    %c0_i32 = arith.constant 0 : i32
    %c0_i32_0 = arith.constant 0 : i32
    %c0_i32_1 = arith.constant 0 : i32
    return %c0_i32, %c0_i32_0 : i32, i32
  }
  func.func @transform_9(%arg0: i32) -> (i32, i32, i32) {
    %c0_i32 = arith.constant 0 : i32
    %c0_i32_0 = arith.constant 0 : i32
    %c0_i32_1 = arith.constant 0 : i32
    return %arg0, %c0_i32, %c0_i32_0 : i32, i32, i32
  }
}

</mosaic_0001>

<llo_original>
// kernel: convnet_forward.1
$region0: #{convnet_forward.1}
  #allocation0 [shape = 'u32[]', space=smem, size = 0x4, offset = 0x4, fixed_abs, tag = 'smem constant byte address 0x4 - core index']
  #allocation1 [shape = 'u32[72,128]{1,0:T(1,128)}', space=vmem, size = 0x9000, scoped, tag = 'internal scratch']
  #allocation2 [shape = 'bf16[28,28,128]{2,1,0:T(8,128)(2,1)}', space=vmem, size = 0x38000, scoped, tag = 'scratch operand']
  #allocation3 [shape = 'bf16[13,13,128]{2,1,0:T(8,128)(2,1)}', space=vmem, size = 0xd000, scoped, tag = 'scratch operand']
  #allocation4 [shape = 'bf16[9,9,128]{2,1,0:T(8,128)(2,1)}', space=vmem, size = 0x9000, scoped, tag = 'scratch operand']
  #allocation5 [shape = 'bf16[4,4,128]{2,1,0:T(4,128)(2,1)}', space=vmem, size = 0x1000, scoped, tag = 'scratch operand']
  %s0 = inlined_call_operand.vmem [shape: bf16[2,32,32,8], index: 0, kind: input, shape index: {}]
  %s1 = inlined_call_operand.vmem [shape: bf16[5,5,8,128], index: 1, kind: input, shape index: {}]
  %s2 = inlined_call_operand.vmem [shape: f32[1,128], index: 2, kind: input, shape index: {}]
  %s3 = inlined_call_operand.vmem [shape: f32[1,128], index: 3, kind: input, shape index: {}]
  %s4 = inlined_call_operand.vmem [shape: bf16[5,5,128,128], index: 4, kind: input, shape index: {}]
  %s5 = inlined_call_operand.vmem [shape: f32[1,128], index: 5, kind: input, shape index: {}]
  %s6 = inlined_call_operand.vmem [shape: f32[1,128], index: 6, kind: input, shape index: {}]
  %s7 = inlined_call_operand.vmem [shape: bf16[4,4,128,128], index: 7, kind: input, shape index: {}]
  %s8 = inlined_call_operand.vmem [shape: f32[1,128], index: 8, kind: input, shape index: {}]
  %s9 = inlined_call_operand.hbm [shape: f32[2,1,128], index: 9, kind: output, shape index: {}]
  %s10 = sld [smem:[#allocation0]]
  $region97: #{convnet_forward.1} parent=0
    _
  %s12 = ssub.s32 1, %s10
  %s13 = scalar_select 0, %s12, %s10
  $region1: #{convnet_forward.1} parent=0
    #allocation6 [shape = 'u8[1024]{0}', space=vmem, size = 0x400, scoped, tag = 'output window, operand 0']
    #allocation7 [shape = 's32[2]{0}', space=sflag, size = 0x8, scoped, tag = 'scoped memory for convnet_forward.1']
    %14 = vsyncpa [#allocation7], 0
    %s15 = scalar_lea.sflag [#allocation7], 1
    %16 = vsyncpa %s15, 0
    loop: start=0, step=1, limit=4
    $region2: #{convnet_forward.1} parent=1 // loop_pre_header
      _
    $region3: #{convnet_forward.1} parent=1 // loop_header
      %s18 = sphi 0, %s22
      %p19 = scmp.ge.s32.totalorder %s18, 4
      %s28 = sphi 0, %s30
      %s31 = sphi 0, %s28
      %s32 = sphi 0, %s31
      %s48 = sphi 0, %s32
      %s52 = sphi 0, %s52
      %s54 = sphi 0, %s52
      %s55 = sphi 0, %s54
      %s69 = sphi 0, %s55
      %s73 = sphi 0, %s73
      %s75 = sphi 0, %s73
      %s76 = sphi 0, %s75
      %s90 = sphi 0, %s76
      %s94 = sphi 0, %s94
      %s96 = sphi 0, %s94
      %s97 = sphi 0, %s96
      %s111 = sphi 0, %s97
      %s115 = sphi 0, %s115
      %s117 = sphi 0, %s115
      %s118 = sphi 0, %s117
      %s132 = sphi 0, %s118
      %s136 = sphi 0, %s136
      %s138 = sphi 0, %s136
      %s139 = sphi 0, %s138
      %s153 = sphi 0, %s139
      %s157 = sphi 0, %s157
      %s159 = sphi 0, %s157
      %s160 = sphi 0, %s159
      %s174 = sphi 0, %s160
      %s178 = sphi 0, %s178
      %s180 = sphi 0, %s178
      %s181 = sphi 0, %s180
      %s195 = sphi 0, %s181
      %s199 = sphi 0, %s199
      %s201 = sphi 0, %s199
      %s202 = sphi 0, %s201
      %s216 = sphi 0, %s202
      %s222 = sphi 0, %s224
      %s225 = sphi 0, %s222
      %s226 = sphi 0, %s225
      %s242 = sphi 0, %s226
    $region4: #{convnet_forward.1} parent=1 // loop_header_branch
      %21 = sbr.rel (%p19) target = $region8
    $region5: #{convnet_forward.1} parent=1 // loop_body
      %s23 = ssub.s32 %s18, 1
      %s24 = ssub.s32 %s18, 2
      %s25 = sadd.s32 %s18, 1
      %s26 = ssub.s32 %s18, %s25
      %p27 = scmp.eq.s32.totalorder %s26, 0
      %s29 = sadd.s32 %s28, 1
      %s30 = scalar_select %p27, %s28, %s29
      %p33 = pneg %p27
      %p34 = scmp.eq.s32.totalorder %s18, 1
      %p35 = por %p33, %p34
      %p36 = scmp.ne.s32.totalorder %s28, %s31
      %p37 = scmp.eq.s32.totalorder %s18, 0
      %p38 = por %p36, %p37
      %p39 = scmp.ne.s32.totalorder %s28, %s31
      %p40 = scmp.eq.s32.totalorder %s23, 1
      %p41 = por %p39, %p40
      %p42 = scmp.ne.s32.totalorder %s31, %s32
      %p43 = scmp.eq.s32.totalorder %s23, 0
      %p44 = por %p42, %p43
      %p45 = scmp.ne.s32.totalorder %s31, %s32
      %p46 = scmp.eq.s32.totalorder %s24, 1
      %p47 = por %p45, %p46
      %p49 = scmp.ne.s32.totalorder %s32, %s48
      %p50 = scmp.eq.s32.totalorder %s24, 0
      %p51 = por %p49, %p50
      %s53 = sadd.s32 %s52, 1
      %p56 = scmp.eq.s32.totalorder %s18, 1
      %p57 = scmp.ne.s32.totalorder %s52, %s54
      %p58 = scmp.eq.s32.totalorder %s18, 0
      %p59 = por %p57, %p58
      %p60 = scmp.ne.s32.totalorder %s52, %s54
      %p61 = scmp.eq.s32.totalorder %s23, 1
      %p62 = por %p60, %p61
      %p63 = scmp.ne.s32.totalorder %s54, %s55
      %p64 = scmp.eq.s32.totalorder %s23, 0
      %p65 = por %p63, %p64
      %p66 = scmp.ne.s32.totalorder %s54, %s55
      %p67 = scmp.eq.s32.totalorder %s24, 1
      %p68 = por %p66, %p67
      %p70 = scmp.ne.s32.totalorder %s55, %s69
      %p71 = scmp.eq.s32.totalorder %s24, 0
      %p72 = por %p70, %p71
      %s74 = sadd.s32 %s73, 1
      %p77 = scmp.eq.s32.totalorder %s18, 1
      %p78 = scmp.ne.s32.totalorder %s73, %s75
      %p79 = scmp.eq.s32.totalorder %s18, 0
      %p80 = por %p78, %p79
      %p81 = scmp.ne.s32.totalorder %s73, %s75
      %p82 = scmp.eq.s32.totalorder %s23, 1
      %p83 = por %p81, %p82
      %p84 = scmp.ne.s32.totalorder %s75, %s76
      %p85 = scmp.eq.s32.totalorder %s23, 0
      %p86 = por %p84, %p85
      %p87 = scmp.ne.s32.totalorder %s75, %s76
      %p88 = scmp.eq.s32.totalorder %s24, 1
      %p89 = por %p87, %p88
      %p91 = scmp.ne.s32.totalorder %s76, %s90
      %p92 = scmp.eq.s32.totalorder %s24, 0
      %p93 = por %p91, %p92
      %s95 = sadd.s32 %s94, 1
      %p98 = scmp.eq.s32.totalorder %s18, 1
      %p99 = scmp.ne.s32.totalorder %s94, %s96
      %p100 = scmp.eq.s32.totalorder %s18, 0
      %p101 = por %p99, %p100
      %p102 = scmp.ne.s32.totalorder %s94, %s96
      %p103 = scmp.eq.s32.totalorder %s23, 1
      %p104 = por %p102, %p103
      %p105 = scmp.ne.s32.totalorder %s96, %s97
      %p106 = scmp.eq.s32.totalorder %s23, 0
      %p107 = por %p105, %p106
      %p108 = scmp.ne.s32.totalorder %s96, %s97
      %p109 = scmp.eq.s32.totalorder %s24, 1
      %p110 = por %p108, %p109
      %p112 = scmp.ne.s32.totalorder %s97, %s111
      %p113 = scmp.eq.s32.totalorder %s24, 0
      %p114 = por %p112, %p113
      %s116 = sadd.s32 %s115, 1
      %p119 = scmp.eq.s32.totalorder %s18, 1
      %p120 = scmp.ne.s32.totalorder %s115, %s117
      %p121 = scmp.eq.s32.totalorder %s18, 0
      %p122 = por %p120, %p121
      %p123 = scmp.ne.s32.totalorder %s115, %s117
      %p124 = scmp.eq.s32.totalorder %s23, 1
      %p125 = por %p123, %p124
      %p126 = scmp.ne.s32.totalorder %s117, %s118
      %p127 = scmp.eq.s32.totalorder %s23, 0
      %p128 = por %p126, %p127
      %p129 = scmp.ne.s32.totalorder %s117, %s118
      %p130 = scmp.eq.s32.totalorder %s24, 1
      %p131 = por %p129, %p130
      %p133 = scmp.ne.s32.totalorder %s118, %s132
      %p134 = scmp.eq.s32.totalorder %s24, 0
      %p135 = por %p133, %p134
      %s137 = sadd.s32 %s136, 1
      %p140 = scmp.eq.s32.totalorder %s18, 1
      %p141 = scmp.ne.s32.totalorder %s136, %s138
      %p142 = scmp.eq.s32.totalorder %s18, 0
      %p143 = por %p141, %p142
      %p144 = scmp.ne.s32.totalorder %s136, %s138
      %p145 = scmp.eq.s32.totalorder %s23, 1
      %p146 = por %p144, %p145
      %p147 = scmp.ne.s32.totalorder %s138, %s139
      %p148 = scmp.eq.s32.totalorder %s23, 0
      %p149 = por %p147, %p148
      %p150 = scmp.ne.s32.totalorder %s138, %s139
      %p151 = scmp.eq.s32.totalorder %s24, 1
      %p152 = por %p150, %p151
      %p154 = scmp.ne.s32.totalorder %s139, %s153
      %p155 = scmp.eq.s32.totalorder %s24, 0
      %p156 = por %p154, %p155
      %s158 = sadd.s32 %s157, 1
      %p161 = scmp.eq.s32.totalorder %s18, 1
      %p162 = scmp.ne.s32.totalorder %s157, %s159
      %p163 = scmp.eq.s32.totalorder %s18, 0
      %p164 = por %p162, %p163
      %p165 = scmp.ne.s32.totalorder %s157, %s159
      %p166 = scmp.eq.s32.totalorder %s23, 1
      %p167 = por %p165, %p166
      %p168 = scmp.ne.s32.totalorder %s159, %s160
      %p169 = scmp.eq.s32.totalorder %s23, 0
      %p170 = por %p168, %p169
      %p171 = scmp.ne.s32.totalorder %s159, %s160
      %p172 = scmp.eq.s32.totalorder %s24, 1
      %p173 = por %p171, %p172
      %p175 = scmp.ne.s32.totalorder %s160, %s174
      %p176 = scmp.eq.s32.totalorder %s24, 0
      %p177 = por %p175, %p176
      %s179 = sadd.s32 %s178, 1
      %p182 = scmp.eq.s32.totalorder %s18, 1
      %p183 = scmp.ne.s32.totalorder %s178, %s180
      %p184 = scmp.eq.s32.totalorder %s18, 0
      %p185 = por %p183, %p184
      %p186 = scmp.ne.s32.totalorder %s178, %s180
      %p187 = scmp.eq.s32.totalorder %s23, 1
      %p188 = por %p186, %p187
      %p189 = scmp.ne.s32.totalorder %s180, %s181
      %p190 = scmp.eq.s32.totalorder %s23, 0
      %p191 = por %p189, %p190
      %p192 = scmp.ne.s32.totalorder %s180, %s181
      %p193 = scmp.eq.s32.totalorder %s24, 1
      %p194 = por %p192, %p193
      %p196 = scmp.ne.s32.totalorder %s181, %s195
      %p197 = scmp.eq.s32.totalorder %s24, 0
      %p198 = por %p196, %p197
      %s200 = sadd.s32 %s199, 1
      %p203 = scmp.eq.s32.totalorder %s18, 1
      %p204 = scmp.ne.s32.totalorder %s199, %s201
      %p205 = scmp.eq.s32.totalorder %s18, 0
      %p206 = por %p204, %p205
      %p207 = scmp.ne.s32.totalorder %s199, %s201
      %p208 = scmp.eq.s32.totalorder %s23, 1
      %p209 = por %p207, %p208
      %p210 = scmp.ne.s32.totalorder %s201, %s202
      %p211 = scmp.eq.s32.totalorder %s23, 0
      %p212 = por %p210, %p211
      %p213 = scmp.ne.s32.totalorder %s201, %s202
      %p214 = scmp.eq.s32.totalorder %s24, 1
      %p215 = por %p213, %p214
      %p217 = scmp.ne.s32.totalorder %s202, %s216
      %p218 = scmp.eq.s32.totalorder %s24, 0
      %p219 = por %p217, %p218
      %s220 = ssub.s32 %s18, %s25
      %p221 = scmp.eq.s32.totalorder %s220, 0
      %s223 = sadd.s32 %s222, 1
      %s224 = scalar_select %p221, %s222, %s223
      %p227 = pneg %p221
      %p228 = scmp.eq.s32.totalorder %s18, 1
      %p229 = por %p227, %p228
      %p230 = scmp.ne.s32.totalorder %s222, %s225
      %p231 = scmp.eq.s32.totalorder %s18, 0
      %p232 = por %p230, %p231
      %p233 = scmp.ne.s32.totalorder %s222, %s225
      %p234 = scmp.eq.s32.totalorder %s23, 1
      %p235 = por %p233, %p234
      %p236 = scmp.ne.s32.totalorder %s225, %s226
      %p237 = scmp.eq.s32.totalorder %s23, 0
      %p238 = por %p236, %p237
      %p239 = scmp.ne.s32.totalorder %s225, %s226
      %p240 = scmp.eq.s32.totalorder %s24, 1
      %p241 = por %p239, %p240
      %p243 = scmp.ne.s32.totalorder %s226, %s242
      %p244 = scmp.eq.s32.totalorder %s24, 0
      %p245 = por %p243, %p244
      %p246 = scmp.le.s32.totalorder 1, %s18
      %p247 = scmp.lt.s32.totalorder %s18, 3
      %p248 = pnand %p246, %p247
      %p249 = pneg %p248
      // Predicated region
      $region9: #{convnet_forward.1} parent=5 // pred_check
        _
      $region10: #{convnet_forward.1} parent=5 // pred_check_branch
        %251 = sbr.rel (%p248) target = $region12
      $region11: #{convnet_forward.1} parent=5 // pred_region
        %s252 = ssub.s32 %s18, 1
        // Predicated region
        $region13: #{convnet_forward.1} parent=11 // pred_check
          %p253 = pneg %p65
        $region14: #{convnet_forward.1} parent=11 // pred_check_branch
          %255 = sbr.rel (%p253) target = $region16
        $region15: #{convnet_forward.1} parent=11 // pred_region
          _
        $region16: #{convnet_forward.1} parent=11 // pred_fallthru
          _
        // Predicated region
        $region17: #{convnet_forward.1} parent=11 // pred_check
          %p256 = pneg %p86
        $region18: #{convnet_forward.1} parent=11 // pred_check_branch
          %258 = sbr.rel (%p256) target = $region20
        $region19: #{convnet_forward.1} parent=11 // pred_region
          _
        $region20: #{convnet_forward.1} parent=11 // pred_fallthru
          _
        // Predicated region
        $region21: #{convnet_forward.1} parent=11 // pred_check
          %p259 = pneg %p107
        $region22: #{convnet_forward.1} parent=11 // pred_check_branch
          %261 = sbr.rel (%p259) target = $region24
        $region23: #{convnet_forward.1} parent=11 // pred_region
          _
        $region24: #{convnet_forward.1} parent=11 // pred_fallthru
          _
        // Predicated region
        $region25: #{convnet_forward.1} parent=11 // pred_check
          %p262 = pneg %p128
        $region26: #{convnet_forward.1} parent=11 // pred_check_branch
          %264 = sbr.rel (%p262) target = $region28
        $region27: #{convnet_forward.1} parent=11 // pred_region
          _
        $region28: #{convnet_forward.1} parent=11 // pred_fallthru
          _
        // Predicated region
        $region29: #{convnet_forward.1} parent=11 // pred_check
          %p265 = pneg %p149
        $region30: #{convnet_forward.1} parent=11 // pred_check_branch
          %267 = sbr.rel (%p265) target = $region32
        $region31: #{convnet_forward.1} parent=11 // pred_region
          _
        $region32: #{convnet_forward.1} parent=11 // pred_fallthru
          _
        // Predicated region
        $region33: #{convnet_forward.1} parent=11 // pred_check
          %p268 = pneg %p170
        $region34: #{convnet_forward.1} parent=11 // pred_check_branch
          %270 = sbr.rel (%p268) target = $region36
        $region35: #{convnet_forward.1} parent=11 // pred_region
          _
        $region36: #{convnet_forward.1} parent=11 // pred_fallthru
          _
        // Predicated region
        $region37: #{convnet_forward.1} parent=11 // pred_check
          %p271 = pneg %p191
        $region38: #{convnet_forward.1} parent=11 // pred_check_branch
          %273 = sbr.rel (%p271) target = $region40
        $region39: #{convnet_forward.1} parent=11 // pred_region
          _
        $region40: #{convnet_forward.1} parent=11 // pred_fallthru
          _
        // Predicated region
        $region41: #{convnet_forward.1} parent=11 // pred_check
          %p274 = pneg %p212
        $region42: #{convnet_forward.1} parent=11 // pred_check_branch
          %276 = sbr.rel (%p274) target = $region44
        $region43: #{convnet_forward.1} parent=11 // pred_region
          _
        $region44: #{convnet_forward.1} parent=11 // pred_fallthru
          _
      $region12: #{convnet_forward.1} parent=5 // pred_fallthru
        _
      %p277 = scmp.lt.s32.totalorder %s18, 2
      // Predicated region
      $region45: #{convnet_forward.1} parent=5 // pred_check
        %p278 = pneg %p277
      $region46: #{convnet_forward.1} parent=5 // pred_check_branch
        %280 = sbr.rel (%p278) target = $region48
      $region47: #{convnet_forward.1} parent=5 // pred_region
        // Predicated region
        $region49: #{convnet_forward.1} parent=47 // pred_check
          %p281 = pneg %p38
        $region50: #{convnet_forward.1} parent=47 // pred_check_branch
          %283 = sbr.rel (%p281) target = $region52
        $region51: #{convnet_forward.1} parent=47 // pred_region
          %p284 = scmp.lt.s32.totalorder %s18, 1
          %s285 = scalar_select %p284, %s18, 1
          %s286 = smul.addr %s285, 128
          %s287 = smul.addr %s286, 4
          %s288 = scalar_lea.vmem %s0, %s287
        $region52: #{convnet_forward.1} parent=47 // pred_fallthru
          _
      $region48: #{convnet_forward.1} parent=5 // pred_fallthru
        _
      %p289 = scmp.le.s32.totalorder 1, %s18
      %p290 = scmp.lt.s32.totalorder %s18, 3
      %p291 = pnand %p289, %p290
      %p292 = pneg %p291
      // Predicated region
      $region53: #{convnet_forward.1} parent=5 // pred_check
        _
      $region54: #{convnet_forward.1} parent=5 // pred_check_branch
        %294 = sbr.rel (%p291) target = $region56
      $region55: #{convnet_forward.1} parent=5 // pred_region
        %s295 = ssub.s32 %s18, 1
        %p296 = scmp.lt.s32.totalorder %s23, 1
        %s297 = scalar_select %p296, %s23, 1
        %s298 = smul.addr %s297, 128
        %s299 = smul.addr %s298, 4
        %s300 = scalar_lea.vmem %s0, %s299
        %p301 = pneg %p44
        %p302 = pneg %p41
        %p303 = pneg %p65
        %p304 = pneg %p62
        %p305 = pneg %p86
        %p306 = pneg %p83
        %p307 = pneg %p107
        %p308 = pneg %p104
        %p309 = pneg %p128
        %p310 = pneg %p125
        %p311 = pneg %p149
        %p312 = pneg %p146
        %p313 = pneg %p170
        %p314 = pneg %p167
        %p315 = pneg %p191
        %p316 = pneg %p188
        %p317 = pneg %p212
        %p318 = pneg %p209
        %p319 = pneg %p238
        %p320 = pneg %p235
        %s321 = sand.u32 %s225, 1
        %s322 = scalar_lea.sflag [#allocation7], %s321
        %s323 = sand.u32 %s225, 1
        %s324 = scalar_lea.vmem [#allocation6], %s323
        %p325 = scmp.lt.s32.totalorder %s23, 1
        %s326 = scalar_select %p325, %s23, 1
        %s327 = smul.addr %s326, 128
        %s328 = smul.addr %s327, 4
        %s329 = scalar_lea.vmem %s0, %s328
        loop: start=0, step=1, limit=28
        $region57: #{convnet_forward.1} parent=55 // loop_pre_header
          _
        $region58: #{convnet_forward.1} parent=55 // loop_header
          %s332 = sphi 0, %s336
          %p333 = scmp.ge.s32.totalorder %s332, 28
        $region59: #{convnet_forward.1} parent=55 // loop_header_branch
          %335 = sbr.rel (%p333) target = $region63
        $region60: #{convnet_forward.1} parent=55 // loop_body
          %s337 = smul.u32 %s332, 4
          %s338 = smul.addr %s337, 4
          %s339 = scalar_lea.vmem %s329, %s338
          %v340 = vld [vmem:[%s339] sm:$0xf]
          %v341 = vld [vmem:[%s339 + $0x4] sm:$0xf]
          %v342 = vld [vmem:[%s339 + $0x8] sm:$0xf]
          %v343 = vld [vmem:[%s339 + $0xc] sm:$0xf]
          %v344 = vld [vmem:[%s1] sm:$0xf]
          %s345 = scalar_lea.vmem %s1, 4
          %v346 = vld [vmem:[%s345] sm:$0xf]
          %v351 = vunpack.c.l.b16 %v340
          %v352 = vunpack.c.l.b16 %v341
          %v353 = vunpack.c.l.b16 %v342
          %v354 = vunpack.c.l.b16 %v343
          %v355 = vpack.c.b16 %v352, %v351
          %v356 = vpack.c.b16 %v354, %v353
          %vm357 = vsmask.f32 7424
          %v359 = vshrl.u32 %v355, 16
          %v361 = vshll.u32 %v355, 16
          %v363 = vrot.slane %v361, 1
          %v364 = vor.u32 %v359, %v363
          %v366 = vshll.u32 %v356, 16
          %v368 = vrot.slane %v366, 1
          %v369 = vsel %vm357, %v364, %v368
          %v370 = vshrl.u32 %v356, 16
          %v372 = vor.u32 %v370, %v368
          %vm373 = vcmask 64512
          %v375 = vsel %vm373, %v369, 0
          %v378 = vsel %vm373, %v372, 0
          %vm380 = vcmask 1043456
          %v382 = vsel %vm380, %v346, 0
          %384 = vmatpush.bf16.msra.mxu0 0
          %385 = vmatpush.bf16.msra.mxu0 0
          %386 = vmatpush.bf16.msra.mxu0 0
          %387 = vmatpush.bf16.msra.mxu0 0
          %388 = vmatpush.bf16.msra.mxu0 0
          %389 = vmatpush.bf16.msra.mxu0 0
          %390 = vmatpush.bf16.msra.mxu0 0
          %391 = vmatpush.bf16.msra.mxu0 %v382
          %392 = vmatmul.bf16.gmra.mxu0 %v375
          %v393 = vpop.f32.mrf.mxu0
          %v394 = vadd.f32 0.0, %v393
          %v395 = vpop.f32.mrf.mxu0
          %v396 = vadd.f32 0.0, %v395
          %397 = vmatmul.bf16.gmra.mxu0 %v378
          %v398 = vpop.f32.mrf.mxu0
          %v399 = vadd.f32 0.0, %v398
          %v400 = vpop.f32.mrf.mxu0
          %v401 = vadd.f32 0.0, %v400
          %402 = vdwg.mxu0
          %v403 = vsel %vm373, %v355, 0
          %v405 = vsel %vm373, %v356, 0
          %v408 = vsel %vm380, %v344, 0
          %410 = vmatpush.bf16.msra.mxu0 0
          %411 = vmatpush.bf16.msra.mxu0 0
          %412 = vmatpush.bf16.msra.mxu0 0
          %413 = vmatpush.bf16.msra.mxu0 0
          %414 = vmatpush.bf16.msra.mxu0 0
          %415 = vmatpush.bf16.msra.mxu0 0
          %416 = vmatpush.bf16.msra.mxu0 0
          %417 = vmatpush.bf16.msra.mxu0 %v408
          %418 = vmatmul.bf16.gmra.mxu0 %v403
          %v419 = vpop.f32.mrf.mxu0
          %v420 = vadd.f32 %v394, %v419
          %v421 = vpop.f32.mrf.mxu0
          %v422 = vadd.f32 %v396, %v421
          %423 = vmatmul.bf16.gmra.mxu0 %v405
          %v424 = vpop.f32.mrf.mxu0
          %v425 = vadd.f32 %v399, %v424
          %v426 = vpop.f32.mrf.mxu0
          %v427 = vadd.f32 %v401, %v426
          %428 = vdwg.mxu0
          %s429 = scalar_lea.vmem %s1, 8
          %v430 = vld [vmem:[%s429] sm:$0xf]
          %vm431 = vcmask 1046528
          %v432 = vrot.slane %v355, 1
          %v433 = vrot.slane %v356, 1
          %v434 = vsel %vm431, %v432, %v433
          %v436 = vsel %vm373, %v434, 0
          %v439 = vsel %vm373, %v433, 0
          %v442 = vsel %vm380, %v430, 0
          %444 = vmatpush.bf16.msra.mxu0 0
          %445 = vmatpush.bf16.msra.mxu0 0
          %446 = vmatpush.bf16.msra.mxu0 0
          %447 = vmatpush.bf16.msra.mxu0 0
          %448 = vmatpush.bf16.msra.mxu0 0
          %449 = vmatpush.bf16.msra.mxu0 0
          %450 = vmatpush.bf16.msra.mxu0 0
          %451 = vmatpush.bf16.msra.mxu0 %v442
          %452 = vmatmul.bf16.gmra.mxu0 %v436
          %v453 = vpop.f32.mrf.mxu0
          %v454 = vadd.f32 0.0, %v453
          %v455 = vpop.f32.mrf.mxu0
          %v456 = vadd.f32 0.0, %v455
          %457 = vmatmul.bf16.gmra.mxu0 %v439
          %v458 = vpop.f32.mrf.mxu0
          %v459 = vadd.f32 0.0, %v458
          %v460 = vpop.f32.mrf.mxu0
          %v461 = vadd.f32 0.0, %v460
          %462 = vdwg.mxu0
          %v463 = vadd.f32 %v420, %v454
          %v464 = vadd.f32 %v422, %v456
          %v465 = vadd.f32 %v425, %v459
          %v466 = vadd.f32 %v427, %v461
          %s467 = scalar_lea.vmem %s1, 12
          %v468 = vld [vmem:[%s467] sm:$0xf]
          %vm469 = vsmask.f32 6400
          %v470 = vrot.slane %v359, 1
          %v471 = vrot.slane %v361, 2
          %v472 = vor.u32 %v470, %v471
          %v473 = vrot.slane %v370, 1
          %v474 = vrot.slane %v366, 2
          %v475 = vor.u32 %v473, %v474
          %v476 = vsel %vm469, %v472, %v475
          %v478 = vsel %vm373, %v476, 0
          %v481 = vsel %vm373, %v475, 0
          %v484 = vsel %vm380, %v468, 0
          %486 = vmatpush.bf16.msra.mxu0 0
          %487 = vmatpush.bf16.msra.mxu0 0
          %488 = vmatpush.bf16.msra.mxu0 0
          %489 = vmatpush.bf16.msra.mxu0 0
          %490 = vmatpush.bf16.msra.mxu0 0
          %491 = vmatpush.bf16.msra.mxu0 0
          %492 = vmatpush.bf16.msra.mxu0 0
          %493 = vmatpush.bf16.msra.mxu0 %v484
          %494 = vmatmul.bf16.gmra.mxu0 %v478
          %v495 = vpop.f32.mrf.mxu0
          %v496 = vadd.f32 0.0, %v495
          %v497 = vpop.f32.mrf.mxu0
          %v498 = vadd.f32 0.0, %v497
          %499 = vmatmul.bf16.gmra.mxu0 %v481
          %v500 = vpop.f32.mrf.mxu0
          %v501 = vadd.f32 0.0, %v500
          %v502 = vpop.f32.mrf.mxu0
          %v503 = vadd.f32 0.0, %v502
          %504 = vdwg.mxu0
          %v505 = vadd.f32 %v463, %v496
          %v506 = vadd.f32 %v464, %v498
          %v507 = vadd.f32 %v465, %v501
          %v508 = vadd.f32 %v466, %v503
          %s509 = scalar_lea.vmem %s1, 16
          %v510 = vld [vmem:[%s509] sm:$0xf]
          %vm511 = vcmask 1045504
          %v512 = vrot.slane %v355, 2
          %v513 = vrot.slane %v356, 2
          %v514 = vsel %vm511, %v512, %v513
          %v516 = vsel %vm373, %v514, 0
          %v519 = vsel %vm373, %v513, 0
          %v522 = vsel %vm380, %v510, 0
          %524 = vmatpush.bf16.msra.mxu0 0
          %525 = vmatpush.bf16.msra.mxu0 0
          %526 = vmatpush.bf16.msra.mxu0 0
          %527 = vmatpush.bf16.msra.mxu0 0
          %528 = vmatpush.bf16.msra.mxu0 0
          %529 = vmatpush.bf16.msra.mxu0 0
          %530 = vmatpush.bf16.msra.mxu0 0
          %531 = vmatpush.bf16.msra.mxu0 %v522
          %532 = vmatmul.bf16.gmra.mxu0 %v516
          %v533 = vpop.f32.mrf.mxu0
          %v534 = vadd.f32 0.0, %v533
          %v535 = vpop.f32.mrf.mxu0
          %v536 = vadd.f32 0.0, %v535
          %537 = vmatmul.bf16.gmra.mxu0 %v519
          %v538 = vpop.f32.mrf.mxu0
          %v539 = vadd.f32 0.0, %v538
          %v540 = vpop.f32.mrf.mxu0
          %v541 = vadd.f32 0.0, %v540
          %542 = vdwg.mxu0
          %v543 = vadd.f32 %v505, %v534
          %v544 = vadd.f32 %v506, %v536
          %v545 = vadd.f32 %v507, %v539
          %v546 = vadd.f32 %v508, %v541
          %s547 = sadd.s32 %s332, 1
          %s548 = smul.u32 %s547, 4
          %s549 = smul.addr %s548, 4
          %s550 = scalar_lea.vmem %s329, %s549
          %v551 = vld [vmem:[%s550] sm:$0xf]
          %v552 = vld [vmem:[%s550 + $0x4] sm:$0xf]
          %v553 = vld [vmem:[%s550 + $0x8] sm:$0xf]
          %v554 = vld [vmem:[%s550 + $0xc] sm:$0xf]
          %s555 = scalar_lea.vmem %s1, 20
          %v556 = vld [vmem:[%s555] sm:$0xf]
          %v561 = vunpack.c.l.b16 %v551
          %v562 = vunpack.c.l.b16 %v552
          %v563 = vunpack.c.l.b16 %v553
          %v564 = vunpack.c.l.b16 %v554
          %v565 = vpack.c.b16 %v562, %v561
          %v566 = vpack.c.b16 %v564, %v563
          %v568 = vsel %vm373, %v565, 0
          %v571 = vsel %vm373, %v566, 0
          %v574 = vsel %vm380, %v556, 0
          %576 = vmatpush.bf16.msra.mxu0 0
          %577 = vmatpush.bf16.msra.mxu0 0
          %578 = vmatpush.bf16.msra.mxu0 0
          %579 = vmatpush.bf16.msra.mxu0 0
          %580 = vmatpush.bf16.msra.mxu0 0
          %581 = vmatpush.bf16.msra.mxu0 0
          %582 = vmatpush.bf16.msra.mxu0 0
          %583 = vmatpush.bf16.msra.mxu0 %v574
          %584 = vmatmul.bf16.gmra.mxu0 %v568
          %v585 = vpop.f32.mrf.mxu0
          %v586 = vadd.f32 0.0, %v585
          %v587 = vpop.f32.mrf.mxu0
          %v588 = vadd.f32 0.0, %v587
          %589 = vmatmul.bf16.gmra.mxu0 %v571
          %v590 = vpop.f32.mrf.mxu0
          %v591 = vadd.f32 0.0, %v590
          %v592 = vpop.f32.mrf.mxu0
          %v593 = vadd.f32 0.0, %v592
          %594 = vdwg.mxu0
          %v595 = vadd.f32 %v543, %v586
          %v596 = vadd.f32 %v544, %v588
          %v597 = vadd.f32 %v545, %v591
          %v598 = vadd.f32 %v546, %v593
          %s599 = scalar_lea.vmem %s1, 24
          %v600 = vld [vmem:[%s599] sm:$0xf]
          %v601 = vshrl.u32 %v565, 16
          %v603 = vshll.u32 %v565, 16
          %v605 = vrot.slane %v603, 1
          %v606 = vor.u32 %v601, %v605
          %v607 = vshll.u32 %v566, 16
          %v609 = vrot.slane %v607, 1
          %v610 = vsel %vm357, %v606, %v609
          %v611 = vshrl.u32 %v566, 16
          %v613 = vor.u32 %v611, %v609
          %v615 = vsel %vm373, %v610, 0
          %v618 = vsel %vm373, %v613, 0
          %v621 = vsel %vm380, %v600, 0
          %623 = vmatpush.bf16.msra.mxu0 0
          %624 = vmatpush.bf16.msra.mxu0 0
          %625 = vmatpush.bf16.msra.mxu0 0
          %626 = vmatpush.bf16.msra.mxu0 0
          %627 = vmatpush.bf16.msra.mxu0 0
          %628 = vmatpush.bf16.msra.mxu0 0
          %629 = vmatpush.bf16.msra.mxu0 0
          %630 = vmatpush.bf16.msra.mxu0 %v621
          %631 = vmatmul.bf16.gmra.mxu0 %v615
          %v632 = vpop.f32.mrf.mxu0
          %v633 = vadd.f32 0.0, %v632
          %v634 = vpop.f32.mrf.mxu0
          %v635 = vadd.f32 0.0, %v634
          %636 = vmatmul.bf16.gmra.mxu0 %v618
          %v637 = vpop.f32.mrf.mxu0
          %v638 = vadd.f32 0.0, %v637
          %v639 = vpop.f32.mrf.mxu0
          %v640 = vadd.f32 0.0, %v639
          %641 = vdwg.mxu0
          %v642 = vadd.f32 %v595, %v633
          %v643 = vadd.f32 %v596, %v635
          %v644 = vadd.f32 %v597, %v638
          %v645 = vadd.f32 %v598, %v640
          %s646 = scalar_lea.vmem %s1, 28
          %v647 = vld [vmem:[%s646] sm:$0xf]
          %v648 = vrot.slane %v565, 1
          %v649 = vrot.slane %v566, 1
          %v650 = vsel %vm431, %v648, %v649
          %v652 = vsel %vm373, %v650, 0
          %v655 = vsel %vm373, %v649, 0
          %v658 = vsel %vm380, %v647, 0
          %660 = vmatpush.bf16.msra.mxu0 0
          %661 = vmatpush.bf16.msra.mxu0 0
          %662 = vmatpush.bf16.msra.mxu0 0
          %663 = vmatpush.bf16.msra.mxu0 0
          %664 = vmatpush.bf16.msra.mxu0 0
          %665 = vmatpush.bf16.msra.mxu0 0
          %666 = vmatpush.bf16.msra.mxu0 0
          %667 = vmatpush.bf16.msra.mxu0 %v658
          %668 = vmatmul.bf16.gmra.mxu0 %v652
          %v669 = vpop.f32.mrf.mxu0
          %v670 = vadd.f32 0.0, %v669
          %v671 = vpop.f32.mrf.mxu0
          %v672 = vadd.f32 0.0, %v671
          %673 = vmatmul.bf16.gmra.mxu0 %v655
          %v674 = vpop.f32.mrf.mxu0
          %v675 = vadd.f32 0.0, %v674
          %v676 = vpop.f32.mrf.mxu0
          %v677 = vadd.f32 0.0, %v676
          %678 = vdwg.mxu0
          %v679 = vadd.f32 %v642, %v670
          %v680 = vadd.f32 %v643, %v672
          %v681 = vadd.f32 %v644, %v675
          %v682 = vadd.f32 %v645, %v677
          %s683 = scalar_lea.vmem %s1, 32
          %v684 = vld [vmem:[%s683] sm:$0xf]
          %v685 = vrot.slane %v601, 1
          %v686 = vrot.slane %v603, 2
          %v687 = vor.u32 %v685, %v686
          %v688 = vrot.slane %v611, 1
          %v689 = vrot.slane %v607, 2
          %v690 = vor.u32 %v688, %v689
          %v691 = vsel %vm469, %v687, %v690
          %v693 = vsel %vm373, %v691, 0
          %v696 = vsel %vm373, %v690, 0
          %v699 = vsel %vm380, %v684, 0
          %701 = vmatpush.bf16.msra.mxu0 0
          %702 = vmatpush.bf16.msra.mxu0 0
          %703 = vmatpush.bf16.msra.mxu0 0
          %704 = vmatpush.bf16.msra.mxu0 0
          %705 = vmatpush.bf16.msra.mxu0 0
          %706 = vmatpush.bf16.msra.mxu0 0
          %707 = vmatpush.bf16.msra.mxu0 0
          %708 = vmatpush.bf16.msra.mxu0 %v699
          %709 = vmatmul.bf16.gmra.mxu0 %v693
          %v710 = vpop.f32.mrf.mxu0
          %v711 = vadd.f32 0.0, %v710
          %v712 = vpop.f32.mrf.mxu0
          %v713 = vadd.f32 0.0, %v712
          %714 = vmatmul.bf16.gmra.mxu0 %v696
          %v715 = vpop.f32.mrf.mxu0
          %v716 = vadd.f32 0.0, %v715
          %v717 = vpop.f32.mrf.mxu0
          %v718 = vadd.f32 0.0, %v717
          %719 = vdwg.mxu0
          %v720 = vadd.f32 %v679, %v711
          %v721 = vadd.f32 %v680, %v713
          %v722 = vadd.f32 %v681, %v716
          %v723 = vadd.f32 %v682, %v718
          %s724 = scalar_lea.vmem %s1, 36
          %v725 = vld [vmem:[%s724] sm:$0xf]
          %v726 = vrot.slane %v565, 2
          %v727 = vrot.slane %v566, 2
          %v728 = vsel %vm511, %v726, %v727
          %v730 = vsel %vm373, %v728, 0
          %v733 = vsel %vm373, %v727, 0
          %v736 = vsel %vm380, %v725, 0
          %738 = vmatpush.bf16.msra.mxu0 0
          %739 = vmatpush.bf16.msra.mxu0 0
          %740 = vmatpush.bf16.msra.mxu0 0
          %741 = vmatpush.bf16.msra.mxu0 0
          %742 = vmatpush.bf16.msra.mxu0 0
          %743 = vmatpush.bf16.msra.mxu0 0
          %744 = vmatpush.bf16.msra.mxu0 0
          %745 = vmatpush.bf16.msra.mxu0 %v736
          %746 = vmatmul.bf16.gmra.mxu0 %v730
          %v747 = vpop.f32.mrf.mxu0
          %v748 = vadd.f32 0.0, %v747
          %v749 = vpop.f32.mrf.mxu0
          %v750 = vadd.f32 0.0, %v749
          %751 = vmatmul.bf16.gmra.mxu0 %v733
          %v752 = vpop.f32.mrf.mxu0
          %v753 = vadd.f32 0.0, %v752
          %v754 = vpop.f32.mrf.mxu0
          %v755 = vadd.f32 0.0, %v754
          %756 = vdwg.mxu0
          %v757 = vadd.f32 %v720, %v748
          %v758 = vadd.f32 %v721, %v750
          %v759 = vadd.f32 %v722, %v753
          %v760 = vadd.f32 %v723, %v755
          %s761 = sadd.s32 %s332, 2
          %s762 = smul.u32 %s761, 4
          %s763 = smul.addr %s762, 4
          %s764 = scalar_lea.vmem %s329, %s763
          %v765 = vld [vmem:[%s764] sm:$0xf]
          %v766 = vld [vmem:[%s764 + $0x4] sm:$0xf]
          %v767 = vld [vmem:[%s764 + $0x8] sm:$0xf]
          %v768 = vld [vmem:[%s764 + $0xc] sm:$0xf]
          %s769 = scalar_lea.vmem %s1, 40
          %v770 = vld [vmem:[%s769] sm:$0xf]
          %v775 = vunpack.c.l.b16 %v765
          %v776 = vunpack.c.l.b16 %v766
          %v777 = vunpack.c.l.b16 %v767
          %v778 = vunpack.c.l.b16 %v768
          %v779 = vpack.c.b16 %v776, %v775
          %v780 = vpack.c.b16 %v778, %v777
          %v782 = vsel %vm373, %v779, 0
          %v785 = vsel %vm373, %v780, 0
          %v788 = vsel %vm380, %v770, 0
          %790 = vmatpush.bf16.msra.mxu0 0
          %791 = vmatpush.bf16.msra.mxu0 0
          %792 = vmatpush.bf16.msra.mxu0 0
          %793 = vmatpush.bf16.msra.mxu0 0
          %794 = vmatpush.bf16.msra.mxu0 0
          %795 = vmatpush.bf16.msra.mxu0 0
          %796 = vmatpush.bf16.msra.mxu0 0
          %797 = vmatpush.bf16.msra.mxu0 %v788
          %798 = vmatmul.bf16.gmra.mxu0 %v782
          %v799 = vpop.f32.mrf.mxu0
          %v800 = vadd.f32 0.0, %v799
          %v801 = vpop.f32.mrf.mxu0
          %v802 = vadd.f32 0.0, %v801
          %803 = vmatmul.bf16.gmra.mxu0 %v785
          %v804 = vpop.f32.mrf.mxu0
          %v805 = vadd.f32 0.0, %v804
          %v806 = vpop.f32.mrf.mxu0
          %v807 = vadd.f32 0.0, %v806
          %808 = vdwg.mxu0
          %v809 = vadd.f32 %v757, %v800
          %v810 = vadd.f32 %v758, %v802
          %v811 = vadd.f32 %v759, %v805
          %v812 = vadd.f32 %v760, %v807
          %s813 = scalar_lea.vmem %s1, 44
          %v814 = vld [vmem:[%s813] sm:$0xf]
          %v815 = vshrl.u32 %v779, 16
          %v817 = vshll.u32 %v779, 16
          %v819 = vrot.slane %v817, 1
          %v820 = vor.u32 %v815, %v819
          %v821 = vshll.u32 %v780, 16
          %v823 = vrot.slane %v821, 1
          %v824 = vsel %vm357, %v820, %v823
          %v825 = vshrl.u32 %v780, 16
          %v827 = vor.u32 %v825, %v823
          %v829 = vsel %vm373, %v824, 0
          %v832 = vsel %vm373, %v827, 0
          %v835 = vsel %vm380, %v814, 0
          %837 = vmatpush.bf16.msra.mxu0 0
          %838 = vmatpush.bf16.msra.mxu0 0
          %839 = vmatpush.bf16.msra.mxu0 0
          %840 = vmatpush.bf16.msra.mxu0 0
          %841 = vmatpush.bf16.msra.mxu0 0
          %842 = vmatpush.bf16.msra.mxu0 0
          %843 = vmatpush.bf16.msra.mxu0 0
          %844 = vmatpush.bf16.msra.mxu0 %v835
          %845 = vmatmul.bf16.gmra.mxu0 %v829
          %v846 = vpop.f32.mrf.mxu0
          %v847 = vadd.f32 0.0, %v846
          %v848 = vpop.f32.mrf.mxu0
          %v849 = vadd.f32 0.0, %v848
          %850 = vmatmul.bf16.gmra.mxu0 %v832
          %v851 = vpop.f32.mrf.mxu0
          %v852 = vadd.f32 0.0, %v851
          %v853 = vpop.f32.mrf.mxu0
          %v854 = vadd.f32 0.0, %v853
          %855 = vdwg.mxu0
          %v856 = vadd.f32 %v809, %v847
          %v857 = vadd.f32 %v810, %v849
          %v858 = vadd.f32 %v811, %v852
          %v859 = vadd.f32 %v812, %v854
          %s860 = scalar_lea.vmem %s1, 48
          %v861 = vld [vmem:[%s860] sm:$0xf]
          %v862 = vrot.slane %v779, 1
          %v863 = vrot.slane %v780, 1
          %v864 = vsel %vm431, %v862, %v863
          %v866 = vsel %vm373, %v864, 0
          %v869 = vsel %vm373, %v863, 0
          %v872 = vsel %vm380, %v861, 0
          %874 = vmatpush.bf16.msra.mxu0 0
          %875 = vmatpush.bf16.msra.mxu0 0
          %876 = vmatpush.bf16.msra.mxu0 0
          %877 = vmatpush.bf16.msra.mxu0 0
          %878 = vmatpush.bf16.msra.mxu0 0
          %879 = vmatpush.bf16.msra.mxu0 0
          %880 = vmatpush.bf16.msra.mxu0 0
          %881 = vmatpush.bf16.msra.mxu0 %v872
          %882 = vmatmul.bf16.gmra.mxu0 %v866
          %v883 = vpop.f32.mrf.mxu0
          %v884 = vadd.f32 0.0, %v883
          %v885 = vpop.f32.mrf.mxu0
          %v886 = vadd.f32 0.0, %v885
          %887 = vmatmul.bf16.gmra.mxu0 %v869
          %v888 = vpop.f32.mrf.mxu0
          %v889 = vadd.f32 0.0, %v888
          %v890 = vpop.f32.mrf.mxu0
          %v891 = vadd.f32 0.0, %v890
          %892 = vdwg.mxu0
          %v893 = vadd.f32 %v856, %v884
          %v894 = vadd.f32 %v857, %v886
          %v895 = vadd.f32 %v858, %v889
          %v896 = vadd.f32 %v859, %v891
          %s897 = scalar_lea.vmem %s1, 52
          %v898 = vld [vmem:[%s897] sm:$0xf]
          %v899 = vrot.slane %v815, 1
          %v900 = vrot.slane %v817, 2
          %v901 = vor.u32 %v899, %v900
          %v902 = vrot.slane %v825, 1
          %v903 = vrot.slane %v821, 2
          %v904 = vor.u32 %v902, %v903
          %v905 = vsel %vm469, %v901, %v904
          %v907 = vsel %vm373, %v905, 0
          %v910 = vsel %vm373, %v904, 0
          %v913 = vsel %vm380, %v898, 0
          %915 = vmatpush.bf16.msra.mxu0 0
          %916 = vmatpush.bf16.msra.mxu0 0
          %917 = vmatpush.bf16.msra.mxu0 0
          %918 = vmatpush.bf16.msra.mxu0 0
          %919 = vmatpush.bf16.msra.mxu0 0
          %920 = vmatpush.bf16.msra.mxu0 0
          %921 = vmatpush.bf16.msra.mxu0 0
          %922 = vmatpush.bf16.msra.mxu0 %v913
          %923 = vmatmul.bf16.gmra.mxu0 %v907
          %v924 = vpop.f32.mrf.mxu0
          %v925 = vadd.f32 0.0, %v924
          %v926 = vpop.f32.mrf.mxu0
          %v927 = vadd.f32 0.0, %v926
          %928 = vmatmul.bf16.gmra.mxu0 %v910
          %v929 = vpop.f32.mrf.mxu0
          %v930 = vadd.f32 0.0, %v929
          %v931 = vpop.f32.mrf.mxu0
          %v932 = vadd.f32 0.0, %v931
          %933 = vdwg.mxu0
          %v934 = vadd.f32 %v893, %v925
          %v935 = vadd.f32 %v894, %v927
          %v936 = vadd.f32 %v895, %v930
          %v937 = vadd.f32 %v896, %v932
          %s938 = scalar_lea.vmem %s1, 56
          %v939 = vld [vmem:[%s938] sm:$0xf]
          %v940 = vrot.slane %v779, 2
          %v941 = vrot.slane %v780, 2
          %v942 = vsel %vm511, %v940, %v941
          %v944 = vsel %vm373, %v942, 0
          %v947 = vsel %vm373, %v941, 0
          %v950 = vsel %vm380, %v939, 0
          %952 = vmatpush.bf16.msra.mxu0 0
          %953 = vmatpush.bf16.msra.mxu0 0
          %954 = vmatpush.bf16.msra.mxu0 0
          %955 = vmatpush.bf16.msra.mxu0 0
          %956 = vmatpush.bf16.msra.mxu0 0
          %957 = vmatpush.bf16.msra.mxu0 0
          %958 = vmatpush.bf16.msra.mxu0 0
          %959 = vmatpush.bf16.msra.mxu0 %v950
          %960 = vmatmul.bf16.gmra.mxu0 %v944
          %v961 = vpop.f32.mrf.mxu0
          %v962 = vadd.f32 0.0, %v961
          %v963 = vpop.f32.mrf.mxu0
          %v964 = vadd.f32 0.0, %v963
          %965 = vmatmul.bf16.gmra.mxu0 %v947
          %v966 = vpop.f32.mrf.mxu0
          %v967 = vadd.f32 0.0, %v966
          %v968 = vpop.f32.mrf.mxu0
          %v969 = vadd.f32 0.0, %v968
          %970 = vdwg.mxu0
          %v971 = vadd.f32 %v934, %v962
          %v972 = vadd.f32 %v935, %v964
          %v973 = vadd.f32 %v936, %v967
          %v974 = vadd.f32 %v937, %v969
          %s975 = sadd.s32 %s332, 3
          %s976 = smul.u32 %s975, 4
          %s977 = smul.addr %s976, 4
          %s978 = scalar_lea.vmem %s329, %s977
          %v979 = vld [vmem:[%s978] sm:$0xf]
          %v980 = vld [vmem:[%s978 + $0x4] sm:$0xf]
          %v981 = vld [vmem:[%s978 + $0x8] sm:$0xf]
          %v982 = vld [vmem:[%s978 + $0xc] sm:$0xf]
          %s983 = scalar_lea.vmem %s1, 60
          %v984 = vld [vmem:[%s983] sm:$0xf]
          %v989 = vunpack.c.l.b16 %v979
          %v990 = vunpack.c.l.b16 %v980
          %v991 = vunpack.c.l.b16 %v981
          %v992 = vunpack.c.l.b16 %v982
          %v993 = vpack.c.b16 %v990, %v989
          %v994 = vpack.c.b16 %v992, %v991
          %v996 = vsel %vm373, %v993, 0
          %v999 = vsel %vm373, %v994, 0
          %v1002 = vsel %vm380, %v984, 0
          %1004 = vmatpush.bf16.msra.mxu0 0
          %1005 = vmatpush.bf16.msra.mxu0 0
          %1006 = vmatpush.bf16.msra.mxu0 0
          %1007 = vmatpush.bf16.msra.mxu0 0
          %1008 = vmatpush.bf16.msra.mxu0 0
          %1009 = vmatpush.bf16.msra.mxu0 0
          %1010 = vmatpush.bf16.msra.mxu0 0
          %1011 = vmatpush.bf16.msra.mxu0 %v1002
          %1012 = vmatmul.bf16.gmra.mxu0 %v996
          %v1013 = vpop.f32.mrf.mxu0
          %v1014 = vadd.f32 0.0, %v1013
          %v1015 = vpop.f32.mrf.mxu0
          %v1016 = vadd.f32 0.0, %v1015
          %1017 = vmatmul.bf16.gmra.mxu0 %v999
          %v1018 = vpop.f32.mrf.mxu0
          %v1019 = vadd.f32 0.0, %v1018
          %v1020 = vpop.f32.mrf.mxu0
          %v1021 = vadd.f32 0.0, %v1020
          %1022 = vdwg.mxu0
          %v1023 = vadd.f32 %v971, %v1014
          %v1024 = vadd.f32 %v972, %v1016
          %v1025 = vadd.f32 %v973, %v1019
          %v1026 = vadd.f32 %v974, %v1021
          %s1027 = scalar_lea.vmem %s1, 64
          %v1028 = vld [vmem:[%s1027] sm:$0xf]
          %v1029 = vshrl.u32 %v993, 16
          %v1031 = vshll.u32 %v993, 16
          %v1033 = vrot.slane %v1031, 1
          %v1034 = vor.u32 %v1029, %v1033
          %v1035 = vshll.u32 %v994, 16
          %v1037 = vrot.slane %v1035, 1
          %v1038 = vsel %vm357, %v1034, %v1037
          %v1039 = vshrl.u32 %v994, 16
          %v1041 = vor.u32 %v1039, %v1037
          %v1043 = vsel %vm373, %v1038, 0
          %v1046 = vsel %vm373, %v1041, 0
          %v1049 = vsel %vm380, %v1028, 0
          %1051 = vmatpush.bf16.msra.mxu0 0
          %1052 = vmatpush.bf16.msra.mxu0 0
          %1053 = vmatpush.bf16.msra.mxu0 0
          %1054 = vmatpush.bf16.msra.mxu0 0
          %1055 = vmatpush.bf16.msra.mxu0 0
          %1056 = vmatpush.bf16.msra.mxu0 0
          %1057 = vmatpush.bf16.msra.mxu0 0
          %1058 = vmatpush.bf16.msra.mxu0 %v1049
          %1059 = vmatmul.bf16.gmra.mxu0 %v1043
          %v1060 = vpop.f32.mrf.mxu0
          %v1061 = vadd.f32 0.0, %v1060
          %v1062 = vpop.f32.mrf.mxu0
          %v1063 = vadd.f32 0.0, %v1062
          %1064 = vmatmul.bf16.gmra.mxu0 %v1046
          %v1065 = vpop.f32.mrf.mxu0
          %v1066 = vadd.f32 0.0, %v1065
          %v1067 = vpop.f32.mrf.mxu0
          %v1068 = vadd.f32 0.0, %v1067
          %1069 = vdwg.mxu0
          %v1070 = vadd.f32 %v1023, %v1061
          %v1071 = vadd.f32 %v1024, %v1063
          %v1072 = vadd.f32 %v1025, %v1066
          %v1073 = vadd.f32 %v1026, %v1068
          %s1074 = scalar_lea.vmem %s1, 68
          %v1075 = vld [vmem:[%s1074] sm:$0xf]
          %v1076 = vrot.slane %v993, 1
          %v1077 = vrot.slane %v994, 1
          %v1078 = vsel %vm431, %v1076, %v1077
          %v1080 = vsel %vm373, %v1078, 0
          %v1083 = vsel %vm373, %v1077, 0
          %v1086 = vsel %vm380, %v1075, 0
          %1088 = vmatpush.bf16.msra.mxu0 0
          %1089 = vmatpush.bf16.msra.mxu0 0
          %1090 = vmatpush.bf16.msra.mxu0 0
          %1091 = vmatpush.bf16.msra.mxu0 0
          %1092 = vmatpush.bf16.msra.mxu0 0
          %1093 = vmatpush.bf16.msra.mxu0 0
          %1094 = vmatpush.bf16.msra.mxu0 0
          %1095 = vmatpush.bf16.msra.mxu0 %v1086
          %1096 = vmatmul.bf16.gmra.mxu0 %v1080
          %v1097 = vpop.f32.mrf.mxu0
          %v1098 = vadd.f32 0.0, %v1097
          %v1099 = vpop.f32.mrf.mxu0
          %v1100 = vadd.f32 0.0, %v1099
          %1101 = vmatmul.bf16.gmra.mxu0 %v1083
          %v1102 = vpop.f32.mrf.mxu0
          %v1103 = vadd.f32 0.0, %v1102
          %v1104 = vpop.f32.mrf.mxu0
          %v1105 = vadd.f32 0.0, %v1104
          %1106 = vdwg.mxu0
          %v1107 = vadd.f32 %v1070, %v1098
          %v1108 = vadd.f32 %v1071, %v1100
          %v1109 = vadd.f32 %v1072, %v1103
          %v1110 = vadd.f32 %v1073, %v1105
          %s1111 = scalar_lea.vmem %s1, 72
          %v1112 = vld [vmem:[%s1111] sm:$0xf]
          %v1113 = vrot.slane %v1029, 1
          %v1114 = vrot.slane %v1031, 2
          %v1115 = vor.u32 %v1113, %v1114
          %v1116 = vrot.slane %v1039, 1
          %v1117 = vrot.slane %v1035, 2
          %v1118 = vor.u32 %v1116, %v1117
          %v1119 = vsel %vm469, %v1115, %v1118
          %v1121 = vsel %vm373, %v1119, 0
          %v1124 = vsel %vm373, %v1118, 0
          %v1127 = vsel %vm380, %v1112, 0
          %1129 = vmatpush.bf16.msra.mxu0 0
          %1130 = vmatpush.bf16.msra.mxu0 0
          %1131 = vmatpush.bf16.msra.mxu0 0
          %1132 = vmatpush.bf16.msra.mxu0 0
          %1133 = vmatpush.bf16.msra.mxu0 0
          %1134 = vmatpush.bf16.msra.mxu0 0
          %1135 = vmatpush.bf16.msra.mxu0 0
          %1136 = vmatpush.bf16.msra.mxu0 %v1127
          %1137 = vmatmul.bf16.gmra.mxu0 %v1121
          %v1138 = vpop.f32.mrf.mxu0
          %v1139 = vadd.f32 0.0, %v1138
          %v1140 = vpop.f32.mrf.mxu0
          %v1141 = vadd.f32 0.0, %v1140
          %1142 = vmatmul.bf16.gmra.mxu0 %v1124
          %v1143 = vpop.f32.mrf.mxu0
          %v1144 = vadd.f32 0.0, %v1143
          %v1145 = vpop.f32.mrf.mxu0
          %v1146 = vadd.f32 0.0, %v1145
          %1147 = vdwg.mxu0
          %v1148 = vadd.f32 %v1107, %v1139
          %v1149 = vadd.f32 %v1108, %v1141
          %v1150 = vadd.f32 %v1109, %v1144
          %v1151 = vadd.f32 %v1110, %v1146
          %s1152 = scalar_lea.vmem %s1, 76
          %v1153 = vld [vmem:[%s1152] sm:$0xf]
          %v1154 = vrot.slane %v993, 2
          %v1155 = vrot.slane %v994, 2
          %v1156 = vsel %vm511, %v1154, %v1155
          %v1158 = vsel %vm373, %v1156, 0
          %v1161 = vsel %vm373, %v1155, 0
          %v1164 = vsel %vm380, %v1153, 0
          %1166 = vmatpush.bf16.msra.mxu0 0
          %1167 = vmatpush.bf16.msra.mxu0 0
          %1168 = vmatpush.bf16.msra.mxu0 0
          %1169 = vmatpush.bf16.msra.mxu0 0
          %1170 = vmatpush.bf16.msra.mxu0 0
          %1171 = vmatpush.bf16.msra.mxu0 0
          %1172 = vmatpush.bf16.msra.mxu0 0
          %1173 = vmatpush.bf16.msra.mxu0 %v1164
          %1174 = vmatmul.bf16.gmra.mxu0 %v1158
          %v1175 = vpop.f32.mrf.mxu0
          %v1176 = vadd.f32 0.0, %v1175
          %v1177 = vpop.f32.mrf.mxu0
          %v1178 = vadd.f32 0.0, %v1177
          %1179 = vmatmul.bf16.gmra.mxu0 %v1161
          %v1180 = vpop.f32.mrf.mxu0
          %v1181 = vadd.f32 0.0, %v1180
          %v1182 = vpop.f32.mrf.mxu0
          %v1183 = vadd.f32 0.0, %v1182
          %1184 = vdwg.mxu0
          %v1185 = vadd.f32 %v1148, %v1176
          %v1186 = vadd.f32 %v1149, %v1178
          %v1187 = vadd.f32 %v1150, %v1181
          %v1188 = vadd.f32 %v1151, %v1183
          %s1189 = sadd.s32 %s332, 4
          %s1190 = smul.u32 %s1189, 4
          %s1191 = smul.addr %s1190, 4
          %s1192 = scalar_lea.vmem %s329, %s1191
          %v1193 = vld [vmem:[%s1192] sm:$0xf]
          %v1194 = vld [vmem:[%s1192 + $0x4] sm:$0xf]
          %v1195 = vld [vmem:[%s1192 + $0x8] sm:$0xf]
          %v1196 = vld [vmem:[%s1192 + $0xc] sm:$0xf]
          %s1197 = scalar_lea.vmem %s1, 80
          %v1198 = vld [vmem:[%s1197] sm:$0xf]
          %v1203 = vunpack.c.l.b16 %v1193
          %v1204 = vunpack.c.l.b16 %v1194
          %v1205 = vunpack.c.l.b16 %v1195
          %v1206 = vunpack.c.l.b16 %v1196
          %v1207 = vpack.c.b16 %v1204, %v1203
          %v1208 = vpack.c.b16 %v1206, %v1205
          %v1210 = vsel %vm373, %v1207, 0
          %v1213 = vsel %vm373, %v1208, 0
          %v1216 = vsel %vm380, %v1198, 0
          %1218 = vmatpush.bf16.msra.mxu0 0
          %1219 = vmatpush.bf16.msra.mxu0 0
          %1220 = vmatpush.bf16.msra.mxu0 0
          %1221 = vmatpush.bf16.msra.mxu0 0
          %1222 = vmatpush.bf16.msra.mxu0 0
          %1223 = vmatpush.bf16.msra.mxu0 0
          %1224 = vmatpush.bf16.msra.mxu0 0
          %1225 = vmatpush.bf16.msra.mxu0 %v1216
          %1226 = vmatmul.bf16.gmra.mxu0 %v1210
          %v1227 = vpop.f32.mrf.mxu0
          %v1228 = vadd.f32 0.0, %v1227
          %v1229 = vpop.f32.mrf.mxu0
          %v1230 = vadd.f32 0.0, %v1229
          %1231 = vmatmul.bf16.gmra.mxu0 %v1213
          %v1232 = vpop.f32.mrf.mxu0
          %v1233 = vadd.f32 0.0, %v1232
          %v1234 = vpop.f32.mrf.mxu0
          %v1235 = vadd.f32 0.0, %v1234
          %1236 = vdwg.mxu0
          %v1237 = vadd.f32 %v1185, %v1228
          %v1238 = vadd.f32 %v1186, %v1230
          %v1239 = vadd.f32 %v1187, %v1233
          %v1240 = vadd.f32 %v1188, %v1235
          %s1241 = scalar_lea.vmem %s1, 84
          %v1242 = vld [vmem:[%s1241] sm:$0xf]
          %v1243 = vshrl.u32 %v1207, 16
          %v1245 = vshll.u32 %v1207, 16
          %v1247 = vrot.slane %v1245, 1
          %v1248 = vor.u32 %v1243, %v1247
          %v1249 = vshll.u32 %v1208, 16
          %v1251 = vrot.slane %v1249, 1
          %v1252 = vsel %vm357, %v1248, %v1251
          %v1253 = vshrl.u32 %v1208, 16
          %v1255 = vor.u32 %v1253, %v1251
          %v1257 = vsel %vm373, %v1252, 0
          %v1260 = vsel %vm373, %v1255, 0
          %v1263 = vsel %vm380, %v1242, 0
          %1265 = vmatpush.bf16.msra.mxu0 0
          %1266 = vmatpush.bf16.msra.mxu0 0
          %1267 = vmatpush.bf16.msra.mxu0 0
          %1268 = vmatpush.bf16.msra.mxu0 0
          %1269 = vmatpush.bf16.msra.mxu0 0
          %1270 = vmatpush.bf16.msra.mxu0 0
          %1271 = vmatpush.bf16.msra.mxu0 0
          %1272 = vmatpush.bf16.msra.mxu0 %v1263
          %1273 = vmatmul.bf16.gmra.mxu0 %v1257
          %v1274 = vpop.f32.mrf.mxu0
          %v1275 = vadd.f32 0.0, %v1274
          %v1276 = vpop.f32.mrf.mxu0
          %v1277 = vadd.f32 0.0, %v1276
          %1278 = vmatmul.bf16.gmra.mxu0 %v1260
          %v1279 = vpop.f32.mrf.mxu0
          %v1280 = vadd.f32 0.0, %v1279
          %v1281 = vpop.f32.mrf.mxu0
          %v1282 = vadd.f32 0.0, %v1281
          %1283 = vdwg.mxu0
          %v1284 = vadd.f32 %v1237, %v1275
          %v1285 = vadd.f32 %v1238, %v1277
          %v1286 = vadd.f32 %v1239, %v1280
          %v1287 = vadd.f32 %v1240, %v1282
          %s1288 = scalar_lea.vmem %s1, 88
          %v1289 = vld [vmem:[%s1288] sm:$0xf]
          %v1290 = vrot.slane %v1207, 1
          %v1291 = vrot.slane %v1208, 1
          %v1292 = vsel %vm431, %v1290, %v1291
          %v1294 = vsel %vm373, %v1292, 0
          %v1297 = vsel %vm373, %v1291, 0
          %v1300 = vsel %vm380, %v1289, 0
          %1302 = vmatpush.bf16.msra.mxu0 0
          %1303 = vmatpush.bf16.msra.mxu0 0
          %1304 = vmatpush.bf16.msra.mxu0 0
          %1305 = vmatpush.bf16.msra.mxu0 0
          %1306 = vmatpush.bf16.msra.mxu0 0
          %1307 = vmatpush.bf16.msra.mxu0 0
          %1308 = vmatpush.bf16.msra.mxu0 0
          %1309 = vmatpush.bf16.msra.mxu0 %v1300
          %1310 = vmatmul.bf16.gmra.mxu0 %v1294
          %v1311 = vpop.f32.mrf.mxu0
          %v1312 = vadd.f32 0.0, %v1311
          %v1313 = vpop.f32.mrf.mxu0
          %v1314 = vadd.f32 0.0, %v1313
          %1315 = vmatmul.bf16.gmra.mxu0 %v1297
          %v1316 = vpop.f32.mrf.mxu0
          %v1317 = vadd.f32 0.0, %v1316
          %v1318 = vpop.f32.mrf.mxu0
          %v1319 = vadd.f32 0.0, %v1318
          %1320 = vdwg.mxu0
          %v1321 = vadd.f32 %v1284, %v1312
          %v1322 = vadd.f32 %v1285, %v1314
          %v1323 = vadd.f32 %v1286, %v1317
          %v1324 = vadd.f32 %v1287, %v1319
          %s1325 = scalar_lea.vmem %s1, 92
          %v1326 = vld [vmem:[%s1325] sm:$0xf]
          %v1327 = vrot.slane %v1243, 1
          %v1328 = vrot.slane %v1245, 2
          %v1329 = vor.u32 %v1327, %v1328
          %v1330 = vrot.slane %v1253, 1
          %v1331 = vrot.slane %v1249, 2
          %v1332 = vor.u32 %v1330, %v1331
          %v1333 = vsel %vm469, %v1329, %v1332
          %v1335 = vsel %vm373, %v1333, 0
          %v1338 = vsel %vm373, %v1332, 0
          %v1341 = vsel %vm380, %v1326, 0
          %1343 = vmatpush.bf16.msra.mxu0 0
          %1344 = vmatpush.bf16.msra.mxu0 0
          %1345 = vmatpush.bf16.msra.mxu0 0
          %1346 = vmatpush.bf16.msra.mxu0 0
          %1347 = vmatpush.bf16.msra.mxu0 0
          %1348 = vmatpush.bf16.msra.mxu0 0
          %1349 = vmatpush.bf16.msra.mxu0 0
          %1350 = vmatpush.bf16.msra.mxu0 %v1341
          %1351 = vmatmul.bf16.gmra.mxu0 %v1335
          %v1352 = vpop.f32.mrf.mxu0
          %v1353 = vadd.f32 0.0, %v1352
          %v1354 = vpop.f32.mrf.mxu0
          %v1355 = vadd.f32 0.0, %v1354
          %1356 = vmatmul.bf16.gmra.mxu0 %v1338
          %v1357 = vpop.f32.mrf.mxu0
          %v1358 = vadd.f32 0.0, %v1357
          %v1359 = vpop.f32.mrf.mxu0
          %v1360 = vadd.f32 0.0, %v1359
          %1361 = vdwg.mxu0
          %v1362 = vadd.f32 %v1321, %v1353
          %v1363 = vadd.f32 %v1322, %v1355
          %v1364 = vadd.f32 %v1323, %v1358
          %v1365 = vadd.f32 %v1324, %v1360
          %s1366 = scalar_lea.vmem %s1, 96
          %v1367 = vld [vmem:[%s1366] sm:$0xf]
          %v1368 = vrot.slane %v1207, 2
          %v1369 = vrot.slane %v1208, 2
          %v1370 = vsel %vm511, %v1368, %v1369
          %v1372 = vsel %vm373, %v1370, 0
          %v1375 = vsel %vm373, %v1369, 0
          %v1378 = vsel %vm380, %v1367, 0
          %1380 = vmatpush.bf16.msra.mxu0 0
          %1381 = vmatpush.bf16.msra.mxu0 0
          %1382 = vmatpush.bf16.msra.mxu0 0
          %1383 = vmatpush.bf16.msra.mxu0 0
          %1384 = vmatpush.bf16.msra.mxu0 0
          %1385 = vmatpush.bf16.msra.mxu0 0
          %1386 = vmatpush.bf16.msra.mxu0 0
          %1387 = vmatpush.bf16.msra.mxu0 %v1378
          %1388 = vmatmul.bf16.gmra.mxu0 %v1372
          %v1389 = vpop.f32.mrf.mxu0
          %v1390 = vadd.f32 0.0, %v1389
          %v1391 = vpop.f32.mrf.mxu0
          %v1392 = vadd.f32 0.0, %v1391
          %1393 = vmatmul.bf16.gmra.mxu0 %v1375
          %v1394 = vpop.f32.mrf.mxu0
          %v1395 = vadd.f32 0.0, %v1394
          %v1396 = vpop.f32.mrf.mxu0
          %v1397 = vadd.f32 0.0, %v1396
          %1398 = vdwg.mxu0
          %v1399 = vadd.f32 %v1362, %v1390
          %v1400 = vadd.f32 %v1363, %v1392
          %v1401 = vadd.f32 %v1364, %v1395
          %v1402 = vadd.f32 %v1365, %v1397
          %v1403 = vld [vmem:[%s2] sm:$0x1]
          %v1405 = vperm.slane %v1403, 0
          %v1407 = vmul.f32 %v1399, %v1405
          %v1408 = vmul.f32 %v1400, %v1405
          %v1409 = vmul.f32 %v1401, %v1405
          %v1410 = vmul.f32 %v1402, %v1405
          %v1411 = vld [vmem:[%s3] sm:$0x1]
          %v1413 = vperm.slane %v1411, 0
          %v1415 = vadd.f32 %v1407, %v1413
          %v1416 = vadd.f32 %v1408, %v1413
          %v1417 = vadd.f32 %v1409, %v1413
          %v1418 = vadd.f32 %v1410, %v1413
          %v1419 = vmax.f32 %v1415, 0.0
          %v1420 = vmax.f32 %v1416, 0.0
          %v1421 = vmax.f32 %v1417, 0.0
          %v1422 = vmax.f32 %v1418, 0.0
          %v1423 = vpack.c.bf16 %v1419, %v1419
          %v1424 = vpack.c.bf16 %v1420, %v1420
          %v1425 = vpack.c.bf16 %v1421, %v1421
          %v1426 = vpack.c.bf16 %v1422, %v1422
          %s1427 = smul.addr %s337, 4
          %s1428 = scalar_lea.vmem [#allocation2], %s1427
          %1429 = vst [vmem:[%s1428] sm:$0xf] %v1423
          %1430 = vst [vmem:[%s1428 + $0x4] sm:$0xf] %v1424
          %1431 = vst [vmem:[%s1428 + $0x8] sm:$0xf] %v1425
          %1432 = vst [vmem:[%s1428 + $0xc] sm:$0x3] %v1426
        $region61: #{convnet_forward.1} parent=55 // loop_footer
          %s336 = sadd.s32 1, %s332
        $region62: #{convnet_forward.1} parent=55 // loop_footer_branch
          %331 = sbr.rel target = $region58
        $region63: #{convnet_forward.1} parent=55 // loop_exit
          _
        %v1433 = vlaneseq
        %v1434 = vshrl.u32 %v1433, 7
        %v1435 = vadd.s32 %v1434, 8
        %v1436 = vlaneseq
        %v1437 = vand.u32 %v1436, 127
        %v1438 = vmul.u32 %v1434, 2
        %v1439 = vmul.u32 %v1435, 2
        %vm1440 = vcmp.eq.s32.totalorder %v1437, %v1438
        %vm1441 = vcmp.eq.s32.totalorder %v1437, %v1439
        %v1442 = vsel %vm1440, 1, 0
        %v1443 = vsel %vm1441, 1, 0
        %v1444 = vcvt.s32.f32 %v1442
        %v1445 = vcvt.s32.f32 %v1443
        %v1446 = vpack.c.bf16 %v1445, %v1444
        loop: start=0, step=1, limit=13
        $region64: #{convnet_forward.1} parent=55 // loop_pre_header
          _
        $region65: #{convnet_forward.1} parent=55 // loop_header
          %s1448 = sphi 0, %s1452
          %p1449 = scmp.ge.s32.totalorder %s1448, 13
        $region66: #{convnet_forward.1} parent=55 // loop_header_branch
          %1451 = sbr.rel (%p1449) target = $region70
        $region67: #{convnet_forward.1} parent=55 // loop_body
          %s1453 = smul.u32 %s1448, 2
          %s1454 = smul.u32 %s1453, 4
          %s1455 = smul.addr %s1454, 4
          %s1456 = scalar_lea.vmem [#allocation2], %s1455
          %v1457 = vld [vmem:[%s1456] sm:$0xf]
          %v1458 = vld [vmem:[%s1456 + $0x4] sm:$0xf]
          %v1459 = vld [vmem:[%s1456 + $0x8] sm:$0xf]
          %v1460 = vld [vmem:[%s1456 + $0xc] sm:$0x3]
          %s1461 = sadd.s32 %s1453, 1
          %s1462 = smul.u32 %s1461, 4
          %s1463 = smul.addr %s1462, 4
          %s1464 = scalar_lea.vmem [#allocation2], %s1463
          %v1465 = vld [vmem:[%s1464] sm:$0xf]
          %v1466 = vld [vmem:[%s1464 + $0x4] sm:$0xf]
          %v1467 = vld [vmem:[%s1464 + $0x8] sm:$0xf]
          %v1468 = vld [vmem:[%s1464 + $0xc] sm:$0x3]
          %s1469 = sadd.s32 %s1453, 2
          %s1470 = smul.u32 %s1469, 4
          %s1471 = smul.addr %s1470, 4
          %s1472 = scalar_lea.vmem [#allocation2], %s1471
          %v1473 = vld [vmem:[%s1472] sm:$0xf]
          %v1474 = vld [vmem:[%s1472 + $0x4] sm:$0xf]
          %v1475 = vld [vmem:[%s1472 + $0x8] sm:$0xf]
          %v1476 = vld [vmem:[%s1472 + $0xc] sm:$0x3]
          %v1477 = vunpack.c.l.bf16 %v1457
          %v1478 = vunpack.c.l.bf16 %v1458
          %v1479 = vunpack.c.l.bf16 %v1459
          %v1480 = vunpack.c.l.bf16 %v1460
          %v1481 = vunpack.c.l.bf16 %v1465
          %v1482 = vunpack.c.l.bf16 %v1466
          %v1483 = vunpack.c.l.bf16 %v1467
          %v1484 = vunpack.c.l.bf16 %v1468
          %v1485 = vmax.f32 %v1477, %v1481
          %v1486 = vmax.f32 %v1478, %v1482
          %v1487 = vmax.f32 %v1479, %v1483
          %v1488 = vmax.f32 %v1480, %v1484
          %v1489 = vpack.c.bf16 %v1485, %v1485
          %v1490 = vpack.c.bf16 %v1486, %v1486
          %v1491 = vpack.c.bf16 %v1487, %v1487
          %v1492 = vpack.c.bf16 %v1488, %v1488
          %v1493 = vunpack.c.l.bf16 %v1489
          %v1494 = vunpack.c.l.bf16 %v1490
          %v1495 = vunpack.c.l.bf16 %v1491
          %v1496 = vunpack.c.l.bf16 %v1492
          %v1497 = vunpack.c.l.bf16 %v1473
          %v1498 = vunpack.c.l.bf16 %v1474
          %v1499 = vunpack.c.l.bf16 %v1475
          %v1500 = vunpack.c.l.bf16 %v1476
          %v1501 = vmax.f32 %v1493, %v1497
          %v1502 = vmax.f32 %v1494, %v1498
          %v1503 = vmax.f32 %v1495, %v1499
          %v1504 = vmax.f32 %v1496, %v1500
          %v1505 = vpack.c.bf16 %v1501, %v1501
          %v1506 = vpack.c.bf16 %v1502, %v1502
          %v1507 = vpack.c.bf16 %v1503, %v1503
          %v1508 = vpack.c.bf16 %v1504, %v1504
          %v1509 = vunpack.c.l.bf16 %v1505
          %v1510 = vunpack.c.l.bf16 %v1506
          %v1511 = vunpack.c.l.bf16 %v1507
          %v1512 = vunpack.c.l.bf16 %v1508
          %vm1517 = vcmask 1046528
          %v1518 = vrot.slane %v1509, 1
          %v1519 = vrot.slane %v1510, 1
          %v1520 = vsel %vm1517, %v1518, %v1519
          %v1521 = vrot.slane %v1511, 1
          %v1522 = vsel %vm1517, %v1519, %v1521
          %v1523 = vrot.slane %v1512, 1
          %v1524 = vsel %vm1517, %v1521, %v1523
          %v1529 = vmax.f32 %v1509, %v1520
          %v1530 = vmax.f32 %v1510, %v1522
          %v1531 = vmax.f32 %v1511, %v1524
          %v1532 = vmax.f32 %v1512, %v1523
          %v1533 = vpack.c.bf16 %v1529, %v1529
          %v1534 = vpack.c.bf16 %v1530, %v1530
          %v1535 = vpack.c.bf16 %v1531, %v1531
          %v1536 = vpack.c.bf16 %v1532, %v1532
          %v1537 = vunpack.c.l.bf16 %v1533
          %v1538 = vunpack.c.l.bf16 %v1534
          %v1539 = vunpack.c.l.bf16 %v1535
          %v1540 = vunpack.c.l.bf16 %v1536
          %vm1541 = vcmask 1045504
          %v1542 = vrot.slane %v1509, 2
          %v1543 = vrot.slane %v1510, 2
          %v1544 = vsel %vm1541, %v1542, %v1543
          %v1545 = vrot.slane %v1511, 2
          %v1546 = vsel %vm1541, %v1543, %v1545
          %v1547 = vrot.slane %v1512, 2
          %v1548 = vsel %vm1541, %v1545, %v1547
          %v1553 = vmax.f32 %v1537, %v1544
          %v1554 = vmax.f32 %v1538, %v1546
          %v1555 = vmax.f32 %v1539, %v1548
          %v1556 = vmax.f32 %v1540, %v1547
          %v1557 = vpack.c.bf16 %v1554, %v1553
          %v1558 = vpack.c.bf16 %v1556, %v1555
          %vm1559 = vcmask 211968
          %v1561 = vsel %vm1559, %v1446, 0
          %vm1563 = vcmask 1044480
          %v1565 = vsel %vm1563, %v1558, 0
          %1567 = vmatpush.bf16.msra.mxu0 0
          %1568 = vmatpush.bf16.msra.mxu0 0
          %1569 = vmatpush.bf16.msra.mxu0 0
          %1570 = vmatpush.bf16.msra.mxu0 0
          %1571 = vmatpush.bf16.msra.mxu0 0
          %1572 = vmatpush.bf16.msra.mxu0 0
          %1573 = vmatpush.bf16.msra.mxu0 %v1565
          %1574 = vmatpush.bf16.msra.mxu0 %v1557
          %1575 = vmatmul.bf16.gmra.mxu0 %v1561
          %v1576 = vpop.f32.mrf.mxu0
          %v1577 = vadd.f32 0.0, %v1576
          %v1578 = vpop.f32.mrf.mxu0
          %v1579 = vadd.f32 0.0, %v1578
          %1580 = vdwg.mxu0
          %v1581 = vpack.c.bf16 %v1577, %v1577
          %v1582 = vpack.c.bf16 %v1579, %v1579
          %s1583 = smul.addr %s1453, 4
          %s1584 = scalar_lea.vmem [#allocation3], %s1583
          %1585 = vst [vmem:[%s1584] sm:$0xf] %v1581
          %vm1586 = vcmask 1042432
          %vm1587 = vsmask.f32 2304
          %vm1588 = vmand %vm1586, %vm1587
          %v1589 = vld [vmem:[%s1584 + $0x4] sm:$0x7]
          %v1590 = vsel %vm1588, %v1582, %v1589
          %1591 = vst [vmem:[%s1584 + $0x4] sm:$0x7] %v1590
        $region68: #{convnet_forward.1} parent=55 // loop_footer
          %s1452 = sadd.s32 1, %s1448
        $region69: #{convnet_forward.1} parent=55 // loop_footer_branch
          %1447 = sbr.rel target = $region65
        $region70: #{convnet_forward.1} parent=55 // loop_exit
          _
        loop: start=0, step=1, limit=9
        $region71: #{convnet_forward.1} parent=55 // loop_pre_header
          _
        $region72: #{convnet_forward.1} parent=55 // loop_header
          %s1593 = sphi 0, %s1597
          %p1594 = scmp.ge.s32.totalorder %s1593, 9
        $region73: #{convnet_forward.1} parent=55 // loop_header_branch
          %1596 = sbr.rel (%p1594) target = $region77
        $region74: #{convnet_forward.1} parent=55 // loop_body
          %s1598 = smul.u32 %s1593, 2
          %s1599 = smul.addr %s1598, 4
          %s1600 = scalar_lea.vmem [#allocation3], %s1599
          %v1601 = vld [vmem:[%s1600] sm:$0xf]
          %v1602 = vld [vmem:[%s1600 + $0x4] sm:$0x7]
          %v1603 = vld [vmem:[%s4] sm:$0xf]
          %v1604 = vld [vmem:[%s4 + $0x4] sm:$0xf]
          %v1605 = vld [vmem:[%s4 + $0x8] sm:$0xf]
          %v1606 = vld [vmem:[%s4 + $0xc] sm:$0xf]
          %v1607 = vld [vmem:[%s4 + $0x10] sm:$0xf]
          %v1608 = vld [vmem:[%s4 + $0x14] sm:$0xf]
          %v1609 = vld [vmem:[%s4 + $0x18] sm:$0xf]
          %v1610 = vld [vmem:[%s4 + $0x1c] sm:$0xf]
          %v1611 = vld [vmem:[%s4 + $0x20] sm:$0xf]
          %v1612 = vld [vmem:[%s4 + $0x24] sm:$0xf]
          %v1613 = vld [vmem:[%s4 + $0x28] sm:$0xf]
          %v1614 = vld [vmem:[%s4 + $0x2c] sm:$0xf]
          %v1615 = vld [vmem:[%s4 + $0x30] sm:$0xf]
          %v1616 = vld [vmem:[%s4 + $0x34] sm:$0xf]
          %v1617 = vld [vmem:[%s4 + $0x38] sm:$0xf]
          %v1618 = vld [vmem:[%s4 + $0x3c] sm:$0xf]
          %s1619 = scalar_lea.vmem %s4, 64
          %v1620 = vld [vmem:[%s1619] sm:$0xf]
          %v1621 = vld [vmem:[%s1619 + $0x4] sm:$0xf]
          %v1622 = vld [vmem:[%s1619 + $0x8] sm:$0xf]
          %v1623 = vld [vmem:[%s1619 + $0xc] sm:$0xf]
          %v1624 = vld [vmem:[%s1619 + $0x10] sm:$0xf]
          %v1625 = vld [vmem:[%s1619 + $0x14] sm:$0xf]
          %v1626 = vld [vmem:[%s1619 + $0x18] sm:$0xf]
          %v1627 = vld [vmem:[%s1619 + $0x1c] sm:$0xf]
          %v1628 = vld [vmem:[%s1619 + $0x20] sm:$0xf]
          %v1629 = vld [vmem:[%s1619 + $0x24] sm:$0xf]
          %v1630 = vld [vmem:[%s1619 + $0x28] sm:$0xf]
          %v1631 = vld [vmem:[%s1619 + $0x2c] sm:$0xf]
          %v1632 = vld [vmem:[%s1619 + $0x30] sm:$0xf]
          %v1633 = vld [vmem:[%s1619 + $0x34] sm:$0xf]
          %v1634 = vld [vmem:[%s1619 + $0x38] sm:$0xf]
          %v1635 = vld [vmem:[%s1619 + $0x3c] sm:$0xf]
          %v1638 = vunpack.c.l.b16 %v1601
          %v1639 = vunpack.c.l.b16 %v1602
          %v1640 = vpack.c.b16 %v1639, %v1638
          %v1642 = vshrl.u32 %v1640, 16
          %v1644 = vshll.u32 %v1640, 16
          %v1646 = vrot.slane %v1644, 1
          %v1647 = vor.u32 %v1642, %v1646
          %v1665 = vunpack.c.l.b16 %v1620
          %v1666 = vunpack.c.l.b16 %v1621
          %v1667 = vunpack.c.l.b16 %v1622
          %v1668 = vunpack.c.l.b16 %v1623
          %v1669 = vunpack.c.l.b16 %v1624
          %v1670 = vunpack.c.l.b16 %v1625
          %v1671 = vunpack.c.l.b16 %v1626
          %v1672 = vunpack.c.l.b16 %v1627
          %v1673 = vunpack.c.l.b16 %v1628
          %v1674 = vunpack.c.l.b16 %v1629
          %v1675 = vunpack.c.l.b16 %v1630
          %v1676 = vunpack.c.l.b16 %v1631
          %v1677 = vunpack.c.l.b16 %v1632
          %v1678 = vunpack.c.l.b16 %v1633
          %v1679 = vunpack.c.l.b16 %v1634
          %v1680 = vunpack.c.l.b16 %v1635
          %v1681 = vpack.c.b16 %v1666, %v1665
          %v1682 = vpack.c.b16 %v1668, %v1667
          %v1683 = vpack.c.b16 %v1670, %v1669
          %v1684 = vpack.c.b16 %v1672, %v1671
          %v1685 = vpack.c.b16 %v1674, %v1673
          %v1686 = vpack.c.b16 %v1676, %v1675
          %v1687 = vpack.c.b16 %v1678, %v1677
          %v1688 = vpack.c.b16 %v1680, %v1679
          %1697 = vmatpush.bf16.msra.mxu0 %v1688
          %1698 = vmatpush.bf16.msra.mxu0 %v1687
          %1699 = vmatpush.bf16.msra.mxu0 %v1686
          %1700 = vmatpush.bf16.msra.mxu0 %v1685
          %1701 = vmatpush.bf16.msra.mxu0 %v1684
          %1702 = vmatpush.bf16.msra.mxu0 %v1683
          %1703 = vmatpush.bf16.msra.mxu0 %v1682
          %1704 = vmatpush.bf16.msra.mxu0 %v1681
          %1705 = vmatmul.bf16.gmra.mxu0 %v1647
          %v1706 = vpop.f32.mrf.mxu0
          %v1707 = vadd.f32 0.0, %v1706
          %v1708 = vpop.f32.mrf.mxu0
          %v1709 = vadd.f32 0.0, %v1708
          %1710 = vdwg.mxu0
          %v1728 = vunpack.c.l.b16 %v1603
          %v1729 = vunpack.c.l.b16 %v1604
          %v1730 = vunpack.c.l.b16 %v1605
          %v1731 = vunpack.c.l.b16 %v1606
          %v1732 = vunpack.c.l.b16 %v1607
          %v1733 = vunpack.c.l.b16 %v1608
          %v1734 = vunpack.c.l.b16 %v1609
          %v1735 = vunpack.c.l.b16 %v1610
          %v1736 = vunpack.c.l.b16 %v1611
          %v1737 = vunpack.c.l.b16 %v1612
          %v1738 = vunpack.c.l.b16 %v1613
          %v1739 = vunpack.c.l.b16 %v1614
          %v1740 = vunpack.c.l.b16 %v1615
          %v1741 = vunpack.c.l.b16 %v1616
          %v1742 = vunpack.c.l.b16 %v1617
          %v1743 = vunpack.c.l.b16 %v1618
          %v1744 = vpack.c.b16 %v1729, %v1728
          %v1745 = vpack.c.b16 %v1731, %v1730
          %v1746 = vpack.c.b16 %v1733, %v1732
          %v1747 = vpack.c.b16 %v1735, %v1734
          %v1748 = vpack.c.b16 %v1737, %v1736
          %v1749 = vpack.c.b16 %v1739, %v1738
          %v1750 = vpack.c.b16 %v1741, %v1740
          %v1751 = vpack.c.b16 %v1743, %v1742
          %1760 = vmatpush.bf16.msra.mxu0 %v1751
          %1761 = vmatpush.bf16.msra.mxu0 %v1750
          %1762 = vmatpush.bf16.msra.mxu0 %v1749
          %1763 = vmatpush.bf16.msra.mxu0 %v1748
          %1764 = vmatpush.bf16.msra.mxu0 %v1747
          %1765 = vmatpush.bf16.msra.mxu0 %v1746
          %1766 = vmatpush.bf16.msra.mxu0 %v1745
          %1767 = vmatpush.bf16.msra.mxu0 %v1744
          %1768 = vmatmul.bf16.gmra.mxu0 %v1640
          %v1769 = vpop.f32.mrf.mxu0
          %v1770 = vadd.f32 %v1707, %v1769
          %v1771 = vpop.f32.mrf.mxu0
          %v1772 = vadd.f32 %v1709, %v1771
          %1773 = vdwg.mxu0
          %s1774 = scalar_lea.vmem %s4, 128
          %v1775 = vld [vmem:[%s1774] sm:$0xf]
          %v1776 = vld [vmem:[%s1774 + $0x4] sm:$0xf]
          %v1777 = vld [vmem:[%s1774 + $0x8] sm:$0xf]
          %v1778 = vld [vmem:[%s1774 + $0xc] sm:$0xf]
          %v1779 = vld [vmem:[%s1774 + $0x10] sm:$0xf]
          %v1780 = vld [vmem:[%s1774 + $0x14] sm:$0xf]
          %v1781 = vld [vmem:[%s1774 + $0x18] sm:$0xf]
          %v1782 = vld [vmem:[%s1774 + $0x1c] sm:$0xf]
          %v1783 = vld [vmem:[%s1774 + $0x20] sm:$0xf]
          %v1784 = vld [vmem:[%s1774 + $0x24] sm:$0xf]
          %v1785 = vld [vmem:[%s1774 + $0x28] sm:$0xf]
          %v1786 = vld [vmem:[%s1774 + $0x2c] sm:$0xf]
          %v1787 = vld [vmem:[%s1774 + $0x30] sm:$0xf]
          %v1788 = vld [vmem:[%s1774 + $0x34] sm:$0xf]
          %v1789 = vld [vmem:[%s1774 + $0x38] sm:$0xf]
          %v1790 = vld [vmem:[%s1774 + $0x3c] sm:$0xf]
          %v1791 = vrot.slane %v1640, 1
          %v1809 = vunpack.c.l.b16 %v1775
          %v1810 = vunpack.c.l.b16 %v1776
          %v1811 = vunpack.c.l.b16 %v1777
          %v1812 = vunpack.c.l.b16 %v1778
          %v1813 = vunpack.c.l.b16 %v1779
          %v1814 = vunpack.c.l.b16 %v1780
          %v1815 = vunpack.c.l.b16 %v1781
          %v1816 = vunpack.c.l.b16 %v1782
          %v1817 = vunpack.c.l.b16 %v1783
          %v1818 = vunpack.c.l.b16 %v1784
          %v1819 = vunpack.c.l.b16 %v1785
          %v1820 = vunpack.c.l.b16 %v1786
          %v1821 = vunpack.c.l.b16 %v1787
          %v1822 = vunpack.c.l.b16 %v1788
          %v1823 = vunpack.c.l.b16 %v1789
          %v1824 = vunpack.c.l.b16 %v1790
          %v1825 = vpack.c.b16 %v1810, %v1809
          %v1826 = vpack.c.b16 %v1812, %v1811
          %v1827 = vpack.c.b16 %v1814, %v1813
          %v1828 = vpack.c.b16 %v1816, %v1815
          %v1829 = vpack.c.b16 %v1818, %v1817
          %v1830 = vpack.c.b16 %v1820, %v1819
          %v1831 = vpack.c.b16 %v1822, %v1821
          %v1832 = vpack.c.b16 %v1824, %v1823
          %1841 = vmatpush.bf16.msra.mxu0 %v1832
          %1842 = vmatpush.bf16.msra.mxu0 %v1831
          %1843 = vmatpush.bf16.msra.mxu0 %v1830
          %1844 = vmatpush.bf16.msra.mxu0 %v1829
          %1845 = vmatpush.bf16.msra.mxu0 %v1828
          %1846 = vmatpush.bf16.msra.mxu0 %v1827
          %1847 = vmatpush.bf16.msra.mxu0 %v1826
          %1848 = vmatpush.bf16.msra.mxu0 %v1825
          %1849 = vmatmul.bf16.gmra.mxu0 %v1791
          %v1850 = vpop.f32.mrf.mxu0
          %v1851 = vadd.f32 0.0, %v1850
          %v1852 = vpop.f32.mrf.mxu0
          %v1853 = vadd.f32 0.0, %v1852
          %1854 = vdwg.mxu0
          %v1855 = vadd.f32 %v1770, %v1851
          %v1856 = vadd.f32 %v1772, %v1853
          %s1857 = scalar_lea.vmem %s4, 192
          %v1858 = vld [vmem:[%s1857] sm:$0xf]
          %v1859 = vld [vmem:[%s1857 + $0x4] sm:$0xf]
          %v1860 = vld [vmem:[%s1857 + $0x8] sm:$0xf]
          %v1861 = vld [vmem:[%s1857 + $0xc] sm:$0xf]
          %v1862 = vld [vmem:[%s1857 + $0x10] sm:$0xf]
          %v1863 = vld [vmem:[%s1857 + $0x14] sm:$0xf]
          %v1864 = vld [vmem:[%s1857 + $0x18] sm:$0xf]
          %v1865 = vld [vmem:[%s1857 + $0x1c] sm:$0xf]
          %v1866 = vld [vmem:[%s1857 + $0x20] sm:$0xf]
          %v1867 = vld [vmem:[%s1857 + $0x24] sm:$0xf]
          %v1868 = vld [vmem:[%s1857 + $0x28] sm:$0xf]
          %v1869 = vld [vmem:[%s1857 + $0x2c] sm:$0xf]
          %v1870 = vld [vmem:[%s1857 + $0x30] sm:$0xf]
          %v1871 = vld [vmem:[%s1857 + $0x34] sm:$0xf]
          %v1872 = vld [vmem:[%s1857 + $0x38] sm:$0xf]
          %v1873 = vld [vmem:[%s1857 + $0x3c] sm:$0xf]
          %v1874 = vrot.slane %v1642, 1
          %v1875 = vrot.slane %v1644, 2
          %v1876 = vor.u32 %v1874, %v1875
          %v1894 = vunpack.c.l.b16 %v1858
          %v1895 = vunpack.c.l.b16 %v1859
          %v1896 = vunpack.c.l.b16 %v1860
          %v1897 = vunpack.c.l.b16 %v1861
          %v1898 = vunpack.c.l.b16 %v1862
          %v1899 = vunpack.c.l.b16 %v1863
          %v1900 = vunpack.c.l.b16 %v1864
          %v1901 = vunpack.c.l.b16 %v1865
          %v1902 = vunpack.c.l.b16 %v1866
          %v1903 = vunpack.c.l.b16 %v1867
          %v1904 = vunpack.c.l.b16 %v1868
          %v1905 = vunpack.c.l.b16 %v1869
          %v1906 = vunpack.c.l.b16 %v1870
          %v1907 = vunpack.c.l.b16 %v1871
          %v1908 = vunpack.c.l.b16 %v1872
          %v1909 = vunpack.c.l.b16 %v1873
          %v1910 = vpack.c.b16 %v1895, %v1894
          %v1911 = vpack.c.b16 %v1897, %v1896
          %v1912 = vpack.c.b16 %v1899, %v1898
          %v1913 = vpack.c.b16 %v1901, %v1900
          %v1914 = vpack.c.b16 %v1903, %v1902
          %v1915 = vpack.c.b16 %v1905, %v1904
          %v1916 = vpack.c.b16 %v1907, %v1906
          %v1917 = vpack.c.b16 %v1909, %v1908
          %1926 = vmatpush.bf16.msra.mxu0 %v1917
          %1927 = vmatpush.bf16.msra.mxu0 %v1916
          %1928 = vmatpush.bf16.msra.mxu0 %v1915
          %1929 = vmatpush.bf16.msra.mxu0 %v1914
          %1930 = vmatpush.bf16.msra.mxu0 %v1913
          %1931 = vmatpush.bf16.msra.mxu0 %v1912
          %1932 = vmatpush.bf16.msra.mxu0 %v1911
          %1933 = vmatpush.bf16.msra.mxu0 %v1910
          %1934 = vmatmul.bf16.gmra.mxu0 %v1876
          %v1935 = vpop.f32.mrf.mxu0
          %v1936 = vadd.f32 0.0, %v1935
          %v1937 = vpop.f32.mrf.mxu0
          %v1938 = vadd.f32 0.0, %v1937
          %1939 = vdwg.mxu0
          %v1940 = vadd.f32 %v1855, %v1936
          %v1941 = vadd.f32 %v1856, %v1938
          %s1942 = scalar_lea.vmem %s4, 256
          %v1943 = vld [vmem:[%s1942] sm:$0xf]
          %v1944 = vld [vmem:[%s1942 + $0x4] sm:$0xf]
          %v1945 = vld [vmem:[%s1942 + $0x8] sm:$0xf]
          %v1946 = vld [vmem:[%s1942 + $0xc] sm:$0xf]
          %v1947 = vld [vmem:[%s1942 + $0x10] sm:$0xf]
          %v1948 = vld [vmem:[%s1942 + $0x14] sm:$0xf]
          %v1949 = vld [vmem:[%s1942 + $0x18] sm:$0xf]
          %v1950 = vld [vmem:[%s1942 + $0x1c] sm:$0xf]
          %v1951 = vld [vmem:[%s1942 + $0x20] sm:$0xf]
          %v1952 = vld [vmem:[%s1942 + $0x24] sm:$0xf]
          %v1953 = vld [vmem:[%s1942 + $0x28] sm:$0xf]
          %v1954 = vld [vmem:[%s1942 + $0x2c] sm:$0xf]
          %v1955 = vld [vmem:[%s1942 + $0x30] sm:$0xf]
          %v1956 = vld [vmem:[%s1942 + $0x34] sm:$0xf]
          %v1957 = vld [vmem:[%s1942 + $0x38] sm:$0xf]
          %v1958 = vld [vmem:[%s1942 + $0x3c] sm:$0xf]
          %v1959 = vrot.slane %v1640, 2
          %v1977 = vunpack.c.l.b16 %v1943
          %v1978 = vunpack.c.l.b16 %v1944
          %v1979 = vunpack.c.l.b16 %v1945
          %v1980 = vunpack.c.l.b16 %v1946
          %v1981 = vunpack.c.l.b16 %v1947
          %v1982 = vunpack.c.l.b16 %v1948
          %v1983 = vunpack.c.l.b16 %v1949
          %v1984 = vunpack.c.l.b16 %v1950
          %v1985 = vunpack.c.l.b16 %v1951
          %v1986 = vunpack.c.l.b16 %v1952
          %v1987 = vunpack.c.l.b16 %v1953
          %v1988 = vunpack.c.l.b16 %v1954
          %v1989 = vunpack.c.l.b16 %v1955
          %v1990 = vunpack.c.l.b16 %v1956
          %v1991 = vunpack.c.l.b16 %v1957
          %v1992 = vunpack.c.l.b16 %v1958
          %v1993 = vpack.c.b16 %v1978, %v1977
          %v1994 = vpack.c.b16 %v1980, %v1979
          %v1995 = vpack.c.b16 %v1982, %v1981
          %v1996 = vpack.c.b16 %v1984, %v1983
          %v1997 = vpack.c.b16 %v1986, %v1985
          %v1998 = vpack.c.b16 %v1988, %v1987
          %v1999 = vpack.c.b16 %v1990, %v1989
          %v2000 = vpack.c.b16 %v1992, %v1991
          %2009 = vmatpush.bf16.msra.mxu0 %v2000
          %2010 = vmatpush.bf16.msra.mxu0 %v1999
          %2011 = vmatpush.bf16.msra.mxu0 %v1998
          %2012 = vmatpush.bf16.msra.mxu0 %v1997
          %2013 = vmatpush.bf16.msra.mxu0 %v1996
          %2014 = vmatpush.bf16.msra.mxu0 %v1995
          %2015 = vmatpush.bf16.msra.mxu0 %v1994
          %2016 = vmatpush.bf16.msra.mxu0 %v1993
          %2017 = vmatmul.bf16.gmra.mxu0 %v1959
          %v2018 = vpop.f32.mrf.mxu0
          %v2019 = vadd.f32 0.0, %v2018
          %v2020 = vpop.f32.mrf.mxu0
          %v2021 = vadd.f32 0.0, %v2020
          %2022 = vdwg.mxu0
          %v2023 = vadd.f32 %v1940, %v2019
          %v2024 = vadd.f32 %v1941, %v2021
          %s2025 = sadd.s32 %s1593, 1
          %s2026 = smul.u32 %s2025, 2
          %s2027 = smul.addr %s2026, 4
          %s2028 = scalar_lea.vmem [#allocation3], %s2027
          %v2029 = vld [vmem:[%s2028] sm:$0xf]
          %v2030 = vld [vmem:[%s2028 + $0x4] sm:$0x7]
          %s2031 = scalar_lea.vmem %s4, 320
          %v2032 = vld [vmem:[%s2031] sm:$0xf]
          %v2033 = vld [vmem:[%s2031 + $0x4] sm:$0xf]
          %v2034 = vld [vmem:[%s2031 + $0x8] sm:$0xf]
          %v2035 = vld [vmem:[%s2031 + $0xc] sm:$0xf]
          %v2036 = vld [vmem:[%s2031 + $0x10] sm:$0xf]
          %v2037 = vld [vmem:[%s2031 + $0x14] sm:$0xf]
          %v2038 = vld [vmem:[%s2031 + $0x18] sm:$0xf]
          %v2039 = vld [vmem:[%s2031 + $0x1c] sm:$0xf]
          %v2040 = vld [vmem:[%s2031 + $0x20] sm:$0xf]
          %v2041 = vld [vmem:[%s2031 + $0x24] sm:$0xf]
          %v2042 = vld [vmem:[%s2031 + $0x28] sm:$0xf]
          %v2043 = vld [vmem:[%s2031 + $0x2c] sm:$0xf]
          %v2044 = vld [vmem:[%s2031 + $0x30] sm:$0xf]
          %v2045 = vld [vmem:[%s2031 + $0x34] sm:$0xf]
          %v2046 = vld [vmem:[%s2031 + $0x38] sm:$0xf]
          %v2047 = vld [vmem:[%s2031 + $0x3c] sm:$0xf]
          %v2050 = vunpack.c.l.b16 %v2029
          %v2051 = vunpack.c.l.b16 %v2030
          %v2052 = vpack.c.b16 %v2051, %v2050
          %v2070 = vunpack.c.l.b16 %v2032
          %v2071 = vunpack.c.l.b16 %v2033
          %v2072 = vunpack.c.l.b16 %v2034
          %v2073 = vunpack.c.l.b16 %v2035
          %v2074 = vunpack.c.l.b16 %v2036
          %v2075 = vunpack.c.l.b16 %v2037
          %v2076 = vunpack.c.l.b16 %v2038
          %v2077 = vunpack.c.l.b16 %v2039
          %v2078 = vunpack.c.l.b16 %v2040
          %v2079 = vunpack.c.l.b16 %v2041
          %v2080 = vunpack.c.l.b16 %v2042
          %v2081 = vunpack.c.l.b16 %v2043
          %v2082 = vunpack.c.l.b16 %v2044
          %v2083 = vunpack.c.l.b16 %v2045
          %v2084 = vunpack.c.l.b16 %v2046
          %v2085 = vunpack.c.l.b16 %v2047
          %v2086 = vpack.c.b16 %v2071, %v2070
          %v2087 = vpack.c.b16 %v2073, %v2072
          %v2088 = vpack.c.b16 %v2075, %v2074
          %v2089 = vpack.c.b16 %v2077, %v2076
          %v2090 = vpack.c.b16 %v2079, %v2078
          %v2091 = vpack.c.b16 %v2081, %v2080
          %v2092 = vpack.c.b16 %v2083, %v2082
          %v2093 = vpack.c.b16 %v2085, %v2084
          %2102 = vmatpush.bf16.msra.mxu0 %v2093
          %2103 = vmatpush.bf16.msra.mxu0 %v2092
          %2104 = vmatpush.bf16.msra.mxu0 %v2091
          %2105 = vmatpush.bf16.msra.mxu0 %v2090
          %2106 = vmatpush.bf16.msra.mxu0 %v2089
          %2107 = vmatpush.bf16.msra.mxu0 %v2088
          %2108 = vmatpush.bf16.msra.mxu0 %v2087
          %2109 = vmatpush.bf16.msra.mxu0 %v2086
          %2110 = vmatmul.bf16.gmra.mxu0 %v2052
          %v2111 = vpop.f32.mrf.mxu0
          %v2112 = vadd.f32 0.0, %v2111
          %v2113 = vpop.f32.mrf.mxu0
          %v2114 = vadd.f32 0.0, %v2113
          %2115 = vdwg.mxu0
          %v2116 = vadd.f32 %v2023, %v2112
          %v2117 = vadd.f32 %v2024, %v2114
          %s2118 = scalar_lea.vmem %s4, 384
          %v2119 = vld [vmem:[%s2118] sm:$0xf]
          %v2120 = vld [vmem:[%s2118 + $0x4] sm:$0xf]
          %v2121 = vld [vmem:[%s2118 + $0x8] sm:$0xf]
          %v2122 = vld [vmem:[%s2118 + $0xc] sm:$0xf]
          %v2123 = vld [vmem:[%s2118 + $0x10] sm:$0xf]
          %v2124 = vld [vmem:[%s2118 + $0x14] sm:$0xf]
          %v2125 = vld [vmem:[%s2118 + $0x18] sm:$0xf]
          %v2126 = vld [vmem:[%s2118 + $0x1c] sm:$0xf]
          %v2127 = vld [vmem:[%s2118 + $0x20] sm:$0xf]
          %v2128 = vld [vmem:[%s2118 + $0x24] sm:$0xf]
          %v2129 = vld [vmem:[%s2118 + $0x28] sm:$0xf]
          %v2130 = vld [vmem:[%s2118 + $0x2c] sm:$0xf]
          %v2131 = vld [vmem:[%s2118 + $0x30] sm:$0xf]
          %v2132 = vld [vmem:[%s2118 + $0x34] sm:$0xf]
          %v2133 = vld [vmem:[%s2118 + $0x38] sm:$0xf]
          %v2134 = vld [vmem:[%s2118 + $0x3c] sm:$0xf]
          %v2136 = vshrl.u32 %v2052, 16
          %v2138 = vshll.u32 %v2052, 16
          %v2140 = vrot.slane %v2138, 1
          %v2141 = vor.u32 %v2136, %v2140
          %v2159 = vunpack.c.l.b16 %v2119
          %v2160 = vunpack.c.l.b16 %v2120
          %v2161 = vunpack.c.l.b16 %v2121
          %v2162 = vunpack.c.l.b16 %v2122
          %v2163 = vunpack.c.l.b16 %v2123
          %v2164 = vunpack.c.l.b16 %v2124
          %v2165 = vunpack.c.l.b16 %v2125
          %v2166 = vunpack.c.l.b16 %v2126
          %v2167 = vunpack.c.l.b16 %v2127
          %v2168 = vunpack.c.l.b16 %v2128
          %v2169 = vunpack.c.l.b16 %v2129
          %v2170 = vunpack.c.l.b16 %v2130
          %v2171 = vunpack.c.l.b16 %v2131
          %v2172 = vunpack.c.l.b16 %v2132
          %v2173 = vunpack.c.l.b16 %v2133
          %v2174 = vunpack.c.l.b16 %v2134
          %v2175 = vpack.c.b16 %v2160, %v2159
          %v2176 = vpack.c.b16 %v2162, %v2161
          %v2177 = vpack.c.b16 %v2164, %v2163
          %v2178 = vpack.c.b16 %v2166, %v2165
          %v2179 = vpack.c.b16 %v2168, %v2167
          %v2180 = vpack.c.b16 %v2170, %v2169
          %v2181 = vpack.c.b16 %v2172, %v2171
          %v2182 = vpack.c.b16 %v2174, %v2173
          %2191 = vmatpush.bf16.msra.mxu0 %v2182
          %2192 = vmatpush.bf16.msra.mxu0 %v2181
          %2193 = vmatpush.bf16.msra.mxu0 %v2180
          %2194 = vmatpush.bf16.msra.mxu0 %v2179
          %2195 = vmatpush.bf16.msra.mxu0 %v2178
          %2196 = vmatpush.bf16.msra.mxu0 %v2177
          %2197 = vmatpush.bf16.msra.mxu0 %v2176
          %2198 = vmatpush.bf16.msra.mxu0 %v2175
          %2199 = vmatmul.bf16.gmra.mxu0 %v2141
          %v2200 = vpop.f32.mrf.mxu0
          %v2201 = vadd.f32 0.0, %v2200
          %v2202 = vpop.f32.mrf.mxu0
          %v2203 = vadd.f32 0.0, %v2202
          %2204 = vdwg.mxu0
          %v2205 = vadd.f32 %v2116, %v2201
          %v2206 = vadd.f32 %v2117, %v2203
          %s2207 = scalar_lea.vmem %s4, 448
          %v2208 = vld [vmem:[%s2207] sm:$0xf]
          %v2209 = vld [vmem:[%s2207 + $0x4] sm:$0xf]
          %v2210 = vld [vmem:[%s2207 + $0x8] sm:$0xf]
          %v2211 = vld [vmem:[%s2207 + $0xc] sm:$0xf]
          %v2212 = vld [vmem:[%s2207 + $0x10] sm:$0xf]
          %v2213 = vld [vmem:[%s2207 + $0x14] sm:$0xf]
          %v2214 = vld [vmem:[%s2207 + $0x18] sm:$0xf]
          %v2215 = vld [vmem:[%s2207 + $0x1c] sm:$0xf]
          %v2216 = vld [vmem:[%s2207 + $0x20] sm:$0xf]
          %v2217 = vld [vmem:[%s2207 + $0x24] sm:$0xf]
          %v2218 = vld [vmem:[%s2207 + $0x28] sm:$0xf]
          %v2219 = vld [vmem:[%s2207 + $0x2c] sm:$0xf]
          %v2220 = vld [vmem:[%s2207 + $0x30] sm:$0xf]
          %v2221 = vld [vmem:[%s2207 + $0x34] sm:$0xf]
          %v2222 = vld [vmem:[%s2207 + $0x38] sm:$0xf]
          %v2223 = vld [vmem:[%s2207 + $0x3c] sm:$0xf]
          %v2224 = vrot.slane %v2052, 1
          %v2242 = vunpack.c.l.b16 %v2208
          %v2243 = vunpack.c.l.b16 %v2209
          %v2244 = vunpack.c.l.b16 %v2210
          %v2245 = vunpack.c.l.b16 %v2211
          %v2246 = vunpack.c.l.b16 %v2212
          %v2247 = vunpack.c.l.b16 %v2213
          %v2248 = vunpack.c.l.b16 %v2214
          %v2249 = vunpack.c.l.b16 %v2215
          %v2250 = vunpack.c.l.b16 %v2216
          %v2251 = vunpack.c.l.b16 %v2217
          %v2252 = vunpack.c.l.b16 %v2218
          %v2253 = vunpack.c.l.b16 %v2219
          %v2254 = vunpack.c.l.b16 %v2220
          %v2255 = vunpack.c.l.b16 %v2221
          %v2256 = vunpack.c.l.b16 %v2222
          %v2257 = vunpack.c.l.b16 %v2223
          %v2258 = vpack.c.b16 %v2243, %v2242
          %v2259 = vpack.c.b16 %v2245, %v2244
          %v2260 = vpack.c.b16 %v2247, %v2246
          %v2261 = vpack.c.b16 %v2249, %v2248
          %v2262 = vpack.c.b16 %v2251, %v2250
          %v2263 = vpack.c.b16 %v2253, %v2252
          %v2264 = vpack.c.b16 %v2255, %v2254
          %v2265 = vpack.c.b16 %v2257, %v2256
          %2274 = vmatpush.bf16.msra.mxu0 %v2265
          %2275 = vmatpush.bf16.msra.mxu0 %v2264
          %2276 = vmatpush.bf16.msra.mxu0 %v2263
          %2277 = vmatpush.bf16.msra.mxu0 %v2262
          %2278 = vmatpush.bf16.msra.mxu0 %v2261
          %2279 = vmatpush.bf16.msra.mxu0 %v2260
          %2280 = vmatpush.bf16.msra.mxu0 %v2259
          %2281 = vmatpush.bf16.msra.mxu0 %v2258
          %2282 = vmatmul.bf16.gmra.mxu0 %v2224
          %v2283 = vpop.f32.mrf.mxu0
          %v2284 = vadd.f32 0.0, %v2283
          %v2285 = vpop.f32.mrf.mxu0
          %v2286 = vadd.f32 0.0, %v2285
          %2287 = vdwg.mxu0
          %v2288 = vadd.f32 %v2205, %v2284
          %v2289 = vadd.f32 %v2206, %v2286
          %s2290 = scalar_lea.vmem %s4, 512
          %v2291 = vld [vmem:[%s2290] sm:$0xf]
          %v2292 = vld [vmem:[%s2290 + $0x4] sm:$0xf]
          %v2293 = vld [vmem:[%s2290 + $0x8] sm:$0xf]
          %v2294 = vld [vmem:[%s2290 + $0xc] sm:$0xf]
          %v2295 = vld [vmem:[%s2290 + $0x10] sm:$0xf]
          %v2296 = vld [vmem:[%s2290 + $0x14] sm:$0xf]
          %v2297 = vld [vmem:[%s2290 + $0x18] sm:$0xf]
          %v2298 = vld [vmem:[%s2290 + $0x1c] sm:$0xf]
          %v2299 = vld [vmem:[%s2290 + $0x20] sm:$0xf]
          %v2300 = vld [vmem:[%s2290 + $0x24] sm:$0xf]
          %v2301 = vld [vmem:[%s2290 + $0x28] sm:$0xf]
          %v2302 = vld [vmem:[%s2290 + $0x2c] sm:$0xf]
          %v2303 = vld [vmem:[%s2290 + $0x30] sm:$0xf]
          %v2304 = vld [vmem:[%s2290 + $0x34] sm:$0xf]
          %v2305 = vld [vmem:[%s2290 + $0x38] sm:$0xf]
          %v2306 = vld [vmem:[%s2290 + $0x3c] sm:$0xf]
          %v2307 = vrot.slane %v2136, 1
          %v2308 = vrot.slane %v2138, 2
          %v2309 = vor.u32 %v2307, %v2308
          %v2327 = vunpack.c.l.b16 %v2291
          %v2328 = vunpack.c.l.b16 %v2292
          %v2329 = vunpack.c.l.b16 %v2293
          %v2330 = vunpack.c.l.b16 %v2294
          %v2331 = vunpack.c.l.b16 %v2295
          %v2332 = vunpack.c.l.b16 %v2296
          %v2333 = vunpack.c.l.b16 %v2297
          %v2334 = vunpack.c.l.b16 %v2298
          %v2335 = vunpack.c.l.b16 %v2299
          %v2336 = vunpack.c.l.b16 %v2300
          %v2337 = vunpack.c.l.b16 %v2301
          %v2338 = vunpack.c.l.b16 %v2302
          %v2339 = vunpack.c.l.b16 %v2303
          %v2340 = vunpack.c.l.b16 %v2304
          %v2341 = vunpack.c.l.b16 %v2305
          %v2342 = vunpack.c.l.b16 %v2306
          %v2343 = vpack.c.b16 %v2328, %v2327
          %v2344 = vpack.c.b16 %v2330, %v2329
          %v2345 = vpack.c.b16 %v2332, %v2331
          %v2346 = vpack.c.b16 %v2334, %v2333
          %v2347 = vpack.c.b16 %v2336, %v2335
          %v2348 = vpack.c.b16 %v2338, %v2337
          %v2349 = vpack.c.b16 %v2340, %v2339
          %v2350 = vpack.c.b16 %v2342, %v2341
          %2359 = vmatpush.bf16.msra.mxu0 %v2350
          %2360 = vmatpush.bf16.msra.mxu0 %v2349
          %2361 = vmatpush.bf16.msra.mxu0 %v2348
          %2362 = vmatpush.bf16.msra.mxu0 %v2347
          %2363 = vmatpush.bf16.msra.mxu0 %v2346
          %2364 = vmatpush.bf16.msra.mxu0 %v2345
          %2365 = vmatpush.bf16.msra.mxu0 %v2344
          %2366 = vmatpush.bf16.msra.mxu0 %v2343
          %2367 = vmatmul.bf16.gmra.mxu0 %v2309
          %v2368 = vpop.f32.mrf.mxu0
          %v2369 = vadd.f32 0.0, %v2368
          %v2370 = vpop.f32.mrf.mxu0
          %v2371 = vadd.f32 0.0, %v2370
          %2372 = vdwg.mxu0
          %v2373 = vadd.f32 %v2288, %v2369
          %v2374 = vadd.f32 %v2289, %v2371
          %s2375 = scalar_lea.vmem %s4, 576
          %v2376 = vld [vmem:[%s2375] sm:$0xf]
          %v2377 = vld [vmem:[%s2375 + $0x4] sm:$0xf]
          %v2378 = vld [vmem:[%s2375 + $0x8] sm:$0xf]
          %v2379 = vld [vmem:[%s2375 + $0xc] sm:$0xf]
          %v2380 = vld [vmem:[%s2375 + $0x10] sm:$0xf]
          %v2381 = vld [vmem:[%s2375 + $0x14] sm:$0xf]
          %v2382 = vld [vmem:[%s2375 + $0x18] sm:$0xf]
          %v2383 = vld [vmem:[%s2375 + $0x1c] sm:$0xf]
          %v2384 = vld [vmem:[%s2375 + $0x20] sm:$0xf]
          %v2385 = vld [vmem:[%s2375 + $0x24] sm:$0xf]
          %v2386 = vld [vmem:[%s2375 + $0x28] sm:$0xf]
          %v2387 = vld [vmem:[%s2375 + $0x2c] sm:$0xf]
          %v2388 = vld [vmem:[%s2375 + $0x30] sm:$0xf]
          %v2389 = vld [vmem:[%s2375 + $0x34] sm:$0xf]
          %v2390 = vld [vmem:[%s2375 + $0x38] sm:$0xf]
          %v2391 = vld [vmem:[%s2375 + $0x3c] sm:$0xf]
          %v2392 = vrot.slane %v2052, 2
          %v2410 = vunpack.c.l.b16 %v2376
          %v2411 = vunpack.c.l.b16 %v2377
          %v2412 = vunpack.c.l.b16 %v2378
          %v2413 = vunpack.c.l.b16 %v2379
          %v2414 = vunpack.c.l.b16 %v2380
          %v2415 = vunpack.c.l.b16 %v2381
          %v2416 = vunpack.c.l.b16 %v2382
          %v2417 = vunpack.c.l.b16 %v2383
          %v2418 = vunpack.c.l.b16 %v2384
          %v2419 = vunpack.c.l.b16 %v2385
          %v2420 = vunpack.c.l.b16 %v2386
          %v2421 = vunpack.c.l.b16 %v2387
          %v2422 = vunpack.c.l.b16 %v2388
          %v2423 = vunpack.c.l.b16 %v2389
          %v2424 = vunpack.c.l.b16 %v2390
          %v2425 = vunpack.c.l.b16 %v2391
          %v2426 = vpack.c.b16 %v2411, %v2410
          %v2427 = vpack.c.b16 %v2413, %v2412
          %v2428 = vpack.c.b16 %v2415, %v2414
          %v2429 = vpack.c.b16 %v2417, %v2416
          %v2430 = vpack.c.b16 %v2419, %v2418
          %v2431 = vpack.c.b16 %v2421, %v2420
          %v2432 = vpack.c.b16 %v2423, %v2422
          %v2433 = vpack.c.b16 %v2425, %v2424
          %2442 = vmatpush.bf16.msra.mxu0 %v2433
          %2443 = vmatpush.bf16.msra.mxu0 %v2432
          %2444 = vmatpush.bf16.msra.mxu0 %v2431
          %2445 = vmatpush.bf16.msra.mxu0 %v2430
          %2446 = vmatpush.bf16.msra.mxu0 %v2429
          %2447 = vmatpush.bf16.msra.mxu0 %v2428
          %2448 = vmatpush.bf16.msra.mxu0 %v2427
          %2449 = vmatpush.bf16.msra.mxu0 %v2426
          %2450 = vmatmul.bf16.gmra.mxu0 %v2392
          %v2451 = vpop.f32.mrf.mxu0
          %v2452 = vadd.f32 0.0, %v2451
          %v2453 = vpop.f32.mrf.mxu0
          %v2454 = vadd.f32 0.0, %v2453
          %2455 = vdwg.mxu0
          %v2456 = vadd.f32 %v2373, %v2452
          %v2457 = vadd.f32 %v2374, %v2454
          %s2458 = sadd.s32 %s1593, 2
          %s2459 = smul.u32 %s2458, 2
          %s2460 = smul.addr %s2459, 4
          %s2461 = scalar_lea.vmem [#allocation3], %s2460
          %v2462 = vld [vmem:[%s2461] sm:$0xf]
          %v2463 = vld [vmem:[%s2461 + $0x4] sm:$0x7]
          %s2464 = scalar_lea.vmem %s4, 640
          %v2465 = vld [vmem:[%s2464] sm:$0xf]
          %v2466 = vld [vmem:[%s2464 + $0x4] sm:$0xf]
          %v2467 = vld [vmem:[%s2464 + $0x8] sm:$0xf]
          %v2468 = vld [vmem:[%s2464 + $0xc] sm:$0xf]
          %v2469 = vld [vmem:[%s2464 + $0x10] sm:$0xf]
          %v2470 = vld [vmem:[%s2464 + $0x14] sm:$0xf]
          %v2471 = vld [vmem:[%s2464 + $0x18] sm:$0xf]
          %v2472 = vld [vmem:[%s2464 + $0x1c] sm:$0xf]
          %v2473 = vld [vmem:[%s2464 + $0x20] sm:$0xf]
          %v2474 = vld [vmem:[%s2464 + $0x24] sm:$0xf]
          %v2475 = vld [vmem:[%s2464 + $0x28] sm:$0xf]
          %v2476 = vld [vmem:[%s2464 + $0x2c] sm:$0xf]
          %v2477 = vld [vmem:[%s2464 + $0x30] sm:$0xf]
          %v2478 = vld [vmem:[%s2464 + $0x34] sm:$0xf]
          %v2479 = vld [vmem:[%s2464 + $0x38] sm:$0xf]
          %v2480 = vld [vmem:[%s2464 + $0x3c] sm:$0xf]
          %v2483 = vunpack.c.l.b16 %v2462
          %v2484 = vunpack.c.l.b16 %v2463
          %v2485 = vpack.c.b16 %v2484, %v2483
          %v2503 = vunpack.c.l.b16 %v2465
          %v2504 = vunpack.c.l.b16 %v2466
          %v2505 = vunpack.c.l.b16 %v2467
          %v2506 = vunpack.c.l.b16 %v2468
          %v2507 = vunpack.c.l.b16 %v2469
          %v2508 = vunpack.c.l.b16 %v2470
          %v2509 = vunpack.c.l.b16 %v2471
          %v2510 = vunpack.c.l.b16 %v2472
          %v2511 = vunpack.c.l.b16 %v2473
          %v2512 = vunpack.c.l.b16 %v2474
          %v2513 = vunpack.c.l.b16 %v2475
          %v2514 = vunpack.c.l.b16 %v2476
          %v2515 = vunpack.c.l.b16 %v2477
          %v2516 = vunpack.c.l.b16 %v2478
          %v2517 = vunpack.c.l.b16 %v2479
          %v2518 = vunpack.c.l.b16 %v2480
          %v2519 = vpack.c.b16 %v2504, %v2503
          %v2520 = vpack.c.b16 %v2506, %v2505
          %v2521 = vpack.c.b16 %v2508, %v2507
          %v2522 = vpack.c.b16 %v2510, %v2509
          %v2523 = vpack.c.b16 %v2512, %v2511
          %v2524 = vpack.c.b16 %v2514, %v2513
          %v2525 = vpack.c.b16 %v2516, %v2515
          %v2526 = vpack.c.b16 %v2518, %v2517
          %2535 = vmatpush.bf16.msra.mxu0 %v2526
          %2536 = vmatpush.bf16.msra.mxu0 %v2525
          %2537 = vmatpush.bf16.msra.mxu0 %v2524
          %2538 = vmatpush.bf16.msra.mxu0 %v2523
          %2539 = vmatpush.bf16.msra.mxu0 %v2522
          %2540 = vmatpush.bf16.msra.mxu0 %v2521
          %2541 = vmatpush.bf16.msra.mxu0 %v2520
          %2542 = vmatpush.bf16.msra.mxu0 %v2519
          %2543 = vmatmul.bf16.gmra.mxu0 %v2485
          %v2544 = vpop.f32.mrf.mxu0
          %v2545 = vadd.f32 0.0, %v2544
          %v2546 = vpop.f32.mrf.mxu0
          %v2547 = vadd.f32 0.0, %v2546
          %2548 = vdwg.mxu0
          %v2549 = vadd.f32 %v2456, %v2545
          %v2550 = vadd.f32 %v2457, %v2547
          %s2551 = scalar_lea.vmem %s4, 704
          %v2552 = vld [vmem:[%s2551] sm:$0xf]
          %v2553 = vld [vmem:[%s2551 + $0x4] sm:$0xf]
          %v2554 = vld [vmem:[%s2551 + $0x8] sm:$0xf]
          %v2555 = vld [vmem:[%s2551 + $0xc] sm:$0xf]
          %v2556 = vld [vmem:[%s2551 + $0x10] sm:$0xf]
          %v2557 = vld [vmem:[%s2551 + $0x14] sm:$0xf]
          %v2558 = vld [vmem:[%s2551 + $0x18] sm:$0xf]
          %v2559 = vld [vmem:[%s2551 + $0x1c] sm:$0xf]
          %v2560 = vld [vmem:[%s2551 + $0x20] sm:$0xf]
          %v2561 = vld [vmem:[%s2551 + $0x24] sm:$0xf]
          %v2562 = vld [vmem:[%s2551 + $0x28] sm:$0xf]
          %v2563 = vld [vmem:[%s2551 + $0x2c] sm:$0xf]
          %v2564 = vld [vmem:[%s2551 + $0x30] sm:$0xf]
          %v2565 = vld [vmem:[%s2551 + $0x34] sm:$0xf]
          %v2566 = vld [vmem:[%s2551 + $0x38] sm:$0xf]
          %v2567 = vld [vmem:[%s2551 + $0x3c] sm:$0xf]
          %v2569 = vshrl.u32 %v2485, 16
          %v2571 = vshll.u32 %v2485, 16
          %v2573 = vrot.slane %v2571, 1
          %v2574 = vor.u32 %v2569, %v2573
          %v2592 = vunpack.c.l.b16 %v2552
          %v2593 = vunpack.c.l.b16 %v2553
          %v2594 = vunpack.c.l.b16 %v2554
          %v2595 = vunpack.c.l.b16 %v2555
          %v2596 = vunpack.c.l.b16 %v2556
          %v2597 = vunpack.c.l.b16 %v2557
          %v2598 = vunpack.c.l.b16 %v2558
          %v2599 = vunpack.c.l.b16 %v2559
          %v2600 = vunpack.c.l.b16 %v2560
          %v2601 = vunpack.c.l.b16 %v2561
          %v2602 = vunpack.c.l.b16 %v2562
          %v2603 = vunpack.c.l.b16 %v2563
          %v2604 = vunpack.c.l.b16 %v2564
          %v2605 = vunpack.c.l.b16 %v2565
          %v2606 = vunpack.c.l.b16 %v2566
          %v2607 = vunpack.c.l.b16 %v2567
          %v2608 = vpack.c.b16 %v2593, %v2592
          %v2609 = vpack.c.b16 %v2595, %v2594
          %v2610 = vpack.c.b16 %v2597, %v2596
          %v2611 = vpack.c.b16 %v2599, %v2598
          %v2612 = vpack.c.b16 %v2601, %v2600
          %v2613 = vpack.c.b16 %v2603, %v2602
          %v2614 = vpack.c.b16 %v2605, %v2604
          %v2615 = vpack.c.b16 %v2607, %v2606
          %2624 = vmatpush.bf16.msra.mxu0 %v2615
          %2625 = vmatpush.bf16.msra.mxu0 %v2614
          %2626 = vmatpush.bf16.msra.mxu0 %v2613
          %2627 = vmatpush.bf16.msra.mxu0 %v2612
          %2628 = vmatpush.bf16.msra.mxu0 %v2611
          %2629 = vmatpush.bf16.msra.mxu0 %v2610
          %2630 = vmatpush.bf16.msra.mxu0 %v2609
          %2631 = vmatpush.bf16.msra.mxu0 %v2608
          %2632 = vmatmul.bf16.gmra.mxu0 %v2574
          %v2633 = vpop.f32.mrf.mxu0
          %v2634 = vadd.f32 0.0, %v2633
          %v2635 = vpop.f32.mrf.mxu0
          %v2636 = vadd.f32 0.0, %v2635
          %2637 = vdwg.mxu0
          %v2638 = vadd.f32 %v2549, %v2634
          %v2639 = vadd.f32 %v2550, %v2636
          %s2640 = scalar_lea.vmem %s4, 768
          %v2641 = vld [vmem:[%s2640] sm:$0xf]
          %v2642 = vld [vmem:[%s2640 + $0x4] sm:$0xf]
          %v2643 = vld [vmem:[%s2640 + $0x8] sm:$0xf]
          %v2644 = vld [vmem:[%s2640 + $0xc] sm:$0xf]
          %v2645 = vld [vmem:[%s2640 + $0x10] sm:$0xf]
          %v2646 = vld [vmem:[%s2640 + $0x14] sm:$0xf]
          %v2647 = vld [vmem:[%s2640 + $0x18] sm:$0xf]
          %v2648 = vld [vmem:[%s2640 + $0x1c] sm:$0xf]
          %v2649 = vld [vmem:[%s2640 + $0x20] sm:$0xf]
          %v2650 = vld [vmem:[%s2640 + $0x24] sm:$0xf]
          %v2651 = vld [vmem:[%s2640 + $0x28] sm:$0xf]
          %v2652 = vld [vmem:[%s2640 + $0x2c] sm:$0xf]
          %v2653 = vld [vmem:[%s2640 + $0x30] sm:$0xf]
          %v2654 = vld [vmem:[%s2640 + $0x34] sm:$0xf]
          %v2655 = vld [vmem:[%s2640 + $0x38] sm:$0xf]
          %v2656 = vld [vmem:[%s2640 + $0x3c] sm:$0xf]
          %v2657 = vrot.slane %v2485, 1
          %v2675 = vunpack.c.l.b16 %v2641
          %v2676 = vunpack.c.l.b16 %v2642
          %v2677 = vunpack.c.l.b16 %v2643
          %v2678 = vunpack.c.l.b16 %v2644
          %v2679 = vunpack.c.l.b16 %v2645
          %v2680 = vunpack.c.l.b16 %v2646
          %v2681 = vunpack.c.l.b16 %v2647
          %v2682 = vunpack.c.l.b16 %v2648
          %v2683 = vunpack.c.l.b16 %v2649
          %v2684 = vunpack.c.l.b16 %v2650
          %v2685 = vunpack.c.l.b16 %v2651
          %v2686 = vunpack.c.l.b16 %v2652
          %v2687 = vunpack.c.l.b16 %v2653
          %v2688 = vunpack.c.l.b16 %v2654
          %v2689 = vunpack.c.l.b16 %v2655
          %v2690 = vunpack.c.l.b16 %v2656
          %v2691 = vpack.c.b16 %v2676, %v2675
          %v2692 = vpack.c.b16 %v2678, %v2677
          %v2693 = vpack.c.b16 %v2680, %v2679
          %v2694 = vpack.c.b16 %v2682, %v2681
          %v2695 = vpack.c.b16 %v2684, %v2683
          %v2696 = vpack.c.b16 %v2686, %v2685
          %v2697 = vpack.c.b16 %v2688, %v2687
          %v2698 = vpack.c.b16 %v2690, %v2689
          %2707 = vmatpush.bf16.msra.mxu0 %v2698
          %2708 = vmatpush.bf16.msra.mxu0 %v2697
          %2709 = vmatpush.bf16.msra.mxu0 %v2696
          %2710 = vmatpush.bf16.msra.mxu0 %v2695
          %2711 = vmatpush.bf16.msra.mxu0 %v2694
          %2712 = vmatpush.bf16.msra.mxu0 %v2693
          %2713 = vmatpush.bf16.msra.mxu0 %v2692
          %2714 = vmatpush.bf16.msra.mxu0 %v2691
          %2715 = vmatmul.bf16.gmra.mxu0 %v2657
          %v2716 = vpop.f32.mrf.mxu0
          %v2717 = vadd.f32 0.0, %v2716
          %v2718 = vpop.f32.mrf.mxu0
          %v2719 = vadd.f32 0.0, %v2718
          %2720 = vdwg.mxu0
          %v2721 = vadd.f32 %v2638, %v2717
          %v2722 = vadd.f32 %v2639, %v2719
          %s2723 = scalar_lea.vmem %s4, 832
          %v2724 = vld [vmem:[%s2723] sm:$0xf]
          %v2725 = vld [vmem:[%s2723 + $0x4] sm:$0xf]
          %v2726 = vld [vmem:[%s2723 + $0x8] sm:$0xf]
          %v2727 = vld [vmem:[%s2723 + $0xc] sm:$0xf]
          %v2728 = vld [vmem:[%s2723 + $0x10] sm:$0xf]
          %v2729 = vld [vmem:[%s2723 + $0x14] sm:$0xf]
          %v2730 = vld [vmem:[%s2723 + $0x18] sm:$0xf]
          %v2731 = vld [vmem:[%s2723 + $0x1c] sm:$0xf]
          %v2732 = vld [vmem:[%s2723 + $0x20] sm:$0xf]
          %v2733 = vld [vmem:[%s2723 + $0x24] sm:$0xf]
          %v2734 = vld [vmem:[%s2723 + $0x28] sm:$0xf]
          %v2735 = vld [vmem:[%s2723 + $0x2c] sm:$0xf]
          %v2736 = vld [vmem:[%s2723 + $0x30] sm:$0xf]
          %v2737 = vld [vmem:[%s2723 + $0x34] sm:$0xf]
          %v2738 = vld [vmem:[%s2723 + $0x38] sm:$0xf]
          %v2739 = vld [vmem:[%s2723 + $0x3c] sm:$0xf]
          %v2740 = vrot.slane %v2569, 1
          %v2741 = vrot.slane %v2571, 2
          %v2742 = vor.u32 %v2740, %v2741
          %v2760 = vunpack.c.l.b16 %v2724
          %v2761 = vunpack.c.l.b16 %v2725
          %v2762 = vunpack.c.l.b16 %v2726
          %v2763 = vunpack.c.l.b16 %v2727
          %v2764 = vunpack.c.l.b16 %v2728
          %v2765 = vunpack.c.l.b16 %v2729
          %v2766 = vunpack.c.l.b16 %v2730
          %v2767 = vunpack.c.l.b16 %v2731
          %v2768 = vunpack.c.l.b16 %v2732
          %v2769 = vunpack.c.l.b16 %v2733
          %v2770 = vunpack.c.l.b16 %v2734
          %v2771 = vunpack.c.l.b16 %v2735
          %v2772 = vunpack.c.l.b16 %v2736
          %v2773 = vunpack.c.l.b16 %v2737
          %v2774 = vunpack.c.l.b16 %v2738
          %v2775 = vunpack.c.l.b16 %v2739
          %v2776 = vpack.c.b16 %v2761, %v2760
          %v2777 = vpack.c.b16 %v2763, %v2762
          %v2778 = vpack.c.b16 %v2765, %v2764
          %v2779 = vpack.c.b16 %v2767, %v2766
          %v2780 = vpack.c.b16 %v2769, %v2768
          %v2781 = vpack.c.b16 %v2771, %v2770
          %v2782 = vpack.c.b16 %v2773, %v2772
          %v2783 = vpack.c.b16 %v2775, %v2774
          %2792 = vmatpush.bf16.msra.mxu0 %v2783
          %2793 = vmatpush.bf16.msra.mxu0 %v2782
          %2794 = vmatpush.bf16.msra.mxu0 %v2781
          %2795 = vmatpush.bf16.msra.mxu0 %v2780
          %2796 = vmatpush.bf16.msra.mxu0 %v2779
          %2797 = vmatpush.bf16.msra.mxu0 %v2778
          %2798 = vmatpush.bf16.msra.mxu0 %v2777
          %2799 = vmatpush.bf16.msra.mxu0 %v2776
          %2800 = vmatmul.bf16.gmra.mxu0 %v2742
          %v2801 = vpop.f32.mrf.mxu0
          %v2802 = vadd.f32 0.0, %v2801
          %v2803 = vpop.f32.mrf.mxu0
          %v2804 = vadd.f32 0.0, %v2803
          %2805 = vdwg.mxu0
          %v2806 = vadd.f32 %v2721, %v2802
          %v2807 = vadd.f32 %v2722, %v2804
          %s2808 = scalar_lea.vmem %s4, 896
          %v2809 = vld [vmem:[%s2808] sm:$0xf]
          %v2810 = vld [vmem:[%s2808 + $0x4] sm:$0xf]
          %v2811 = vld [vmem:[%s2808 + $0x8] sm:$0xf]
          %v2812 = vld [vmem:[%s2808 + $0xc] sm:$0xf]
          %v2813 = vld [vmem:[%s2808 + $0x10] sm:$0xf]
          %v2814 = vld [vmem:[%s2808 + $0x14] sm:$0xf]
          %v2815 = vld [vmem:[%s2808 + $0x18] sm:$0xf]
          %v2816 = vld [vmem:[%s2808 + $0x1c] sm:$0xf]
          %v2817 = vld [vmem:[%s2808 + $0x20] sm:$0xf]
          %v2818 = vld [vmem:[%s2808 + $0x24] sm:$0xf]
          %v2819 = vld [vmem:[%s2808 + $0x28] sm:$0xf]
          %v2820 = vld [vmem:[%s2808 + $0x2c] sm:$0xf]
          %v2821 = vld [vmem:[%s2808 + $0x30] sm:$0xf]
          %v2822 = vld [vmem:[%s2808 + $0x34] sm:$0xf]
          %v2823 = vld [vmem:[%s2808 + $0x38] sm:$0xf]
          %v2824 = vld [vmem:[%s2808 + $0x3c] sm:$0xf]
          %v2825 = vrot.slane %v2485, 2
          %v2843 = vunpack.c.l.b16 %v2809
          %v2844 = vunpack.c.l.b16 %v2810
          %v2845 = vunpack.c.l.b16 %v2811
          %v2846 = vunpack.c.l.b16 %v2812
          %v2847 = vunpack.c.l.b16 %v2813
          %v2848 = vunpack.c.l.b16 %v2814
          %v2849 = vunpack.c.l.b16 %v2815
          %v2850 = vunpack.c.l.b16 %v2816
          %v2851 = vunpack.c.l.b16 %v2817
          %v2852 = vunpack.c.l.b16 %v2818
          %v2853 = vunpack.c.l.b16 %v2819
          %v2854 = vunpack.c.l.b16 %v2820
          %v2855 = vunpack.c.l.b16 %v2821
          %v2856 = vunpack.c.l.b16 %v2822
          %v2857 = vunpack.c.l.b16 %v2823
          %v2858 = vunpack.c.l.b16 %v2824
          %v2859 = vpack.c.b16 %v2844, %v2843
          %v2860 = vpack.c.b16 %v2846, %v2845
          %v2861 = vpack.c.b16 %v2848, %v2847
          %v2862 = vpack.c.b16 %v2850, %v2849
          %v2863 = vpack.c.b16 %v2852, %v2851
          %v2864 = vpack.c.b16 %v2854, %v2853
          %v2865 = vpack.c.b16 %v2856, %v2855
          %v2866 = vpack.c.b16 %v2858, %v2857
          %2875 = vmatpush.bf16.msra.mxu0 %v2866
          %2876 = vmatpush.bf16.msra.mxu0 %v2865
          %2877 = vmatpush.bf16.msra.mxu0 %v2864
          %2878 = vmatpush.bf16.msra.mxu0 %v2863
          %2879 = vmatpush.bf16.msra.mxu0 %v2862
          %2880 = vmatpush.bf16.msra.mxu0 %v2861
          %2881 = vmatpush.bf16.msra.mxu0 %v2860
          %2882 = vmatpush.bf16.msra.mxu0 %v2859
          %2883 = vmatmul.bf16.gmra.mxu0 %v2825
          %v2884 = vpop.f32.mrf.mxu0
          %v2885 = vadd.f32 0.0, %v2884
          %v2886 = vpop.f32.mrf.mxu0
          %v2887 = vadd.f32 0.0, %v2886
          %2888 = vdwg.mxu0
          %v2889 = vadd.f32 %v2806, %v2885
          %v2890 = vadd.f32 %v2807, %v2887
          %s2891 = sadd.s32 %s1593, 3
          %s2892 = smul.u32 %s2891, 2
          %s2893 = smul.addr %s2892, 4
          %s2894 = scalar_lea.vmem [#allocation3], %s2893
          %v2895 = vld [vmem:[%s2894] sm:$0xf]
          %v2896 = vld [vmem:[%s2894 + $0x4] sm:$0x7]
          %s2897 = scalar_lea.vmem %s4, 960
          %v2898 = vld [vmem:[%s2897] sm:$0xf]
          %v2899 = vld [vmem:[%s2897 + $0x4] sm:$0xf]
          %v2900 = vld [vmem:[%s2897 + $0x8] sm:$0xf]
          %v2901 = vld [vmem:[%s2897 + $0xc] sm:$0xf]
          %v2902 = vld [vmem:[%s2897 + $0x10] sm:$0xf]
          %v2903 = vld [vmem:[%s2897 + $0x14] sm:$0xf]
          %v2904 = vld [vmem:[%s2897 + $0x18] sm:$0xf]
          %v2905 = vld [vmem:[%s2897 + $0x1c] sm:$0xf]
          %v2906 = vld [vmem:[%s2897 + $0x20] sm:$0xf]
          %v2907 = vld [vmem:[%s2897 + $0x24] sm:$0xf]
          %v2908 = vld [vmem:[%s2897 + $0x28] sm:$0xf]
          %v2909 = vld [vmem:[%s2897 + $0x2c] sm:$0xf]
          %v2910 = vld [vmem:[%s2897 + $0x30] sm:$0xf]
          %v2911 = vld [vmem:[%s2897 + $0x34] sm:$0xf]
          %v2912 = vld [vmem:[%s2897 + $0x38] sm:$0xf]
          %v2913 = vld [vmem:[%s2897 + $0x3c] sm:$0xf]
          %v2916 = vunpack.c.l.b16 %v2895
          %v2917 = vunpack.c.l.b16 %v2896
          %v2918 = vpack.c.b16 %v2917, %v2916
          %v2936 = vunpack.c.l.b16 %v2898
          %v2937 = vunpack.c.l.b16 %v2899
          %v2938 = vunpack.c.l.b16 %v2900
          %v2939 = vunpack.c.l.b16 %v2901
          %v2940 = vunpack.c.l.b16 %v2902
          %v2941 = vunpack.c.l.b16 %v2903
          %v2942 = vunpack.c.l.b16 %v2904
          %v2943 = vunpack.c.l.b16 %v2905
          %v2944 = vunpack.c.l.b16 %v2906
          %v2945 = vunpack.c.l.b16 %v2907
          %v2946 = vunpack.c.l.b16 %v2908
          %v2947 = vunpack.c.l.b16 %v2909
          %v2948 = vunpack.c.l.b16 %v2910
          %v2949 = vunpack.c.l.b16 %v2911
          %v2950 = vunpack.c.l.b16 %v2912
          %v2951 = vunpack.c.l.b16 %v2913
          %v2952 = vpack.c.b16 %v2937, %v2936
          %v2953 = vpack.c.b16 %v2939, %v2938
          %v2954 = vpack.c.b16 %v2941, %v2940
          %v2955 = vpack.c.b16 %v2943, %v2942
          %v2956 = vpack.c.b16 %v2945, %v2944
          %v2957 = vpack.c.b16 %v2947, %v2946
          %v2958 = vpack.c.b16 %v2949, %v2948
          %v2959 = vpack.c.b16 %v2951, %v2950
          %2968 = vmatpush.bf16.msra.mxu0 %v2959
          %2969 = vmatpush.bf16.msra.mxu0 %v2958
          %2970 = vmatpush.bf16.msra.mxu0 %v2957
          %2971 = vmatpush.bf16.msra.mxu0 %v2956
          %2972 = vmatpush.bf16.msra.mxu0 %v2955
          %2973 = vmatpush.bf16.msra.mxu0 %v2954
          %2974 = vmatpush.bf16.msra.mxu0 %v2953
          %2975 = vmatpush.bf16.msra.mxu0 %v2952
          %2976 = vmatmul.bf16.gmra.mxu0 %v2918
          %v2977 = vpop.f32.mrf.mxu0
          %v2978 = vadd.f32 0.0, %v2977
          %v2979 = vpop.f32.mrf.mxu0
          %v2980 = vadd.f32 0.0, %v2979
          %2981 = vdwg.mxu0
          %v2982 = vadd.f32 %v2889, %v2978
          %v2983 = vadd.f32 %v2890, %v2980
          %s2984 = scalar_lea.vmem %s4, 1024
          %v2985 = vld [vmem:[%s2984] sm:$0xf]
          %v2986 = vld [vmem:[%s2984 + $0x4] sm:$0xf]
          %v2987 = vld [vmem:[%s2984 + $0x8] sm:$0xf]
          %v2988 = vld [vmem:[%s2984 + $0xc] sm:$0xf]
          %v2989 = vld [vmem:[%s2984 + $0x10] sm:$0xf]
          %v2990 = vld [vmem:[%s2984 + $0x14] sm:$0xf]
          %v2991 = vld [vmem:[%s2984 + $0x18] sm:$0xf]
          %v2992 = vld [vmem:[%s2984 + $0x1c] sm:$0xf]
          %v2993 = vld [vmem:[%s2984 + $0x20] sm:$0xf]
          %v2994 = vld [vmem:[%s2984 + $0x24] sm:$0xf]
          %v2995 = vld [vmem:[%s2984 + $0x28] sm:$0xf]
          %v2996 = vld [vmem:[%s2984 + $0x2c] sm:$0xf]
          %v2997 = vld [vmem:[%s2984 + $0x30] sm:$0xf]
          %v2998 = vld [vmem:[%s2984 + $0x34] sm:$0xf]
          %v2999 = vld [vmem:[%s2984 + $0x38] sm:$0xf]
          %v3000 = vld [vmem:[%s2984 + $0x3c] sm:$0xf]
          %v3002 = vshrl.u32 %v2918, 16
          %v3004 = vshll.u32 %v2918, 16
          %v3006 = vrot.slane %v3004, 1
          %v3007 = vor.u32 %v3002, %v3006
          %v3025 = vunpack.c.l.b16 %v2985
          %v3026 = vunpack.c.l.b16 %v2986
          %v3027 = vunpack.c.l.b16 %v2987
          %v3028 = vunpack.c.l.b16 %v2988
          %v3029 = vunpack.c.l.b16 %v2989
          %v3030 = vunpack.c.l.b16 %v2990
          %v3031 = vunpack.c.l.b16 %v2991
          %v3032 = vunpack.c.l.b16 %v2992
          %v3033 = vunpack.c.l.b16 %v2993
          %v3034 = vunpack.c.l.b16 %v2994
          %v3035 = vunpack.c.l.b16 %v2995
          %v3036 = vunpack.c.l.b16 %v2996
          %v3037 = vunpack.c.l.b16 %v2997
          %v3038 = vunpack.c.l.b16 %v2998
          %v3039 = vunpack.c.l.b16 %v2999
          %v3040 = vunpack.c.l.b16 %v3000
          %v3041 = vpack.c.b16 %v3026, %v3025
          %v3042 = vpack.c.b16 %v3028, %v3027
          %v3043 = vpack.c.b16 %v3030, %v3029
          %v3044 = vpack.c.b16 %v3032, %v3031
          %v3045 = vpack.c.b16 %v3034, %v3033
          %v3046 = vpack.c.b16 %v3036, %v3035
          %v3047 = vpack.c.b16 %v3038, %v3037
          %v3048 = vpack.c.b16 %v3040, %v3039
          %3057 = vmatpush.bf16.msra.mxu0 %v3048
          %3058 = vmatpush.bf16.msra.mxu0 %v3047
          %3059 = vmatpush.bf16.msra.mxu0 %v3046
          %3060 = vmatpush.bf16.msra.mxu0 %v3045
          %3061 = vmatpush.bf16.msra.mxu0 %v3044
          %3062 = vmatpush.bf16.msra.mxu0 %v3043
          %3063 = vmatpush.bf16.msra.mxu0 %v3042
          %3064 = vmatpush.bf16.msra.mxu0 %v3041
          %3065 = vmatmul.bf16.gmra.mxu0 %v3007
          %v3066 = vpop.f32.mrf.mxu0
          %v3067 = vadd.f32 0.0, %v3066
          %v3068 = vpop.f32.mrf.mxu0
          %v3069 = vadd.f32 0.0, %v3068
          %3070 = vdwg.mxu0
          %v3071 = vadd.f32 %v2982, %v3067
          %v3072 = vadd.f32 %v2983, %v3069
          %s3073 = scalar_lea.vmem %s4, 1088
          %v3074 = vld [vmem:[%s3073] sm:$0xf]
          %v3075 = vld [vmem:[%s3073 + $0x4] sm:$0xf]
          %v3076 = vld [vmem:[%s3073 + $0x8] sm:$0xf]
          %v3077 = vld [vmem:[%s3073 + $0xc] sm:$0xf]
          %v3078 = vld [vmem:[%s3073 + $0x10] sm:$0xf]
          %v3079 = vld [vmem:[%s3073 + $0x14] sm:$0xf]
          %v3080 = vld [vmem:[%s3073 + $0x18] sm:$0xf]
          %v3081 = vld [vmem:[%s3073 + $0x1c] sm:$0xf]
          %v3082 = vld [vmem:[%s3073 + $0x20] sm:$0xf]
          %v3083 = vld [vmem:[%s3073 + $0x24] sm:$0xf]
          %v3084 = vld [vmem:[%s3073 + $0x28] sm:$0xf]
          %v3085 = vld [vmem:[%s3073 + $0x2c] sm:$0xf]
          %v3086 = vld [vmem:[%s3073 + $0x30] sm:$0xf]
          %v3087 = vld [vmem:[%s3073 + $0x34] sm:$0xf]
          %v3088 = vld [vmem:[%s3073 + $0x38] sm:$0xf]
          %v3089 = vld [vmem:[%s3073 + $0x3c] sm:$0xf]
          %v3090 = vrot.slane %v2918, 1
          %v3108 = vunpack.c.l.b16 %v3074
          %v3109 = vunpack.c.l.b16 %v3075
          %v3110 = vunpack.c.l.b16 %v3076
          %v3111 = vunpack.c.l.b16 %v3077
          %v3112 = vunpack.c.l.b16 %v3078
          %v3113 = vunpack.c.l.b16 %v3079
          %v3114 = vunpack.c.l.b16 %v3080
          %v3115 = vunpack.c.l.b16 %v3081
          %v3116 = vunpack.c.l.b16 %v3082
          %v3117 = vunpack.c.l.b16 %v3083
          %v3118 = vunpack.c.l.b16 %v3084
          %v3119 = vunpack.c.l.b16 %v3085
          %v3120 = vunpack.c.l.b16 %v3086
          %v3121 = vunpack.c.l.b16 %v3087
          %v3122 = vunpack.c.l.b16 %v3088
          %v3123 = vunpack.c.l.b16 %v3089
          %v3124 = vpack.c.b16 %v3109, %v3108
          %v3125 = vpack.c.b16 %v3111, %v3110
          %v3126 = vpack.c.b16 %v3113, %v3112
          %v3127 = vpack.c.b16 %v3115, %v3114
          %v3128 = vpack.c.b16 %v3117, %v3116
          %v3129 = vpack.c.b16 %v3119, %v3118
          %v3130 = vpack.c.b16 %v3121, %v3120
          %v3131 = vpack.c.b16 %v3123, %v3122
          %3140 = vmatpush.bf16.msra.mxu0 %v3131
          %3141 = vmatpush.bf16.msra.mxu0 %v3130
          %3142 = vmatpush.bf16.msra.mxu0 %v3129
          %3143 = vmatpush.bf16.msra.mxu0 %v3128
          %3144 = vmatpush.bf16.msra.mxu0 %v3127
          %3145 = vmatpush.bf16.msra.mxu0 %v3126
          %3146 = vmatpush.bf16.msra.mxu0 %v3125
          %3147 = vmatpush.bf16.msra.mxu0 %v3124
          %3148 = vmatmul.bf16.gmra.mxu0 %v3090
          %v3149 = vpop.f32.mrf.mxu0
          %v3150 = vadd.f32 0.0, %v3149
          %v3151 = vpop.f32.mrf.mxu0
          %v3152 = vadd.f32 0.0, %v3151
          %3153 = vdwg.mxu0
          %v3154 = vadd.f32 %v3071, %v3150
          %v3155 = vadd.f32 %v3072, %v3152
          %s3156 = scalar_lea.vmem %s4, 1152
          %v3157 = vld [vmem:[%s3156] sm:$0xf]
          %v3158 = vld [vmem:[%s3156 + $0x4] sm:$0xf]
          %v3159 = vld [vmem:[%s3156 + $0x8] sm:$0xf]
          %v3160 = vld [vmem:[%s3156 + $0xc] sm:$0xf]
          %v3161 = vld [vmem:[%s3156 + $0x10] sm:$0xf]
          %v3162 = vld [vmem:[%s3156 + $0x14] sm:$0xf]
          %v3163 = vld [vmem:[%s3156 + $0x18] sm:$0xf]
          %v3164 = vld [vmem:[%s3156 + $0x1c] sm:$0xf]
          %v3165 = vld [vmem:[%s3156 + $0x20] sm:$0xf]
          %v3166 = vld [vmem:[%s3156 + $0x24] sm:$0xf]
          %v3167 = vld [vmem:[%s3156 + $0x28] sm:$0xf]
          %v3168 = vld [vmem:[%s3156 + $0x2c] sm:$0xf]
          %v3169 = vld [vmem:[%s3156 + $0x30] sm:$0xf]
          %v3170 = vld [vmem:[%s3156 + $0x34] sm:$0xf]
          %v3171 = vld [vmem:[%s3156 + $0x38] sm:$0xf]
          %v3172 = vld [vmem:[%s3156 + $0x3c] sm:$0xf]
          %v3173 = vrot.slane %v3002, 1
          %v3174 = vrot.slane %v3004, 2
          %v3175 = vor.u32 %v3173, %v3174
          %v3193 = vunpack.c.l.b16 %v3157
          %v3194 = vunpack.c.l.b16 %v3158
          %v3195 = vunpack.c.l.b16 %v3159
          %v3196 = vunpack.c.l.b16 %v3160
          %v3197 = vunpack.c.l.b16 %v3161
          %v3198 = vunpack.c.l.b16 %v3162
          %v3199 = vunpack.c.l.b16 %v3163
          %v3200 = vunpack.c.l.b16 %v3164
          %v3201 = vunpack.c.l.b16 %v3165
          %v3202 = vunpack.c.l.b16 %v3166
          %v3203 = vunpack.c.l.b16 %v3167
          %v3204 = vunpack.c.l.b16 %v3168
          %v3205 = vunpack.c.l.b16 %v3169
          %v3206 = vunpack.c.l.b16 %v3170
          %v3207 = vunpack.c.l.b16 %v3171
          %v3208 = vunpack.c.l.b16 %v3172
          %v3209 = vpack.c.b16 %v3194, %v3193
          %v3210 = vpack.c.b16 %v3196, %v3195
          %v3211 = vpack.c.b16 %v3198, %v3197
          %v3212 = vpack.c.b16 %v3200, %v3199
          %v3213 = vpack.c.b16 %v3202, %v3201
          %v3214 = vpack.c.b16 %v3204, %v3203
          %v3215 = vpack.c.b16 %v3206, %v3205
          %v3216 = vpack.c.b16 %v3208, %v3207
          %3225 = vmatpush.bf16.msra.mxu0 %v3216
          %3226 = vmatpush.bf16.msra.mxu0 %v3215
          %3227 = vmatpush.bf16.msra.mxu0 %v3214
          %3228 = vmatpush.bf16.msra.mxu0 %v3213
          %3229 = vmatpush.bf16.msra.mxu0 %v3212
          %3230 = vmatpush.bf16.msra.mxu0 %v3211
          %3231 = vmatpush.bf16.msra.mxu0 %v3210
          %3232 = vmatpush.bf16.msra.mxu0 %v3209
          %3233 = vmatmul.bf16.gmra.mxu0 %v3175
          %v3234 = vpop.f32.mrf.mxu0
          %v3235 = vadd.f32 0.0, %v3234
          %v3236 = vpop.f32.mrf.mxu0
          %v3237 = vadd.f32 0.0, %v3236
          %3238 = vdwg.mxu0
          %v3239 = vadd.f32 %v3154, %v3235
          %v3240 = vadd.f32 %v3155, %v3237
          %s3241 = scalar_lea.vmem %s4, 1216
          %v3242 = vld [vmem:[%s3241] sm:$0xf]
          %v3243 = vld [vmem:[%s3241 + $0x4] sm:$0xf]
          %v3244 = vld [vmem:[%s3241 + $0x8] sm:$0xf]
          %v3245 = vld [vmem:[%s3241 + $0xc] sm:$0xf]
          %v3246 = vld [vmem:[%s3241 + $0x10] sm:$0xf]
          %v3247 = vld [vmem:[%s3241 + $0x14] sm:$0xf]
          %v3248 = vld [vmem:[%s3241 + $0x18] sm:$0xf]
          %v3249 = vld [vmem:[%s3241 + $0x1c] sm:$0xf]
          %v3250 = vld [vmem:[%s3241 + $0x20] sm:$0xf]
          %v3251 = vld [vmem:[%s3241 + $0x24] sm:$0xf]
          %v3252 = vld [vmem:[%s3241 + $0x28] sm:$0xf]
          %v3253 = vld [vmem:[%s3241 + $0x2c] sm:$0xf]
          %v3254 = vld [vmem:[%s3241 + $0x30] sm:$0xf]
          %v3255 = vld [vmem:[%s3241 + $0x34] sm:$0xf]
          %v3256 = vld [vmem:[%s3241 + $0x38] sm:$0xf]
          %v3257 = vld [vmem:[%s3241 + $0x3c] sm:$0xf]
          %v3258 = vrot.slane %v2918, 2
          %v3276 = vunpack.c.l.b16 %v3242
          %v3277 = vunpack.c.l.b16 %v3243
          %v3278 = vunpack.c.l.b16 %v3244
          %v3279 = vunpack.c.l.b16 %v3245
          %v3280 = vunpack.c.l.b16 %v3246
          %v3281 = vunpack.c.l.b16 %v3247
          %v3282 = vunpack.c.l.b16 %v3248
          %v3283 = vunpack.c.l.b16 %v3249
          %v3284 = vunpack.c.l.b16 %v3250
          %v3285 = vunpack.c.l.b16 %v3251
          %v3286 = vunpack.c.l.b16 %v3252
          %v3287 = vunpack.c.l.b16 %v3253
          %v3288 = vunpack.c.l.b16 %v3254
          %v3289 = vunpack.c.l.b16 %v3255
          %v3290 = vunpack.c.l.b16 %v3256
          %v3291 = vunpack.c.l.b16 %v3257
          %v3292 = vpack.c.b16 %v3277, %v3276
          %v3293 = vpack.c.b16 %v3279, %v3278
          %v3294 = vpack.c.b16 %v3281, %v3280
          %v3295 = vpack.c.b16 %v3283, %v3282
          %v3296 = vpack.c.b16 %v3285, %v3284
          %v3297 = vpack.c.b16 %v3287, %v3286
          %v3298 = vpack.c.b16 %v3289, %v3288
          %v3299 = vpack.c.b16 %v3291, %v3290
          %3308 = vmatpush.bf16.msra.mxu0 %v3299
          %3309 = vmatpush.bf16.msra.mxu0 %v3298
          %3310 = vmatpush.bf16.msra.mxu0 %v3297
          %3311 = vmatpush.bf16.msra.mxu0 %v3296
          %3312 = vmatpush.bf16.msra.mxu0 %v3295
          %3313 = vmatpush.bf16.msra.mxu0 %v3294
          %3314 = vmatpush.bf16.msra.mxu0 %v3293
          %3315 = vmatpush.bf16.msra.mxu0 %v3292
          %3316 = vmatmul.bf16.gmra.mxu0 %v3258
          %v3317 = vpop.f32.mrf.mxu0
          %v3318 = vadd.f32 0.0, %v3317
          %v3319 = vpop.f32.mrf.mxu0
          %v3320 = vadd.f32 0.0, %v3319
          %3321 = vdwg.mxu0
          %v3322 = vadd.f32 %v3239, %v3318
          %v3323 = vadd.f32 %v3240, %v3320
          %s3324 = sadd.s32 %s1593, 4
          %s3325 = smul.u32 %s3324, 2
          %s3326 = smul.addr %s3325, 4
          %s3327 = scalar_lea.vmem [#allocation3], %s3326
          %v3328 = vld [vmem:[%s3327] sm:$0xf]
          %v3329 = vld [vmem:[%s3327 + $0x4] sm:$0x7]
          %s3330 = scalar_lea.vmem %s4, 1280
          %v3331 = vld [vmem:[%s3330] sm:$0xf]
          %v3332 = vld [vmem:[%s3330 + $0x4] sm:$0xf]
          %v3333 = vld [vmem:[%s3330 + $0x8] sm:$0xf]
          %v3334 = vld [vmem:[%s3330 + $0xc] sm:$0xf]
          %v3335 = vld [vmem:[%s3330 + $0x10] sm:$0xf]
          %v3336 = vld [vmem:[%s3330 + $0x14] sm:$0xf]
          %v3337 = vld [vmem:[%s3330 + $0x18] sm:$0xf]
          %v3338 = vld [vmem:[%s3330 + $0x1c] sm:$0xf]
          %v3339 = vld [vmem:[%s3330 + $0x20] sm:$0xf]
          %v3340 = vld [vmem:[%s3330 + $0x24] sm:$0xf]
          %v3341 = vld [vmem:[%s3330 + $0x28] sm:$0xf]
          %v3342 = vld [vmem:[%s3330 + $0x2c] sm:$0xf]
          %v3343 = vld [vmem:[%s3330 + $0x30] sm:$0xf]
          %v3344 = vld [vmem:[%s3330 + $0x34] sm:$0xf]
          %v3345 = vld [vmem:[%s3330 + $0x38] sm:$0xf]
          %v3346 = vld [vmem:[%s3330 + $0x3c] sm:$0xf]
          %v3349 = vunpack.c.l.b16 %v3328
          %v3350 = vunpack.c.l.b16 %v3329
          %v3351 = vpack.c.b16 %v3350, %v3349
          %v3369 = vunpack.c.l.b16 %v3331
          %v3370 = vunpack.c.l.b16 %v3332
          %v3371 = vunpack.c.l.b16 %v3333
          %v3372 = vunpack.c.l.b16 %v3334
          %v3373 = vunpack.c.l.b16 %v3335
          %v3374 = vunpack.c.l.b16 %v3336
          %v3375 = vunpack.c.l.b16 %v3337
          %v3376 = vunpack.c.l.b16 %v3338
          %v3377 = vunpack.c.l.b16 %v3339
          %v3378 = vunpack.c.l.b16 %v3340
          %v3379 = vunpack.c.l.b16 %v3341
          %v3380 = vunpack.c.l.b16 %v3342
          %v3381 = vunpack.c.l.b16 %v3343
          %v3382 = vunpack.c.l.b16 %v3344
          %v3383 = vunpack.c.l.b16 %v3345
          %v3384 = vunpack.c.l.b16 %v3346
          %v3385 = vpack.c.b16 %v3370, %v3369
          %v3386 = vpack.c.b16 %v3372, %v3371
          %v3387 = vpack.c.b16 %v3374, %v3373
          %v3388 = vpack.c.b16 %v3376, %v3375
          %v3389 = vpack.c.b16 %v3378, %v3377
          %v3390 = vpack.c.b16 %v3380, %v3379
          %v3391 = vpack.c.b16 %v3382, %v3381
          %v3392 = vpack.c.b16 %v3384, %v3383
          %3401 = vmatpush.bf16.msra.mxu0 %v3392
          %3402 = vmatpush.bf16.msra.mxu0 %v3391
          %3403 = vmatpush.bf16.msra.mxu0 %v3390
          %3404 = vmatpush.bf16.msra.mxu0 %v3389
          %3405 = vmatpush.bf16.msra.mxu0 %v3388
          %3406 = vmatpush.bf16.msra.mxu0 %v3387
          %3407 = vmatpush.bf16.msra.mxu0 %v3386
          %3408 = vmatpush.bf16.msra.mxu0 %v3385
          %3409 = vmatmul.bf16.gmra.mxu0 %v3351
          %v3410 = vpop.f32.mrf.mxu0
          %v3411 = vadd.f32 0.0, %v3410
          %v3412 = vpop.f32.mrf.mxu0
          %v3413 = vadd.f32 0.0, %v3412
          %3414 = vdwg.mxu0
          %v3415 = vadd.f32 %v3322, %v3411
          %v3416 = vadd.f32 %v3323, %v3413
          %s3417 = scalar_lea.vmem %s4, 1344
          %v3418 = vld [vmem:[%s3417] sm:$0xf]
          %v3419 = vld [vmem:[%s3417 + $0x4] sm:$0xf]
          %v3420 = vld [vmem:[%s3417 + $0x8] sm:$0xf]
          %v3421 = vld [vmem:[%s3417 + $0xc] sm:$0xf]
          %v3422 = vld [vmem:[%s3417 + $0x10] sm:$0xf]
          %v3423 = vld [vmem:[%s3417 + $0x14] sm:$0xf]
          %v3424 = vld [vmem:[%s3417 + $0x18] sm:$0xf]
          %v3425 = vld [vmem:[%s3417 + $0x1c] sm:$0xf]
          %v3426 = vld [vmem:[%s3417 + $0x20] sm:$0xf]
          %v3427 = vld [vmem:[%s3417 + $0x24] sm:$0xf]
          %v3428 = vld [vmem:[%s3417 + $0x28] sm:$0xf]
          %v3429 = vld [vmem:[%s3417 + $0x2c] sm:$0xf]
          %v3430 = vld [vmem:[%s3417 + $0x30] sm:$0xf]
          %v3431 = vld [vmem:[%s3417 + $0x34] sm:$0xf]
          %v3432 = vld [vmem:[%s3417 + $0x38] sm:$0xf]
          %v3433 = vld [vmem:[%s3417 + $0x3c] sm:$0xf]
          %v3435 = vshrl.u32 %v3351, 16
          %v3437 = vshll.u32 %v3351, 16
          %v3439 = vrot.slane %v3437, 1
          %v3440 = vor.u32 %v3435, %v3439
          %v3458 = vunpack.c.l.b16 %v3418
          %v3459 = vunpack.c.l.b16 %v3419
          %v3460 = vunpack.c.l.b16 %v3420
          %v3461 = vunpack.c.l.b16 %v3421
          %v3462 = vunpack.c.l.b16 %v3422
          %v3463 = vunpack.c.l.b16 %v3423
          %v3464 = vunpack.c.l.b16 %v3424
          %v3465 = vunpack.c.l.b16 %v3425
          %v3466 = vunpack.c.l.b16 %v3426
          %v3467 = vunpack.c.l.b16 %v3427
          %v3468 = vunpack.c.l.b16 %v3428
          %v3469 = vunpack.c.l.b16 %v3429
          %v3470 = vunpack.c.l.b16 %v3430
          %v3471 = vunpack.c.l.b16 %v3431
          %v3472 = vunpack.c.l.b16 %v3432
          %v3473 = vunpack.c.l.b16 %v3433
          %v3474 = vpack.c.b16 %v3459, %v3458
          %v3475 = vpack.c.b16 %v3461, %v3460
          %v3476 = vpack.c.b16 %v3463, %v3462
          %v3477 = vpack.c.b16 %v3465, %v3464
          %v3478 = vpack.c.b16 %v3467, %v3466
          %v3479 = vpack.c.b16 %v3469, %v3468
          %v3480 = vpack.c.b16 %v3471, %v3470
          %v3481 = vpack.c.b16 %v3473, %v3472
          %3490 = vmatpush.bf16.msra.mxu0 %v3481
          %3491 = vmatpush.bf16.msra.mxu0 %v3480
          %3492 = vmatpush.bf16.msra.mxu0 %v3479
          %3493 = vmatpush.bf16.msra.mxu0 %v3478
          %3494 = vmatpush.bf16.msra.mxu0 %v3477
          %3495 = vmatpush.bf16.msra.mxu0 %v3476
          %3496 = vmatpush.bf16.msra.mxu0 %v3475
          %3497 = vmatpush.bf16.msra.mxu0 %v3474
          %3498 = vmatmul.bf16.gmra.mxu0 %v3440
          %v3499 = vpop.f32.mrf.mxu0
          %v3500 = vadd.f32 0.0, %v3499
          %v3501 = vpop.f32.mrf.mxu0
          %v3502 = vadd.f32 0.0, %v3501
          %3503 = vdwg.mxu0
          %v3504 = vadd.f32 %v3415, %v3500
          %v3505 = vadd.f32 %v3416, %v3502
          %s3506 = scalar_lea.vmem %s4, 1408
          %v3507 = vld [vmem:[%s3506] sm:$0xf]
          %v3508 = vld [vmem:[%s3506 + $0x4] sm:$0xf]
          %v3509 = vld [vmem:[%s3506 + $0x8] sm:$0xf]
          %v3510 = vld [vmem:[%s3506 + $0xc] sm:$0xf]
          %v3511 = vld [vmem:[%s3506 + $0x10] sm:$0xf]
          %v3512 = vld [vmem:[%s3506 + $0x14] sm:$0xf]
          %v3513 = vld [vmem:[%s3506 + $0x18] sm:$0xf]
          %v3514 = vld [vmem:[%s3506 + $0x1c] sm:$0xf]
          %v3515 = vld [vmem:[%s3506 + $0x20] sm:$0xf]
          %v3516 = vld [vmem:[%s3506 + $0x24] sm:$0xf]
          %v3517 = vld [vmem:[%s3506 + $0x28] sm:$0xf]
          %v3518 = vld [vmem:[%s3506 + $0x2c] sm:$0xf]
          %v3519 = vld [vmem:[%s3506 + $0x30] sm:$0xf]
          %v3520 = vld [vmem:[%s3506 + $0x34] sm:$0xf]
          %v3521 = vld [vmem:[%s3506 + $0x38] sm:$0xf]
          %v3522 = vld [vmem:[%s3506 + $0x3c] sm:$0xf]
          %v3523 = vrot.slane %v3351, 1
          %v3541 = vunpack.c.l.b16 %v3507
          %v3542 = vunpack.c.l.b16 %v3508
          %v3543 = vunpack.c.l.b16 %v3509
          %v3544 = vunpack.c.l.b16 %v3510
          %v3545 = vunpack.c.l.b16 %v3511
          %v3546 = vunpack.c.l.b16 %v3512
          %v3547 = vunpack.c.l.b16 %v3513
          %v3548 = vunpack.c.l.b16 %v3514
          %v3549 = vunpack.c.l.b16 %v3515
          %v3550 = vunpack.c.l.b16 %v3516
          %v3551 = vunpack.c.l.b16 %v3517
          %v3552 = vunpack.c.l.b16 %v3518
          %v3553 = vunpack.c.l.b16 %v3519
          %v3554 = vunpack.c.l.b16 %v3520
          %v3555 = vunpack.c.l.b16 %v3521
          %v3556 = vunpack.c.l.b16 %v3522
          %v3557 = vpack.c.b16 %v3542, %v3541
          %v3558 = vpack.c.b16 %v3544, %v3543
          %v3559 = vpack.c.b16 %v3546, %v3545
          %v3560 = vpack.c.b16 %v3548, %v3547
          %v3561 = vpack.c.b16 %v3550, %v3549
          %v3562 = vpack.c.b16 %v3552, %v3551
          %v3563 = vpack.c.b16 %v3554, %v3553
          %v3564 = vpack.c.b16 %v3556, %v3555
          %3573 = vmatpush.bf16.msra.mxu0 %v3564
          %3574 = vmatpush.bf16.msra.mxu0 %v3563
          %3575 = vmatpush.bf16.msra.mxu0 %v3562
          %3576 = vmatpush.bf16.msra.mxu0 %v3561
          %3577 = vmatpush.bf16.msra.mxu0 %v3560
          %3578 = vmatpush.bf16.msra.mxu0 %v3559
          %3579 = vmatpush.bf16.msra.mxu0 %v3558
          %3580 = vmatpush.bf16.msra.mxu0 %v3557
          %3581 = vmatmul.bf16.gmra.mxu0 %v3523
          %v3582 = vpop.f32.mrf.mxu0
          %v3583 = vadd.f32 0.0, %v3582
          %v3584 = vpop.f32.mrf.mxu0
          %v3585 = vadd.f32 0.0, %v3584
          %3586 = vdwg.mxu0
          %v3587 = vadd.f32 %v3504, %v3583
          %v3588 = vadd.f32 %v3505, %v3585
          %s3589 = scalar_lea.vmem %s4, 1472
          %v3590 = vld [vmem:[%s3589] sm:$0xf]
          %v3591 = vld [vmem:[%s3589 + $0x4] sm:$0xf]
          %v3592 = vld [vmem:[%s3589 + $0x8] sm:$0xf]
          %v3593 = vld [vmem:[%s3589 + $0xc] sm:$0xf]
          %v3594 = vld [vmem:[%s3589 + $0x10] sm:$0xf]
          %v3595 = vld [vmem:[%s3589 + $0x14] sm:$0xf]
          %v3596 = vld [vmem:[%s3589 + $0x18] sm:$0xf]
          %v3597 = vld [vmem:[%s3589 + $0x1c] sm:$0xf]
          %v3598 = vld [vmem:[%s3589 + $0x20] sm:$0xf]
          %v3599 = vld [vmem:[%s3589 + $0x24] sm:$0xf]
          %v3600 = vld [vmem:[%s3589 + $0x28] sm:$0xf]
          %v3601 = vld [vmem:[%s3589 + $0x2c] sm:$0xf]
          %v3602 = vld [vmem:[%s3589 + $0x30] sm:$0xf]
          %v3603 = vld [vmem:[%s3589 + $0x34] sm:$0xf]
          %v3604 = vld [vmem:[%s3589 + $0x38] sm:$0xf]
          %v3605 = vld [vmem:[%s3589 + $0x3c] sm:$0xf]
          %v3606 = vrot.slane %v3435, 1
          %v3607 = vrot.slane %v3437, 2
          %v3608 = vor.u32 %v3606, %v3607
          %v3626 = vunpack.c.l.b16 %v3590
          %v3627 = vunpack.c.l.b16 %v3591
          %v3628 = vunpack.c.l.b16 %v3592
          %v3629 = vunpack.c.l.b16 %v3593
          %v3630 = vunpack.c.l.b16 %v3594
          %v3631 = vunpack.c.l.b16 %v3595
          %v3632 = vunpack.c.l.b16 %v3596
          %v3633 = vunpack.c.l.b16 %v3597
          %v3634 = vunpack.c.l.b16 %v3598
          %v3635 = vunpack.c.l.b16 %v3599
          %v3636 = vunpack.c.l.b16 %v3600
          %v3637 = vunpack.c.l.b16 %v3601
          %v3638 = vunpack.c.l.b16 %v3602
          %v3639 = vunpack.c.l.b16 %v3603
          %v3640 = vunpack.c.l.b16 %v3604
          %v3641 = vunpack.c.l.b16 %v3605
          %v3642 = vpack.c.b16 %v3627, %v3626
          %v3643 = vpack.c.b16 %v3629, %v3628
          %v3644 = vpack.c.b16 %v3631, %v3630
          %v3645 = vpack.c.b16 %v3633, %v3632
          %v3646 = vpack.c.b16 %v3635, %v3634
          %v3647 = vpack.c.b16 %v3637, %v3636
          %v3648 = vpack.c.b16 %v3639, %v3638
          %v3649 = vpack.c.b16 %v3641, %v3640
          %3658 = vmatpush.bf16.msra.mxu0 %v3649
          %3659 = vmatpush.bf16.msra.mxu0 %v3648
          %3660 = vmatpush.bf16.msra.mxu0 %v3647
          %3661 = vmatpush.bf16.msra.mxu0 %v3646
          %3662 = vmatpush.bf16.msra.mxu0 %v3645
          %3663 = vmatpush.bf16.msra.mxu0 %v3644
          %3664 = vmatpush.bf16.msra.mxu0 %v3643
          %3665 = vmatpush.bf16.msra.mxu0 %v3642
          %3666 = vmatmul.bf16.gmra.mxu0 %v3608
          %v3667 = vpop.f32.mrf.mxu0
          %v3668 = vadd.f32 0.0, %v3667
          %v3669 = vpop.f32.mrf.mxu0
          %v3670 = vadd.f32 0.0, %v3669
          %3671 = vdwg.mxu0
          %v3672 = vadd.f32 %v3587, %v3668
          %v3673 = vadd.f32 %v3588, %v3670
          %s3674 = scalar_lea.vmem %s4, 1536
          %v3675 = vld [vmem:[%s3674] sm:$0xf]
          %v3676 = vld [vmem:[%s3674 + $0x4] sm:$0xf]
          %v3677 = vld [vmem:[%s3674 + $0x8] sm:$0xf]
          %v3678 = vld [vmem:[%s3674 + $0xc] sm:$0xf]
          %v3679 = vld [vmem:[%s3674 + $0x10] sm:$0xf]
          %v3680 = vld [vmem:[%s3674 + $0x14] sm:$0xf]
          %v3681 = vld [vmem:[%s3674 + $0x18] sm:$0xf]
          %v3682 = vld [vmem:[%s3674 + $0x1c] sm:$0xf]
          %v3683 = vld [vmem:[%s3674 + $0x20] sm:$0xf]
          %v3684 = vld [vmem:[%s3674 + $0x24] sm:$0xf]
          %v3685 = vld [vmem:[%s3674 + $0x28] sm:$0xf]
          %v3686 = vld [vmem:[%s3674 + $0x2c] sm:$0xf]
          %v3687 = vld [vmem:[%s3674 + $0x30] sm:$0xf]
          %v3688 = vld [vmem:[%s3674 + $0x34] sm:$0xf]
          %v3689 = vld [vmem:[%s3674 + $0x38] sm:$0xf]
          %v3690 = vld [vmem:[%s3674 + $0x3c] sm:$0xf]
          %v3691 = vrot.slane %v3351, 2
          %v3709 = vunpack.c.l.b16 %v3675
          %v3710 = vunpack.c.l.b16 %v3676
          %v3711 = vunpack.c.l.b16 %v3677
          %v3712 = vunpack.c.l.b16 %v3678
          %v3713 = vunpack.c.l.b16 %v3679
          %v3714 = vunpack.c.l.b16 %v3680
          %v3715 = vunpack.c.l.b16 %v3681
          %v3716 = vunpack.c.l.b16 %v3682
          %v3717 = vunpack.c.l.b16 %v3683
          %v3718 = vunpack.c.l.b16 %v3684
          %v3719 = vunpack.c.l.b16 %v3685
          %v3720 = vunpack.c.l.b16 %v3686
          %v3721 = vunpack.c.l.b16 %v3687
          %v3722 = vunpack.c.l.b16 %v3688
          %v3723 = vunpack.c.l.b16 %v3689
          %v3724 = vunpack.c.l.b16 %v3690
          %v3725 = vpack.c.b16 %v3710, %v3709
          %v3726 = vpack.c.b16 %v3712, %v3711
          %v3727 = vpack.c.b16 %v3714, %v3713
          %v3728 = vpack.c.b16 %v3716, %v3715
          %v3729 = vpack.c.b16 %v3718, %v3717
          %v3730 = vpack.c.b16 %v3720, %v3719
          %v3731 = vpack.c.b16 %v3722, %v3721
          %v3732 = vpack.c.b16 %v3724, %v3723
          %3741 = vmatpush.bf16.msra.mxu0 %v3732
          %3742 = vmatpush.bf16.msra.mxu0 %v3731
          %3743 = vmatpush.bf16.msra.mxu0 %v3730
          %3744 = vmatpush.bf16.msra.mxu0 %v3729
          %3745 = vmatpush.bf16.msra.mxu0 %v3728
          %3746 = vmatpush.bf16.msra.mxu0 %v3727
          %3747 = vmatpush.bf16.msra.mxu0 %v3726
          %3748 = vmatpush.bf16.msra.mxu0 %v3725
          %3749 = vmatmul.bf16.gmra.mxu0 %v3691
          %v3750 = vpop.f32.mrf.mxu0
          %v3751 = vadd.f32 0.0, %v3750
          %v3752 = vpop.f32.mrf.mxu0
          %v3753 = vadd.f32 0.0, %v3752
          %3754 = vdwg.mxu0
          %v3755 = vadd.f32 %v3672, %v3751
          %v3756 = vadd.f32 %v3673, %v3753
          %v3757 = vld [vmem:[%s5] sm:$0x1]
          %v3759 = vperm.slane %v3757, 0
          %v3761 = vmul.f32 %v3755, %v3759
          %v3762 = vmul.f32 %v3756, %v3759
          %v3763 = vld [vmem:[%s6] sm:$0x1]
          %v3765 = vperm.slane %v3763, 0
          %v3767 = vadd.f32 %v3761, %v3765
          %v3768 = vadd.f32 %v3762, %v3765
          %v3769 = vmax.f32 %v3767, 0.0
          %v3770 = vmax.f32 %v3768, 0.0
          %v3771 = vpack.c.bf16 %v3769, %v3769
          %v3772 = vpack.c.bf16 %v3770, %v3770
          %s3773 = smul.addr %s1598, 4
          %s3774 = scalar_lea.vmem [#allocation4], %s3773
          %3775 = vst [vmem:[%s3774] sm:$0xf] %v3771
          %vm3776 = vcmask 1040384
          %vm3777 = vsmask.f32 256
          %vm3778 = vmand %vm3776, %vm3777
          %v3779 = vld [vmem:[%s3774 + $0x4] sm:$0x1]
          %v3780 = vsel %vm3778, %v3772, %v3779
          %3781 = vst [vmem:[%s3774 + $0x4] sm:$0x1] %v3780
        $region75: #{convnet_forward.1} parent=55 // loop_footer
          %s1597 = sadd.s32 1, %s1593
        $region76: #{convnet_forward.1} parent=55 // loop_footer_branch
          %1592 = sbr.rel target = $region72
        $region77: #{convnet_forward.1} parent=55 // loop_exit
          _
        %v3782 = vpack.c.bf16 %v1444, %v1444
        loop: start=0, step=1, limit=4
        $region78: #{convnet_forward.1} parent=55 // loop_pre_header
          _
        $region79: #{convnet_forward.1} parent=55 // loop_header
          %s3784 = sphi 0, %s3788
          %p3785 = scmp.ge.s32.totalorder %s3784, 4
        $region80: #{convnet_forward.1} parent=55 // loop_header_branch
          %3787 = sbr.rel (%p3785) target = $region84
        $region81: #{convnet_forward.1} parent=55 // loop_body
          %s3789 = smul.u32 %s3784, 2
          %s3790 = smul.u32 %s3789, 2
          %s3791 = smul.addr %s3790, 4
          %s3792 = scalar_lea.vmem [#allocation4], %s3791
          %v3793 = vld [vmem:[%s3792] sm:$0xf]
          %v3794 = vld [vmem:[%s3792 + $0x4] sm:$0x1]
          %s3795 = sadd.s32 %s3789, 1
          %s3796 = smul.u32 %s3795, 2
          %s3797 = smul.addr %s3796, 4
          %s3798 = scalar_lea.vmem [#allocation4], %s3797
          %v3799 = vld [vmem:[%s3798] sm:$0xf]
          %v3800 = vld [vmem:[%s3798 + $0x4] sm:$0x1]
          %s3801 = sadd.s32 %s3789, 2
          %s3802 = smul.u32 %s3801, 2
          %s3803 = smul.addr %s3802, 4
          %s3804 = scalar_lea.vmem [#allocation4], %s3803
          %v3805 = vld [vmem:[%s3804] sm:$0xf]
          %v3806 = vld [vmem:[%s3804 + $0x4] sm:$0x1]
          %v3807 = vunpack.c.l.bf16 %v3793
          %v3808 = vunpack.c.l.bf16 %v3794
          %v3809 = vunpack.c.l.bf16 %v3799
          %v3810 = vunpack.c.l.bf16 %v3800
          %v3811 = vmax.f32 %v3807, %v3809
          %v3812 = vmax.f32 %v3808, %v3810
          %v3813 = vpack.c.bf16 %v3811, %v3811
          %v3814 = vpack.c.bf16 %v3812, %v3812
          %v3815 = vunpack.c.l.bf16 %v3813
          %v3816 = vunpack.c.l.bf16 %v3814
          %v3817 = vunpack.c.l.bf16 %v3805
          %v3818 = vunpack.c.l.bf16 %v3806
          %v3819 = vmax.f32 %v3815, %v3817
          %v3820 = vmax.f32 %v3816, %v3818
          %v3821 = vpack.c.bf16 %v3819, %v3819
          %v3822 = vpack.c.bf16 %v3820, %v3820
          %v3823 = vunpack.c.l.bf16 %v3821
          %v3825 = vrot.slane %v3823, 1
          %v3827 = vmax.f32 %v3823, %v3825
          %v3828 = vpack.c.bf16 %v3827, %v3827
          %v3829 = vunpack.c.l.bf16 %v3828
          %v3830 = vunpack.c.l.bf16 %v3822
          %vm3832 = vcmask 1045504
          %v3833 = vrot.slane %v3823, 2
          %v3834 = vrot.slane %v3830, 2
          %v3835 = vsel %vm3832, %v3833, %v3834
          %v3837 = vmax.f32 %v3829, %v3835
          %v3838 = vpack.c.bf16 %v3837, %v3837
          %vm3839 = vcmask 56320
          %v3841 = vsel %vm3839, %v3782, 0
          %vm3843 = vcmask 1042432
          %vm3844 = vcmask 1043456
          %v3845 = vsel %vm3843, 4294967295, 65535
          %v3846 = vsel %vm3844, %v3845, 0
          %v3848 = vand.u32 %v3838, %v3846
          %3850 = vmatpush.bf16.msra.mxu0 0
          %3851 = vmatpush.bf16.msra.mxu0 0
          %3852 = vmatpush.bf16.msra.mxu0 0
          %3853 = vmatpush.bf16.msra.mxu0 0
          %3854 = vmatpush.bf16.msra.mxu0 0
          %3855 = vmatpush.bf16.msra.mxu0 0
          %3856 = vmatpush.bf16.msra.mxu0 0
          %3857 = vmatpush.bf16.msra.mxu0 %v3848
          %3858 = vmatmul.bf16.gmra.mxu0 %v3841
          %v3859 = vpop.f32.mrf.mxu0
          %v3860 = vadd.f32 0.0, %v3859
          %v3861 = vpop.f32.mrf.mxu0
          %3862 = vdwg.mxu0
          %v3863 = vpack.c.bf16 %v3860, %v3860
          %s3864 = smul.addr %s3784, 2
          %s3865 = scalar_lea.vmem [#allocation5], %s3864
          %3866 = vst [vmem:[%s3865] sm:$0x3] %v3863
        $region82: #{convnet_forward.1} parent=55 // loop_footer
          %s3788 = sadd.s32 1, %s3784
        $region83: #{convnet_forward.1} parent=55 // loop_footer_branch
          %3783 = sbr.rel target = $region79
        $region84: #{convnet_forward.1} parent=55 // loop_exit
          _
        %v3867 = vld [vmem:[#allocation5] sm:$0x3]
        %v3868 = vld [vmem:[%s7] sm:$0xf]
        %v3869 = vld [vmem:[%s7 + $0x4] sm:$0xf]
        %v3870 = vld [vmem:[%s7 + $0x8] sm:$0xf]
        %v3871 = vld [vmem:[%s7 + $0xc] sm:$0xf]
        %v3872 = vld [vmem:[%s7 + $0x10] sm:$0xf]
        %v3873 = vld [vmem:[%s7 + $0x14] sm:$0xf]
        %v3874 = vld [vmem:[%s7 + $0x18] sm:$0xf]
        %v3875 = vld [vmem:[%s7 + $0x1c] sm:$0xf]
        %v3876 = vld [vmem:[%s7 + $0x20] sm:$0xf]
        %v3877 = vld [vmem:[%s7 + $0x24] sm:$0xf]
        %v3878 = vld [vmem:[%s7 + $0x28] sm:$0xf]
        %v3879 = vld [vmem:[%s7 + $0x2c] sm:$0xf]
        %v3880 = vld [vmem:[%s7 + $0x30] sm:$0xf]
        %v3881 = vld [vmem:[%s7 + $0x34] sm:$0xf]
        %v3882 = vld [vmem:[%s7 + $0x38] sm:$0xf]
        %v3883 = vld [vmem:[%s7 + $0x3c] sm:$0xf]
        %s3884 = scalar_lea.vmem %s7, 64
        %v3885 = vld [vmem:[%s3884] sm:$0xf]
        %v3886 = vld [vmem:[%s3884 + $0x4] sm:$0xf]
        %v3887 = vld [vmem:[%s3884 + $0x8] sm:$0xf]
        %v3888 = vld [vmem:[%s3884 + $0xc] sm:$0xf]
        %v3889 = vld [vmem:[%s3884 + $0x10] sm:$0xf]
        %v3890 = vld [vmem:[%s3884 + $0x14] sm:$0xf]
        %v3891 = vld [vmem:[%s3884 + $0x18] sm:$0xf]
        %v3892 = vld [vmem:[%s3884 + $0x1c] sm:$0xf]
        %v3893 = vld [vmem:[%s3884 + $0x20] sm:$0xf]
        %v3894 = vld [vmem:[%s3884 + $0x24] sm:$0xf]
        %v3895 = vld [vmem:[%s3884 + $0x28] sm:$0xf]
        %v3896 = vld [vmem:[%s3884 + $0x2c] sm:$0xf]
        %v3897 = vld [vmem:[%s3884 + $0x30] sm:$0xf]
        %v3898 = vld [vmem:[%s3884 + $0x34] sm:$0xf]
        %v3899 = vld [vmem:[%s3884 + $0x38] sm:$0xf]
        %v3900 = vld [vmem:[%s3884 + $0x3c] sm:$0xf]
        %3902 = vst [vmem:[#allocation1] ss:$4 sm:$0xff] %v3867
        %v3903 = vld.sshfl [vmem:[#allocation1] sm:$0xff pattern:$0x73625140]
        %v3904 = vshrl.u32 %v3903, 16
        %v3923 = vunpack.c.l.b16 %v3885
        %v3924 = vunpack.c.l.b16 %v3886
        %v3925 = vunpack.c.l.b16 %v3887
        %v3926 = vunpack.c.l.b16 %v3888
        %v3927 = vunpack.c.l.b16 %v3889
        %v3928 = vunpack.c.l.b16 %v3890
        %v3929 = vunpack.c.l.b16 %v3891
        %v3930 = vunpack.c.l.b16 %v3892
        %v3931 = vunpack.c.l.b16 %v3893
        %v3932 = vunpack.c.l.b16 %v3894
        %v3933 = vunpack.c.l.b16 %v3895
        %v3934 = vunpack.c.l.b16 %v3896
        %v3935 = vunpack.c.l.b16 %v3897
        %v3936 = vunpack.c.l.b16 %v3898
        %v3937 = vunpack.c.l.b16 %v3899
        %v3938 = vunpack.c.l.b16 %v3900
        %v3939 = vpack.c.b16 %v3924, %v3923
        %v3940 = vpack.c.b16 %v3926, %v3925
        %v3941 = vpack.c.b16 %v3928, %v3927
        %v3942 = vpack.c.b16 %v3930, %v3929
        %v3943 = vpack.c.b16 %v3932, %v3931
        %v3944 = vpack.c.b16 %v3934, %v3933
        %v3945 = vpack.c.b16 %v3936, %v3935
        %v3946 = vpack.c.b16 %v3938, %v3937
        %3955 = vmatpush.bf16.msra.mxu0 %v3946
        %3956 = vmatpush.bf16.msra.mxu0 %v3945
        %3957 = vmatpush.bf16.msra.mxu0 %v3944
        %3958 = vmatpush.bf16.msra.mxu0 %v3943
        %3959 = vmatpush.bf16.msra.mxu0 %v3942
        %3960 = vmatpush.bf16.msra.mxu0 %v3941
        %3961 = vmatpush.bf16.msra.mxu0 %v3940
        %3962 = vmatpush.bf16.msra.mxu0 %v3939
        %3963 = vmatmul.bf16.gmra.mxu0 %v3904
        %v3964 = vpop.f32.mrf.mxu0
        %v3965 = vadd.f32 0.0, %v3964
        %v3966 = vpop.f32.mrf.mxu0
        %3967 = vdwg.mxu0
        %v3984 = vunpack.c.l.b16 %v3868
        %v3985 = vunpack.c.l.b16 %v3869
        %v3986 = vunpack.c.l.b16 %v3870
        %v3987 = vunpack.c.l.b16 %v3871
        %v3988 = vunpack.c.l.b16 %v3872
        %v3989 = vunpack.c.l.b16 %v3873
        %v3990 = vunpack.c.l.b16 %v3874
        %v3991 = vunpack.c.l.b16 %v3875
        %v3992 = vunpack.c.l.b16 %v3876
        %v3993 = vunpack.c.l.b16 %v3877
        %v3994 = vunpack.c.l.b16 %v3878
        %v3995 = vunpack.c.l.b16 %v3879
        %v3996 = vunpack.c.l.b16 %v3880
        %v3997 = vunpack.c.l.b16 %v3881
        %v3998 = vunpack.c.l.b16 %v3882
        %v3999 = vunpack.c.l.b16 %v3883
        %v4000 = vpack.c.b16 %v3985, %v3984
        %v4001 = vpack.c.b16 %v3987, %v3986
        %v4002 = vpack.c.b16 %v3989, %v3988
        %v4003 = vpack.c.b16 %v3991, %v3990
        %v4004 = vpack.c.b16 %v3993, %v3992
        %v4005 = vpack.c.b16 %v3995, %v3994
        %v4006 = vpack.c.b16 %v3997, %v3996
        %v4007 = vpack.c.b16 %v3999, %v3998
        %4016 = vmatpush.bf16.msra.mxu0 %v4007
        %4017 = vmatpush.bf16.msra.mxu0 %v4006
        %4018 = vmatpush.bf16.msra.mxu0 %v4005
        %4019 = vmatpush.bf16.msra.mxu0 %v4004
        %4020 = vmatpush.bf16.msra.mxu0 %v4003
        %4021 = vmatpush.bf16.msra.mxu0 %v4002
        %4022 = vmatpush.bf16.msra.mxu0 %v4001
        %4023 = vmatpush.bf16.msra.mxu0 %v4000
        %4024 = vmatmul.bf16.gmra.mxu0 %v3867
        %v4025 = vpop.f32.mrf.mxu0
        %v4026 = vadd.f32 %v3965, %v4025
        %v4027 = vpop.f32.mrf.mxu0
        %4028 = vdwg.mxu0
        %s4029 = scalar_lea.vmem %s7, 128
        %v4030 = vld [vmem:[%s4029] sm:$0xf]
        %v4031 = vld [vmem:[%s4029 + $0x4] sm:$0xf]
        %v4032 = vld [vmem:[%s4029 + $0x8] sm:$0xf]
        %v4033 = vld [vmem:[%s4029 + $0xc] sm:$0xf]
        %v4034 = vld [vmem:[%s4029 + $0x10] sm:$0xf]
        %v4035 = vld [vmem:[%s4029 + $0x14] sm:$0xf]
        %v4036 = vld [vmem:[%s4029 + $0x18] sm:$0xf]
        %v4037 = vld [vmem:[%s4029 + $0x1c] sm:$0xf]
        %v4038 = vld [vmem:[%s4029 + $0x20] sm:$0xf]
        %v4039 = vld [vmem:[%s4029 + $0x24] sm:$0xf]
        %v4040 = vld [vmem:[%s4029 + $0x28] sm:$0xf]
        %v4041 = vld [vmem:[%s4029 + $0x2c] sm:$0xf]
        %v4042 = vld [vmem:[%s4029 + $0x30] sm:$0xf]
        %v4043 = vld [vmem:[%s4029 + $0x34] sm:$0xf]
        %v4044 = vld [vmem:[%s4029 + $0x38] sm:$0xf]
        %v4045 = vld [vmem:[%s4029 + $0x3c] sm:$0xf]
        %4046 = vst [vmem:[#allocation1] ss:$4 sm:$0xff] %v3867
        %v4047 = vld.sshfl [vmem:[#allocation1] sm:$0xff pattern:$0x73625140]
        %v4049 = vrot.slane %v4047, 1
        %v4067 = vunpack.c.l.b16 %v4030
        %v4068 = vunpack.c.l.b16 %v4031
        %v4069 = vunpack.c.l.b16 %v4032
        %v4070 = vunpack.c.l.b16 %v4033
        %v4071 = vunpack.c.l.b16 %v4034
        %v4072 = vunpack.c.l.b16 %v4035
        %v4073 = vunpack.c.l.b16 %v4036
        %v4074 = vunpack.c.l.b16 %v4037
        %v4075 = vunpack.c.l.b16 %v4038
        %v4076 = vunpack.c.l.b16 %v4039
        %v4077 = vunpack.c.l.b16 %v4040
        %v4078 = vunpack.c.l.b16 %v4041
        %v4079 = vunpack.c.l.b16 %v4042
        %v4080 = vunpack.c.l.b16 %v4043
        %v4081 = vunpack.c.l.b16 %v4044
        %v4082 = vunpack.c.l.b16 %v4045
        %v4083 = vpack.c.b16 %v4068, %v4067
        %v4084 = vpack.c.b16 %v4070, %v4069
        %v4085 = vpack.c.b16 %v4072, %v4071
        %v4086 = vpack.c.b16 %v4074, %v4073
        %v4087 = vpack.c.b16 %v4076, %v4075
        %v4088 = vpack.c.b16 %v4078, %v4077
        %v4089 = vpack.c.b16 %v4080, %v4079
        %v4090 = vpack.c.b16 %v4082, %v4081
        %4099 = vmatpush.bf16.msra.mxu0 %v4090
        %4100 = vmatpush.bf16.msra.mxu0 %v4089
        %4101 = vmatpush.bf16.msra.mxu0 %v4088
        %4102 = vmatpush.bf16.msra.mxu0 %v4087
        %4103 = vmatpush.bf16.msra.mxu0 %v4086
        %4104 = vmatpush.bf16.msra.mxu0 %v4085
        %4105 = vmatpush.bf16.msra.mxu0 %v4084
        %4106 = vmatpush.bf16.msra.mxu0 %v4083
        %4107 = vmatmul.bf16.gmra.mxu0 %v4049
        %v4108 = vpop.f32.mrf.mxu0
        %v4109 = vadd.f32 0.0, %v4108
        %v4110 = vpop.f32.mrf.mxu0
        %4111 = vdwg.mxu0
        %v4112 = vadd.f32 %v4026, %v4109
        %s4113 = scalar_lea.vmem %s7, 192
        %v4114 = vld [vmem:[%s4113] sm:$0xf]
        %v4115 = vld [vmem:[%s4113 + $0x4] sm:$0xf]
        %v4116 = vld [vmem:[%s4113 + $0x8] sm:$0xf]
        %v4117 = vld [vmem:[%s4113 + $0xc] sm:$0xf]
        %v4118 = vld [vmem:[%s4113 + $0x10] sm:$0xf]
        %v4119 = vld [vmem:[%s4113 + $0x14] sm:$0xf]
        %v4120 = vld [vmem:[%s4113 + $0x18] sm:$0xf]
        %v4121 = vld [vmem:[%s4113 + $0x1c] sm:$0xf]
        %v4122 = vld [vmem:[%s4113 + $0x20] sm:$0xf]
        %v4123 = vld [vmem:[%s4113 + $0x24] sm:$0xf]
        %v4124 = vld [vmem:[%s4113 + $0x28] sm:$0xf]
        %v4125 = vld [vmem:[%s4113 + $0x2c] sm:$0xf]
        %v4126 = vld [vmem:[%s4113 + $0x30] sm:$0xf]
        %v4127 = vld [vmem:[%s4113 + $0x34] sm:$0xf]
        %v4128 = vld [vmem:[%s4113 + $0x38] sm:$0xf]
        %v4129 = vld [vmem:[%s4113 + $0x3c] sm:$0xf]
        %4130 = vst [vmem:[#allocation1] ss:$4 sm:$0xff] %v3867
        %v4131 = vld.sshfl [vmem:[#allocation1] sm:$0xff pattern:$0x73625140]
        %v4132 = vshrl.u32 %v4131, 16
        %v4134 = vrot.slane %v4132, 1
        %v4152 = vunpack.c.l.b16 %v4114
        %v4153 = vunpack.c.l.b16 %v4115
        %v4154 = vunpack.c.l.b16 %v4116
        %v4155 = vunpack.c.l.b16 %v4117
        %v4156 = vunpack.c.l.b16 %v4118
        %v4157 = vunpack.c.l.b16 %v4119
        %v4158 = vunpack.c.l.b16 %v4120
        %v4159 = vunpack.c.l.b16 %v4121
        %v4160 = vunpack.c.l.b16 %v4122
        %v4161 = vunpack.c.l.b16 %v4123
        %v4162 = vunpack.c.l.b16 %v4124
        %v4163 = vunpack.c.l.b16 %v4125
        %v4164 = vunpack.c.l.b16 %v4126
        %v4165 = vunpack.c.l.b16 %v4127
        %v4166 = vunpack.c.l.b16 %v4128
        %v4167 = vunpack.c.l.b16 %v4129
        %v4168 = vpack.c.b16 %v4153, %v4152
        %v4169 = vpack.c.b16 %v4155, %v4154
        %v4170 = vpack.c.b16 %v4157, %v4156
        %v4171 = vpack.c.b16 %v4159, %v4158
        %v4172 = vpack.c.b16 %v4161, %v4160
        %v4173 = vpack.c.b16 %v4163, %v4162
        %v4174 = vpack.c.b16 %v4165, %v4164
        %v4175 = vpack.c.b16 %v4167, %v4166
        %4184 = vmatpush.bf16.msra.mxu0 %v4175
        %4185 = vmatpush.bf16.msra.mxu0 %v4174
        %4186 = vmatpush.bf16.msra.mxu0 %v4173
        %4187 = vmatpush.bf16.msra.mxu0 %v4172
        %4188 = vmatpush.bf16.msra.mxu0 %v4171
        %4189 = vmatpush.bf16.msra.mxu0 %v4170
        %4190 = vmatpush.bf16.msra.mxu0 %v4169
        %4191 = vmatpush.bf16.msra.mxu0 %v4168
        %4192 = vmatmul.bf16.gmra.mxu0 %v4134
        %v4193 = vpop.f32.mrf.mxu0
        %v4194 = vadd.f32 0.0, %v4193
        %v4195 = vpop.f32.mrf.mxu0
        %4196 = vdwg.mxu0
        %v4197 = vadd.f32 %v4112, %v4194
        %s4198 = scalar_lea.vmem [#allocation5], 2
        %v4199 = vld [vmem:[%s4198] sm:$0x3]
        %s4200 = scalar_lea.vmem %s7, 256
        %v4201 = vld [vmem:[%s4200] sm:$0xf]
        %v4202 = vld [vmem:[%s4200 + $0x4] sm:$0xf]
        %v4203 = vld [vmem:[%s4200 + $0x8] sm:$0xf]
        %v4204 = vld [vmem:[%s4200 + $0xc] sm:$0xf]
        %v4205 = vld [vmem:[%s4200 + $0x10] sm:$0xf]
        %v4206 = vld [vmem:[%s4200 + $0x14] sm:$0xf]
        %v4207 = vld [vmem:[%s4200 + $0x18] sm:$0xf]
        %v4208 = vld [vmem:[%s4200 + $0x1c] sm:$0xf]
        %v4209 = vld [vmem:[%s4200 + $0x20] sm:$0xf]
        %v4210 = vld [vmem:[%s4200 + $0x24] sm:$0xf]
        %v4211 = vld [vmem:[%s4200 + $0x28] sm:$0xf]
        %v4212 = vld [vmem:[%s4200 + $0x2c] sm:$0xf]
        %v4213 = vld [vmem:[%s4200 + $0x30] sm:$0xf]
        %v4214 = vld [vmem:[%s4200 + $0x34] sm:$0xf]
        %v4215 = vld [vmem:[%s4200 + $0x38] sm:$0xf]
        %v4216 = vld [vmem:[%s4200 + $0x3c] sm:$0xf]
        %v4233 = vunpack.c.l.b16 %v4201
        %v4234 = vunpack.c.l.b16 %v4202
        %v4235 = vunpack.c.l.b16 %v4203
        %v4236 = vunpack.c.l.b16 %v4204
        %v4237 = vunpack.c.l.b16 %v4205
        %v4238 = vunpack.c.l.b16 %v4206
        %v4239 = vunpack.c.l.b16 %v4207
        %v4240 = vunpack.c.l.b16 %v4208
        %v4241 = vunpack.c.l.b16 %v4209
        %v4242 = vunpack.c.l.b16 %v4210
        %v4243 = vunpack.c.l.b16 %v4211
        %v4244 = vunpack.c.l.b16 %v4212
        %v4245 = vunpack.c.l.b16 %v4213
        %v4246 = vunpack.c.l.b16 %v4214
        %v4247 = vunpack.c.l.b16 %v4215
        %v4248 = vunpack.c.l.b16 %v4216
        %v4249 = vpack.c.b16 %v4234, %v4233
        %v4250 = vpack.c.b16 %v4236, %v4235
        %v4251 = vpack.c.b16 %v4238, %v4237
        %v4252 = vpack.c.b16 %v4240, %v4239
        %v4253 = vpack.c.b16 %v4242, %v4241
        %v4254 = vpack.c.b16 %v4244, %v4243
        %v4255 = vpack.c.b16 %v4246, %v4245
        %v4256 = vpack.c.b16 %v4248, %v4247
        %4265 = vmatpush.bf16.msra.mxu0 %v4256
        %4266 = vmatpush.bf16.msra.mxu0 %v4255
        %4267 = vmatpush.bf16.msra.mxu0 %v4254
        %4268 = vmatpush.bf16.msra.mxu0 %v4253
        %4269 = vmatpush.bf16.msra.mxu0 %v4252
        %4270 = vmatpush.bf16.msra.mxu0 %v4251
        %4271 = vmatpush.bf16.msra.mxu0 %v4250
        %4272 = vmatpush.bf16.msra.mxu0 %v4249
        %4273 = vmatmul.bf16.gmra.mxu0 %v4199
        %v4274 = vpop.f32.mrf.mxu0
        %v4275 = vadd.f32 0.0, %v4274
        %v4276 = vpop.f32.mrf.mxu0
        %4277 = vdwg.mxu0
        %v4278 = vadd.f32 %v4197, %v4275
        %s4279 = scalar_lea.vmem %s7, 320
        %v4280 = vld [vmem:[%s4279] sm:$0xf]
        %v4281 = vld [vmem:[%s4279 + $0x4] sm:$0xf]
        %v4282 = vld [vmem:[%s4279 + $0x8] sm:$0xf]
        %v4283 = vld [vmem:[%s4279 + $0xc] sm:$0xf]
        %v4284 = vld [vmem:[%s4279 + $0x10] sm:$0xf]
        %v4285 = vld [vmem:[%s4279 + $0x14] sm:$0xf]
        %v4286 = vld [vmem:[%s4279 + $0x18] sm:$0xf]
        %v4287 = vld [vmem:[%s4279 + $0x1c] sm:$0xf]
        %v4288 = vld [vmem:[%s4279 + $0x20] sm:$0xf]
        %v4289 = vld [vmem:[%s4279 + $0x24] sm:$0xf]
        %v4290 = vld [vmem:[%s4279 + $0x28] sm:$0xf]
        %v4291 = vld [vmem:[%s4279 + $0x2c] sm:$0xf]
        %v4292 = vld [vmem:[%s4279 + $0x30] sm:$0xf]
        %v4293 = vld [vmem:[%s4279 + $0x34] sm:$0xf]
        %v4294 = vld [vmem:[%s4279 + $0x38] sm:$0xf]
        %v4295 = vld [vmem:[%s4279 + $0x3c] sm:$0xf]
        %4297 = vst [vmem:[#allocation1] ss:$4 sm:$0xff] %v4199
        %v4298 = vld.sshfl [vmem:[#allocation1] sm:$0xff pattern:$0x73625140]
        %v4299 = vshrl.u32 %v4298, 16
        %v4318 = vunpack.c.l.b16 %v4280
        %v4319 = vunpack.c.l.b16 %v4281
        %v4320 = vunpack.c.l.b16 %v4282
        %v4321 = vunpack.c.l.b16 %v4283
        %v4322 = vunpack.c.l.b16 %v4284
        %v4323 = vunpack.c.l.b16 %v4285
        %v4324 = vunpack.c.l.b16 %v4286
        %v4325 = vunpack.c.l.b16 %v4287
        %v4326 = vunpack.c.l.b16 %v4288
        %v4327 = vunpack.c.l.b16 %v4289
        %v4328 = vunpack.c.l.b16 %v4290
        %v4329 = vunpack.c.l.b16 %v4291
        %v4330 = vunpack.c.l.b16 %v4292
        %v4331 = vunpack.c.l.b16 %v4293
        %v4332 = vunpack.c.l.b16 %v4294
        %v4333 = vunpack.c.l.b16 %v4295
        %v4334 = vpack.c.b16 %v4319, %v4318
        %v4335 = vpack.c.b16 %v4321, %v4320
        %v4336 = vpack.c.b16 %v4323, %v4322
        %v4337 = vpack.c.b16 %v4325, %v4324
        %v4338 = vpack.c.b16 %v4327, %v4326
        %v4339 = vpack.c.b16 %v4329, %v4328
        %v4340 = vpack.c.b16 %v4331, %v4330
        %v4341 = vpack.c.b16 %v4333, %v4332
        %4350 = vmatpush.bf16.msra.mxu0 %v4341
        %4351 = vmatpush.bf16.msra.mxu0 %v4340
        %4352 = vmatpush.bf16.msra.mxu0 %v4339
        %4353 = vmatpush.bf16.msra.mxu0 %v4338
        %4354 = vmatpush.bf16.msra.mxu0 %v4337
        %4355 = vmatpush.bf16.msra.mxu0 %v4336
        %4356 = vmatpush.bf16.msra.mxu0 %v4335
        %4357 = vmatpush.bf16.msra.mxu0 %v4334
        %4358 = vmatmul.bf16.gmra.mxu0 %v4299
        %v4359 = vpop.f32.mrf.mxu0
        %v4360 = vadd.f32 0.0, %v4359
        %v4361 = vpop.f32.mrf.mxu0
        %4362 = vdwg.mxu0
        %v4363 = vadd.f32 %v4278, %v4360
        %s4364 = scalar_lea.vmem %s7, 384
        %v4365 = vld [vmem:[%s4364] sm:$0xf]
        %v4366 = vld [vmem:[%s4364 + $0x4] sm:$0xf]
        %v4367 = vld [vmem:[%s4364 + $0x8] sm:$0xf]
        %v4368 = vld [vmem:[%s4364 + $0xc] sm:$0xf]
        %v4369 = vld [vmem:[%s4364 + $0x10] sm:$0xf]
        %v4370 = vld [vmem:[%s4364 + $0x14] sm:$0xf]
        %v4371 = vld [vmem:[%s4364 + $0x18] sm:$0xf]
        %v4372 = vld [vmem:[%s4364 + $0x1c] sm:$0xf]
        %v4373 = vld [vmem:[%s4364 + $0x20] sm:$0xf]
        %v4374 = vld [vmem:[%s4364 + $0x24] sm:$0xf]
        %v4375 = vld [vmem:[%s4364 + $0x28] sm:$0xf]
        %v4376 = vld [vmem:[%s4364 + $0x2c] sm:$0xf]
        %v4377 = vld [vmem:[%s4364 + $0x30] sm:$0xf]
        %v4378 = vld [vmem:[%s4364 + $0x34] sm:$0xf]
        %v4379 = vld [vmem:[%s4364 + $0x38] sm:$0xf]
        %v4380 = vld [vmem:[%s4364 + $0x3c] sm:$0xf]
        %4381 = vst [vmem:[#allocation1] ss:$4 sm:$0xff] %v4199
        %v4382 = vld.sshfl [vmem:[#allocation1] sm:$0xff pattern:$0x73625140]
        %v4384 = vrot.slane %v4382, 1
        %v4402 = vunpack.c.l.b16 %v4365
        %v4403 = vunpack.c.l.b16 %v4366
        %v4404 = vunpack.c.l.b16 %v4367
        %v4405 = vunpack.c.l.b16 %v4368
        %v4406 = vunpack.c.l.b16 %v4369
        %v4407 = vunpack.c.l.b16 %v4370
        %v4408 = vunpack.c.l.b16 %v4371
        %v4409 = vunpack.c.l.b16 %v4372
        %v4410 = vunpack.c.l.b16 %v4373
        %v4411 = vunpack.c.l.b16 %v4374
        %v4412 = vunpack.c.l.b16 %v4375
        %v4413 = vunpack.c.l.b16 %v4376
        %v4414 = vunpack.c.l.b16 %v4377
        %v4415 = vunpack.c.l.b16 %v4378
        %v4416 = vunpack.c.l.b16 %v4379
        %v4417 = vunpack.c.l.b16 %v4380
        %v4418 = vpack.c.b16 %v4403, %v4402
        %v4419 = vpack.c.b16 %v4405, %v4404
        %v4420 = vpack.c.b16 %v4407, %v4406
        %v4421 = vpack.c.b16 %v4409, %v4408
        %v4422 = vpack.c.b16 %v4411, %v4410
        %v4423 = vpack.c.b16 %v4413, %v4412
        %v4424 = vpack.c.b16 %v4415, %v4414
        %v4425 = vpack.c.b16 %v4417, %v4416
        %4434 = vmatpush.bf16.msra.mxu0 %v4425
        %4435 = vmatpush.bf16.msra.mxu0 %v4424
        %4436 = vmatpush.bf16.msra.mxu0 %v4423
        %4437 = vmatpush.bf16.msra.mxu0 %v4422
        %4438 = vmatpush.bf16.msra.mxu0 %v4421
        %4439 = vmatpush.bf16.msra.mxu0 %v4420
        %4440 = vmatpush.bf16.msra.mxu0 %v4419
        %4441 = vmatpush.bf16.msra.mxu0 %v4418
        %4442 = vmatmul.bf16.gmra.mxu0 %v4384
        %v4443 = vpop.f32.mrf.mxu0
        %v4444 = vadd.f32 0.0, %v4443
        %v4445 = vpop.f32.mrf.mxu0
        %4446 = vdwg.mxu0
        %v4447 = vadd.f32 %v4363, %v4444
        %s4448 = scalar_lea.vmem %s7, 448
        %v4449 = vld [vmem:[%s4448] sm:$0xf]
        %v4450 = vld [vmem:[%s4448 + $0x4] sm:$0xf]
        %v4451 = vld [vmem:[%s4448 + $0x8] sm:$0xf]
        %v4452 = vld [vmem:[%s4448 + $0xc] sm:$0xf]
        %v4453 = vld [vmem:[%s4448 + $0x10] sm:$0xf]
        %v4454 = vld [vmem:[%s4448 + $0x14] sm:$0xf]
        %v4455 = vld [vmem:[%s4448 + $0x18] sm:$0xf]
        %v4456 = vld [vmem:[%s4448 + $0x1c] sm:$0xf]
        %v4457 = vld [vmem:[%s4448 + $0x20] sm:$0xf]
        %v4458 = vld [vmem:[%s4448 + $0x24] sm:$0xf]
        %v4459 = vld [vmem:[%s4448 + $0x28] sm:$0xf]
        %v4460 = vld [vmem:[%s4448 + $0x2c] sm:$0xf]
        %v4461 = vld [vmem:[%s4448 + $0x30] sm:$0xf]
        %v4462 = vld [vmem:[%s4448 + $0x34] sm:$0xf]
        %v4463 = vld [vmem:[%s4448 + $0x38] sm:$0xf]
        %v4464 = vld [vmem:[%s4448 + $0x3c] sm:$0xf]
        %4465 = vst [vmem:[#allocation1] ss:$4 sm:$0xff] %v4199
        %v4466 = vld.sshfl [vmem:[#allocation1] sm:$0xff pattern:$0x73625140]
        %v4467 = vshrl.u32 %v4466, 16
        %v4469 = vrot.slane %v4467, 1
        %v4487 = vunpack.c.l.b16 %v4449
        %v4488 = vunpack.c.l.b16 %v4450
        %v4489 = vunpack.c.l.b16 %v4451
        %v4490 = vunpack.c.l.b16 %v4452
        %v4491 = vunpack.c.l.b16 %v4453
        %v4492 = vunpack.c.l.b16 %v4454
        %v4493 = vunpack.c.l.b16 %v4455
        %v4494 = vunpack.c.l.b16 %v4456
        %v4495 = vunpack.c.l.b16 %v4457
        %v4496 = vunpack.c.l.b16 %v4458
        %v4497 = vunpack.c.l.b16 %v4459
        %v4498 = vunpack.c.l.b16 %v4460
        %v4499 = vunpack.c.l.b16 %v4461
        %v4500 = vunpack.c.l.b16 %v4462
        %v4501 = vunpack.c.l.b16 %v4463
        %v4502 = vunpack.c.l.b16 %v4464
        %v4503 = vpack.c.b16 %v4488, %v4487
        %v4504 = vpack.c.b16 %v4490, %v4489
        %v4505 = vpack.c.b16 %v4492, %v4491
        %v4506 = vpack.c.b16 %v4494, %v4493
        %v4507 = vpack.c.b16 %v4496, %v4495
        %v4508 = vpack.c.b16 %v4498, %v4497
        %v4509 = vpack.c.b16 %v4500, %v4499
        %v4510 = vpack.c.b16 %v4502, %v4501
        %4519 = vmatpush.bf16.msra.mxu0 %v4510
        %4520 = vmatpush.bf16.msra.mxu0 %v4509
        %4521 = vmatpush.bf16.msra.mxu0 %v4508
        %4522 = vmatpush.bf16.msra.mxu0 %v4507
        %4523 = vmatpush.bf16.msra.mxu0 %v4506
        %4524 = vmatpush.bf16.msra.mxu0 %v4505
        %4525 = vmatpush.bf16.msra.mxu0 %v4504
        %4526 = vmatpush.bf16.msra.mxu0 %v4503
        %4527 = vmatmul.bf16.gmra.mxu0 %v4469
        %v4528 = vpop.f32.mrf.mxu0
        %v4529 = vadd.f32 0.0, %v4528
        %v4530 = vpop.f32.mrf.mxu0
        %4531 = vdwg.mxu0
        %v4532 = vadd.f32 %v4447, %v4529
        %s4533 = scalar_lea.vmem [#allocation5], 4
        %v4534 = vld [vmem:[%s4533] sm:$0x3]
        %s4535 = scalar_lea.vmem %s7, 512
        %v4536 = vld [vmem:[%s4535] sm:$0xf]
        %v4537 = vld [vmem:[%s4535 + $0x4] sm:$0xf]
        %v4538 = vld [vmem:[%s4535 + $0x8] sm:$0xf]
        %v4539 = vld [vmem:[%s4535 + $0xc] sm:$0xf]
        %v4540 = vld [vmem:[%s4535 + $0x10] sm:$0xf]
        %v4541 = vld [vmem:[%s4535 + $0x14] sm:$0xf]
        %v4542 = vld [vmem:[%s4535 + $0x18] sm:$0xf]
        %v4543 = vld [vmem:[%s4535 + $0x1c] sm:$0xf]
        %v4544 = vld [vmem:[%s4535 + $0x20] sm:$0xf]
        %v4545 = vld [vmem:[%s4535 + $0x24] sm:$0xf]
        %v4546 = vld [vmem:[%s4535 + $0x28] sm:$0xf]
        %v4547 = vld [vmem:[%s4535 + $0x2c] sm:$0xf]
        %v4548 = vld [vmem:[%s4535 + $0x30] sm:$0xf]
        %v4549 = vld [vmem:[%s4535 + $0x34] sm:$0xf]
        %v4550 = vld [vmem:[%s4535 + $0x38] sm:$0xf]
        %v4551 = vld [vmem:[%s4535 + $0x3c] sm:$0xf]
        %v4568 = vunpack.c.l.b16 %v4536
        %v4569 = vunpack.c.l.b16 %v4537
        %v4570 = vunpack.c.l.b16 %v4538
        %v4571 = vunpack.c.l.b16 %v4539
        %v4572 = vunpack.c.l.b16 %v4540
        %v4573 = vunpack.c.l.b16 %v4541
        %v4574 = vunpack.c.l.b16 %v4542
        %v4575 = vunpack.c.l.b16 %v4543
        %v4576 = vunpack.c.l.b16 %v4544
        %v4577 = vunpack.c.l.b16 %v4545
        %v4578 = vunpack.c.l.b16 %v4546
        %v4579 = vunpack.c.l.b16 %v4547
        %v4580 = vunpack.c.l.b16 %v4548
        %v4581 = vunpack.c.l.b16 %v4549
        %v4582 = vunpack.c.l.b16 %v4550
        %v4583 = vunpack.c.l.b16 %v4551
        %v4584 = vpack.c.b16 %v4569, %v4568
        %v4585 = vpack.c.b16 %v4571, %v4570
        %v4586 = vpack.c.b16 %v4573, %v4572
        %v4587 = vpack.c.b16 %v4575, %v4574
        %v4588 = vpack.c.b16 %v4577, %v4576
        %v4589 = vpack.c.b16 %v4579, %v4578
        %v4590 = vpack.c.b16 %v4581, %v4580
        %v4591 = vpack.c.b16 %v4583, %v4582
        %4600 = vmatpush.bf16.msra.mxu0 %v4591
        %4601 = vmatpush.bf16.msra.mxu0 %v4590
        %4602 = vmatpush.bf16.msra.mxu0 %v4589
        %4603 = vmatpush.bf16.msra.mxu0 %v4588
        %4604 = vmatpush.bf16.msra.mxu0 %v4587
        %4605 = vmatpush.bf16.msra.mxu0 %v4586
        %4606 = vmatpush.bf16.msra.mxu0 %v4585
        %4607 = vmatpush.bf16.msra.mxu0 %v4584
        %4608 = vmatmul.bf16.gmra.mxu0 %v4534
        %v4609 = vpop.f32.mrf.mxu0
        %v4610 = vadd.f32 0.0, %v4609
        %v4611 = vpop.f32.mrf.mxu0
        %4612 = vdwg.mxu0
        %v4613 = vadd.f32 %v4532, %v4610
        %s4614 = scalar_lea.vmem %s7, 576
        %v4615 = vld [vmem:[%s4614] sm:$0xf]
        %v4616 = vld [vmem:[%s4614 + $0x4] sm:$0xf]
        %v4617 = vld [vmem:[%s4614 + $0x8] sm:$0xf]
        %v4618 = vld [vmem:[%s4614 + $0xc] sm:$0xf]
        %v4619 = vld [vmem:[%s4614 + $0x10] sm:$0xf]
        %v4620 = vld [vmem:[%s4614 + $0x14] sm:$0xf]
        %v4621 = vld [vmem:[%s4614 + $0x18] sm:$0xf]
        %v4622 = vld [vmem:[%s4614 + $0x1c] sm:$0xf]
        %v4623 = vld [vmem:[%s4614 + $0x20] sm:$0xf]
        %v4624 = vld [vmem:[%s4614 + $0x24] sm:$0xf]
        %v4625 = vld [vmem:[%s4614 + $0x28] sm:$0xf]
        %v4626 = vld [vmem:[%s4614 + $0x2c] sm:$0xf]
        %v4627 = vld [vmem:[%s4614 + $0x30] sm:$0xf]
        %v4628 = vld [vmem:[%s4614 + $0x34] sm:$0xf]
        %v4629 = vld [vmem:[%s4614 + $0x38] sm:$0xf]
        %v4630 = vld [vmem:[%s4614 + $0x3c] sm:$0xf]
        %4632 = vst [vmem:[#allocation1] ss:$4 sm:$0xff] %v4534
        %v4633 = vld.sshfl [vmem:[#allocation1] sm:$0xff pattern:$0x73625140]
        %v4634 = vshrl.u32 %v4633, 16
        %v4653 = vunpack.c.l.b16 %v4615
        %v4654 = vunpack.c.l.b16 %v4616
        %v4655 = vunpack.c.l.b16 %v4617
        %v4656 = vunpack.c.l.b16 %v4618
        %v4657 = vunpack.c.l.b16 %v4619
        %v4658 = vunpack.c.l.b16 %v4620
        %v4659 = vunpack.c.l.b16 %v4621
        %v4660 = vunpack.c.l.b16 %v4622
        %v4661 = vunpack.c.l.b16 %v4623
        %v4662 = vunpack.c.l.b16 %v4624
        %v4663 = vunpack.c.l.b16 %v4625
        %v4664 = vunpack.c.l.b16 %v4626
        %v4665 = vunpack.c.l.b16 %v4627
        %v4666 = vunpack.c.l.b16 %v4628
        %v4667 = vunpack.c.l.b16 %v4629
        %v4668 = vunpack.c.l.b16 %v4630
        %v4669 = vpack.c.b16 %v4654, %v4653
        %v4670 = vpack.c.b16 %v4656, %v4655
        %v4671 = vpack.c.b16 %v4658, %v4657
        %v4672 = vpack.c.b16 %v4660, %v4659
        %v4673 = vpack.c.b16 %v4662, %v4661
        %v4674 = vpack.c.b16 %v4664, %v4663
        %v4675 = vpack.c.b16 %v4666, %v4665
        %v4676 = vpack.c.b16 %v4668, %v4667
        %4685 = vmatpush.bf16.msra.mxu0 %v4676
        %4686 = vmatpush.bf16.msra.mxu0 %v4675
        %4687 = vmatpush.bf16.msra.mxu0 %v4674
        %4688 = vmatpush.bf16.msra.mxu0 %v4673
        %4689 = vmatpush.bf16.msra.mxu0 %v4672
        %4690 = vmatpush.bf16.msra.mxu0 %v4671
        %4691 = vmatpush.bf16.msra.mxu0 %v4670
        %4692 = vmatpush.bf16.msra.mxu0 %v4669
        %4693 = vmatmul.bf16.gmra.mxu0 %v4634
        %v4694 = vpop.f32.mrf.mxu0
        %v4695 = vadd.f32 0.0, %v4694
        %v4696 = vpop.f32.mrf.mxu0
        %4697 = vdwg.mxu0
        %v4698 = vadd.f32 %v4613, %v4695
        %s4699 = scalar_lea.vmem %s7, 640
        %v4700 = vld [vmem:[%s4699] sm:$0xf]
        %v4701 = vld [vmem:[%s4699 + $0x4] sm:$0xf]
        %v4702 = vld [vmem:[%s4699 + $0x8] sm:$0xf]
        %v4703 = vld [vmem:[%s4699 + $0xc] sm:$0xf]
        %v4704 = vld [vmem:[%s4699 + $0x10] sm:$0xf]
        %v4705 = vld [vmem:[%s4699 + $0x14] sm:$0xf]
        %v4706 = vld [vmem:[%s4699 + $0x18] sm:$0xf]
        %v4707 = vld [vmem:[%s4699 + $0x1c] sm:$0xf]
        %v4708 = vld [vmem:[%s4699 + $0x20] sm:$0xf]
        %v4709 = vld [vmem:[%s4699 + $0x24] sm:$0xf]
        %v4710 = vld [vmem:[%s4699 + $0x28] sm:$0xf]
        %v4711 = vld [vmem:[%s4699 + $0x2c] sm:$0xf]
        %v4712 = vld [vmem:[%s4699 + $0x30] sm:$0xf]
        %v4713 = vld [vmem:[%s4699 + $0x34] sm:$0xf]
        %v4714 = vld [vmem:[%s4699 + $0x38] sm:$0xf]
        %v4715 = vld [vmem:[%s4699 + $0x3c] sm:$0xf]
        %4716 = vst [vmem:[#allocation1] ss:$4 sm:$0xff] %v4534
        %v4717 = vld.sshfl [vmem:[#allocation1] sm:$0xff pattern:$0x73625140]
        %v4719 = vrot.slane %v4717, 1
        %v4737 = vunpack.c.l.b16 %v4700
        %v4738 = vunpack.c.l.b16 %v4701
        %v4739 = vunpack.c.l.b16 %v4702
        %v4740 = vunpack.c.l.b16 %v4703
        %v4741 = vunpack.c.l.b16 %v4704
        %v4742 = vunpack.c.l.b16 %v4705
        %v4743 = vunpack.c.l.b16 %v4706
        %v4744 = vunpack.c.l.b16 %v4707
        %v4745 = vunpack.c.l.b16 %v4708
        %v4746 = vunpack.c.l.b16 %v4709
        %v4747 = vunpack.c.l.b16 %v4710
        %v4748 = vunpack.c.l.b16 %v4711
        %v4749 = vunpack.c.l.b16 %v4712
        %v4750 = vunpack.c.l.b16 %v4713
        %v4751 = vunpack.c.l.b16 %v4714
        %v4752 = vunpack.c.l.b16 %v4715
        %v4753 = vpack.c.b16 %v4738, %v4737
        %v4754 = vpack.c.b16 %v4740, %v4739
        %v4755 = vpack.c.b16 %v4742, %v4741
        %v4756 = vpack.c.b16 %v4744, %v4743
        %v4757 = vpack.c.b16 %v4746, %v4745
        %v4758 = vpack.c.b16 %v4748, %v4747
        %v4759 = vpack.c.b16 %v4750, %v4749
        %v4760 = vpack.c.b16 %v4752, %v4751
        %4769 = vmatpush.bf16.msra.mxu0 %v4760
        %4770 = vmatpush.bf16.msra.mxu0 %v4759
        %4771 = vmatpush.bf16.msra.mxu0 %v4758
        %4772 = vmatpush.bf16.msra.mxu0 %v4757
        %4773 = vmatpush.bf16.msra.mxu0 %v4756
        %4774 = vmatpush.bf16.msra.mxu0 %v4755
        %4775 = vmatpush.bf16.msra.mxu0 %v4754
        %4776 = vmatpush.bf16.msra.mxu0 %v4753
        %4777 = vmatmul.bf16.gmra.mxu0 %v4719
        %v4778 = vpop.f32.mrf.mxu0
        %v4779 = vadd.f32 0.0, %v4778
        %v4780 = vpop.f32.mrf.mxu0
        %4781 = vdwg.mxu0
        %v4782 = vadd.f32 %v4698, %v4779
        %s4783 = scalar_lea.vmem %s7, 704
        %v4784 = vld [vmem:[%s4783] sm:$0xf]
        %v4785 = vld [vmem:[%s4783 + $0x4] sm:$0xf]
        %v4786 = vld [vmem:[%s4783 + $0x8] sm:$0xf]
        %v4787 = vld [vmem:[%s4783 + $0xc] sm:$0xf]
        %v4788 = vld [vmem:[%s4783 + $0x10] sm:$0xf]
        %v4789 = vld [vmem:[%s4783 + $0x14] sm:$0xf]
        %v4790 = vld [vmem:[%s4783 + $0x18] sm:$0xf]
        %v4791 = vld [vmem:[%s4783 + $0x1c] sm:$0xf]
        %v4792 = vld [vmem:[%s4783 + $0x20] sm:$0xf]
        %v4793 = vld [vmem:[%s4783 + $0x24] sm:$0xf]
        %v4794 = vld [vmem:[%s4783 + $0x28] sm:$0xf]
        %v4795 = vld [vmem:[%s4783 + $0x2c] sm:$0xf]
        %v4796 = vld [vmem:[%s4783 + $0x30] sm:$0xf]
        %v4797 = vld [vmem:[%s4783 + $0x34] sm:$0xf]
        %v4798 = vld [vmem:[%s4783 + $0x38] sm:$0xf]
        %v4799 = vld [vmem:[%s4783 + $0x3c] sm:$0xf]
        %4800 = vst [vmem:[#allocation1] ss:$4 sm:$0xff] %v4534
        %v4801 = vld.sshfl [vmem:[#allocation1] sm:$0xff pattern:$0x73625140]
        %v4802 = vshrl.u32 %v4801, 16
        %v4804 = vrot.slane %v4802, 1
        %v4822 = vunpack.c.l.b16 %v4784
        %v4823 = vunpack.c.l.b16 %v4785
        %v4824 = vunpack.c.l.b16 %v4786
        %v4825 = vunpack.c.l.b16 %v4787
        %v4826 = vunpack.c.l.b16 %v4788
        %v4827 = vunpack.c.l.b16 %v4789
        %v4828 = vunpack.c.l.b16 %v4790
        %v4829 = vunpack.c.l.b16 %v4791
        %v4830 = vunpack.c.l.b16 %v4792
        %v4831 = vunpack.c.l.b16 %v4793
        %v4832 = vunpack.c.l.b16 %v4794
        %v4833 = vunpack.c.l.b16 %v4795
        %v4834 = vunpack.c.l.b16 %v4796
        %v4835 = vunpack.c.l.b16 %v4797
        %v4836 = vunpack.c.l.b16 %v4798
        %v4837 = vunpack.c.l.b16 %v4799
        %v4838 = vpack.c.b16 %v4823, %v4822
        %v4839 = vpack.c.b16 %v4825, %v4824
        %v4840 = vpack.c.b16 %v4827, %v4826
        %v4841 = vpack.c.b16 %v4829, %v4828
        %v4842 = vpack.c.b16 %v4831, %v4830
        %v4843 = vpack.c.b16 %v4833, %v4832
        %v4844 = vpack.c.b16 %v4835, %v4834
        %v4845 = vpack.c.b16 %v4837, %v4836
        %4854 = vmatpush.bf16.msra.mxu0 %v4845
        %4855 = vmatpush.bf16.msra.mxu0 %v4844
        %4856 = vmatpush.bf16.msra.mxu0 %v4843
        %4857 = vmatpush.bf16.msra.mxu0 %v4842
        %4858 = vmatpush.bf16.msra.mxu0 %v4841
        %4859 = vmatpush.bf16.msra.mxu0 %v4840
        %4860 = vmatpush.bf16.msra.mxu0 %v4839
        %4861 = vmatpush.bf16.msra.mxu0 %v4838
        %4862 = vmatmul.bf16.gmra.mxu0 %v4804
        %v4863 = vpop.f32.mrf.mxu0
        %v4864 = vadd.f32 0.0, %v4863
        %v4865 = vpop.f32.mrf.mxu0
        %4866 = vdwg.mxu0
        %v4867 = vadd.f32 %v4782, %v4864
        %s4868 = scalar_lea.vmem [#allocation5], 6
        %v4869 = vld [vmem:[%s4868] sm:$0x3]
        %s4870 = scalar_lea.vmem %s7, 768
        %v4871 = vld [vmem:[%s4870] sm:$0xf]
        %v4872 = vld [vmem:[%s4870 + $0x4] sm:$0xf]
        %v4873 = vld [vmem:[%s4870 + $0x8] sm:$0xf]
        %v4874 = vld [vmem:[%s4870 + $0xc] sm:$0xf]
        %v4875 = vld [vmem:[%s4870 + $0x10] sm:$0xf]
        %v4876 = vld [vmem:[%s4870 + $0x14] sm:$0xf]
        %v4877 = vld [vmem:[%s4870 + $0x18] sm:$0xf]
        %v4878 = vld [vmem:[%s4870 + $0x1c] sm:$0xf]
        %v4879 = vld [vmem:[%s4870 + $0x20] sm:$0xf]
        %v4880 = vld [vmem:[%s4870 + $0x24] sm:$0xf]
        %v4881 = vld [vmem:[%s4870 + $0x28] sm:$0xf]
        %v4882 = vld [vmem:[%s4870 + $0x2c] sm:$0xf]
        %v4883 = vld [vmem:[%s4870 + $0x30] sm:$0xf]
        %v4884 = vld [vmem:[%s4870 + $0x34] sm:$0xf]
        %v4885 = vld [vmem:[%s4870 + $0x38] sm:$0xf]
        %v4886 = vld [vmem:[%s4870 + $0x3c] sm:$0xf]
        %v4903 = vunpack.c.l.b16 %v4871
        %v4904 = vunpack.c.l.b16 %v4872
        %v4905 = vunpack.c.l.b16 %v4873
        %v4906 = vunpack.c.l.b16 %v4874
        %v4907 = vunpack.c.l.b16 %v4875
        %v4908 = vunpack.c.l.b16 %v4876
        %v4909 = vunpack.c.l.b16 %v4877
        %v4910 = vunpack.c.l.b16 %v4878
        %v4911 = vunpack.c.l.b16 %v4879
        %v4912 = vunpack.c.l.b16 %v4880
        %v4913 = vunpack.c.l.b16 %v4881
        %v4914 = vunpack.c.l.b16 %v4882
        %v4915 = vunpack.c.l.b16 %v4883
        %v4916 = vunpack.c.l.b16 %v4884
        %v4917 = vunpack.c.l.b16 %v4885
        %v4918 = vunpack.c.l.b16 %v4886
        %v4919 = vpack.c.b16 %v4904, %v4903
        %v4920 = vpack.c.b16 %v4906, %v4905
        %v4921 = vpack.c.b16 %v4908, %v4907
        %v4922 = vpack.c.b16 %v4910, %v4909
        %v4923 = vpack.c.b16 %v4912, %v4911
        %v4924 = vpack.c.b16 %v4914, %v4913
        %v4925 = vpack.c.b16 %v4916, %v4915
        %v4926 = vpack.c.b16 %v4918, %v4917
        %4935 = vmatpush.bf16.msra.mxu0 %v4926
        %4936 = vmatpush.bf16.msra.mxu0 %v4925
        %4937 = vmatpush.bf16.msra.mxu0 %v4924
        %4938 = vmatpush.bf16.msra.mxu0 %v4923
        %4939 = vmatpush.bf16.msra.mxu0 %v4922
        %4940 = vmatpush.bf16.msra.mxu0 %v4921
        %4941 = vmatpush.bf16.msra.mxu0 %v4920
        %4942 = vmatpush.bf16.msra.mxu0 %v4919
        %4943 = vmatmul.bf16.gmra.mxu0 %v4869
        %v4944 = vpop.f32.mrf.mxu0
        %v4945 = vadd.f32 0.0, %v4944
        %v4946 = vpop.f32.mrf.mxu0
        %4947 = vdwg.mxu0
        %v4948 = vadd.f32 %v4867, %v4945
        %s4949 = scalar_lea.vmem %s7, 832
        %v4950 = vld [vmem:[%s4949] sm:$0xf]
        %v4951 = vld [vmem:[%s4949 + $0x4] sm:$0xf]
        %v4952 = vld [vmem:[%s4949 + $0x8] sm:$0xf]
        %v4953 = vld [vmem:[%s4949 + $0xc] sm:$0xf]
        %v4954 = vld [vmem:[%s4949 + $0x10] sm:$0xf]
        %v4955 = vld [vmem:[%s4949 + $0x14] sm:$0xf]
        %v4956 = vld [vmem:[%s4949 + $0x18] sm:$0xf]
        %v4957 = vld [vmem:[%s4949 + $0x1c] sm:$0xf]
        %v4958 = vld [vmem:[%s4949 + $0x20] sm:$0xf]
        %v4959 = vld [vmem:[%s4949 + $0x24] sm:$0xf]
        %v4960 = vld [vmem:[%s4949 + $0x28] sm:$0xf]
        %v4961 = vld [vmem:[%s4949 + $0x2c] sm:$0xf]
        %v4962 = vld [vmem:[%s4949 + $0x30] sm:$0xf]
        %v4963 = vld [vmem:[%s4949 + $0x34] sm:$0xf]
        %v4964 = vld [vmem:[%s4949 + $0x38] sm:$0xf]
        %v4965 = vld [vmem:[%s4949 + $0x3c] sm:$0xf]
        %4967 = vst [vmem:[#allocation1] ss:$4 sm:$0xff] %v4869
        %v4968 = vld.sshfl [vmem:[#allocation1] sm:$0xff pattern:$0x73625140]
        %v4969 = vshrl.u32 %v4968, 16
        %v4988 = vunpack.c.l.b16 %v4950
        %v4989 = vunpack.c.l.b16 %v4951
        %v4990 = vunpack.c.l.b16 %v4952
        %v4991 = vunpack.c.l.b16 %v4953
        %v4992 = vunpack.c.l.b16 %v4954
        %v4993 = vunpack.c.l.b16 %v4955
        %v4994 = vunpack.c.l.b16 %v4956
        %v4995 = vunpack.c.l.b16 %v4957
        %v4996 = vunpack.c.l.b16 %v4958
        %v4997 = vunpack.c.l.b16 %v4959
        %v4998 = vunpack.c.l.b16 %v4960
        %v4999 = vunpack.c.l.b16 %v4961
        %v5000 = vunpack.c.l.b16 %v4962
        %v5001 = vunpack.c.l.b16 %v4963
        %v5002 = vunpack.c.l.b16 %v4964
        %v5003 = vunpack.c.l.b16 %v4965
        %v5004 = vpack.c.b16 %v4989, %v4988
        %v5005 = vpack.c.b16 %v4991, %v4990
        %v5006 = vpack.c.b16 %v4993, %v4992
        %v5007 = vpack.c.b16 %v4995, %v4994
        %v5008 = vpack.c.b16 %v4997, %v4996
        %v5009 = vpack.c.b16 %v4999, %v4998
        %v5010 = vpack.c.b16 %v5001, %v5000
        %v5011 = vpack.c.b16 %v5003, %v5002
        %5020 = vmatpush.bf16.msra.mxu0 %v5011
        %5021 = vmatpush.bf16.msra.mxu0 %v5010
        %5022 = vmatpush.bf16.msra.mxu0 %v5009
        %5023 = vmatpush.bf16.msra.mxu0 %v5008
        %5024 = vmatpush.bf16.msra.mxu0 %v5007
        %5025 = vmatpush.bf16.msra.mxu0 %v5006
        %5026 = vmatpush.bf16.msra.mxu0 %v5005
        %5027 = vmatpush.bf16.msra.mxu0 %v5004
        %5028 = vmatmul.bf16.gmra.mxu0 %v4969
        %v5029 = vpop.f32.mrf.mxu0
        %v5030 = vadd.f32 0.0, %v5029
        %v5031 = vpop.f32.mrf.mxu0
        %5032 = vdwg.mxu0
        %v5033 = vadd.f32 %v4948, %v5030
        %s5034 = scalar_lea.vmem %s7, 896
        %v5035 = vld [vmem:[%s5034] sm:$0xf]
        %v5036 = vld [vmem:[%s5034 + $0x4] sm:$0xf]
        %v5037 = vld [vmem:[%s5034 + $0x8] sm:$0xf]
        %v5038 = vld [vmem:[%s5034 + $0xc] sm:$0xf]
        %v5039 = vld [vmem:[%s5034 + $0x10] sm:$0xf]
        %v5040 = vld [vmem:[%s5034 + $0x14] sm:$0xf]
        %v5041 = vld [vmem:[%s5034 + $0x18] sm:$0xf]
        %v5042 = vld [vmem:[%s5034 + $0x1c] sm:$0xf]
        %v5043 = vld [vmem:[%s5034 + $0x20] sm:$0xf]
        %v5044 = vld [vmem:[%s5034 + $0x24] sm:$0xf]
        %v5045 = vld [vmem:[%s5034 + $0x28] sm:$0xf]
        %v5046 = vld [vmem:[%s5034 + $0x2c] sm:$0xf]
        %v5047 = vld [vmem:[%s5034 + $0x30] sm:$0xf]
        %v5048 = vld [vmem:[%s5034 + $0x34] sm:$0xf]
        %v5049 = vld [vmem:[%s5034 + $0x38] sm:$0xf]
        %v5050 = vld [vmem:[%s5034 + $0x3c] sm:$0xf]
        %5051 = vst [vmem:[#allocation1] ss:$4 sm:$0xff] %v4869
        %v5052 = vld.sshfl [vmem:[#allocation1] sm:$0xff pattern:$0x73625140]
        %v5054 = vrot.slane %v5052, 1
        %v5072 = vunpack.c.l.b16 %v5035
        %v5073 = vunpack.c.l.b16 %v5036
        %v5074 = vunpack.c.l.b16 %v5037
        %v5075 = vunpack.c.l.b16 %v5038
        %v5076 = vunpack.c.l.b16 %v5039
        %v5077 = vunpack.c.l.b16 %v5040
        %v5078 = vunpack.c.l.b16 %v5041
        %v5079 = vunpack.c.l.b16 %v5042
        %v5080 = vunpack.c.l.b16 %v5043
        %v5081 = vunpack.c.l.b16 %v5044
        %v5082 = vunpack.c.l.b16 %v5045
        %v5083 = vunpack.c.l.b16 %v5046
        %v5084 = vunpack.c.l.b16 %v5047
        %v5085 = vunpack.c.l.b16 %v5048
        %v5086 = vunpack.c.l.b16 %v5049
        %v5087 = vunpack.c.l.b16 %v5050
        %v5088 = vpack.c.b16 %v5073, %v5072
        %v5089 = vpack.c.b16 %v5075, %v5074
        %v5090 = vpack.c.b16 %v5077, %v5076
        %v5091 = vpack.c.b16 %v5079, %v5078
        %v5092 = vpack.c.b16 %v5081, %v5080
        %v5093 = vpack.c.b16 %v5083, %v5082
        %v5094 = vpack.c.b16 %v5085, %v5084
        %v5095 = vpack.c.b16 %v5087, %v5086
        %5104 = vmatpush.bf16.msra.mxu0 %v5095
        %5105 = vmatpush.bf16.msra.mxu0 %v5094
        %5106 = vmatpush.bf16.msra.mxu0 %v5093
        %5107 = vmatpush.bf16.msra.mxu0 %v5092
        %5108 = vmatpush.bf16.msra.mxu0 %v5091
        %5109 = vmatpush.bf16.msra.mxu0 %v5090
        %5110 = vmatpush.bf16.msra.mxu0 %v5089
        %5111 = vmatpush.bf16.msra.mxu0 %v5088
        %5112 = vmatmul.bf16.gmra.mxu0 %v5054
        %v5113 = vpop.f32.mrf.mxu0
        %v5114 = vadd.f32 0.0, %v5113
        %v5115 = vpop.f32.mrf.mxu0
        %5116 = vdwg.mxu0
        %v5117 = vadd.f32 %v5033, %v5114
        %s5118 = scalar_lea.vmem %s7, 960
        %v5119 = vld [vmem:[%s5118] sm:$0xf]
        %v5120 = vld [vmem:[%s5118 + $0x4] sm:$0xf]
        %v5121 = vld [vmem:[%s5118 + $0x8] sm:$0xf]
        %v5122 = vld [vmem:[%s5118 + $0xc] sm:$0xf]
        %v5123 = vld [vmem:[%s5118 + $0x10] sm:$0xf]
        %v5124 = vld [vmem:[%s5118 + $0x14] sm:$0xf]
        %v5125 = vld [vmem:[%s5118 + $0x18] sm:$0xf]
        %v5126 = vld [vmem:[%s5118 + $0x1c] sm:$0xf]
        %v5127 = vld [vmem:[%s5118 + $0x20] sm:$0xf]
        %v5128 = vld [vmem:[%s5118 + $0x24] sm:$0xf]
        %v5129 = vld [vmem:[%s5118 + $0x28] sm:$0xf]
        %v5130 = vld [vmem:[%s5118 + $0x2c] sm:$0xf]
        %v5131 = vld [vmem:[%s5118 + $0x30] sm:$0xf]
        %v5132 = vld [vmem:[%s5118 + $0x34] sm:$0xf]
        %v5133 = vld [vmem:[%s5118 + $0x38] sm:$0xf]
        %v5134 = vld [vmem:[%s5118 + $0x3c] sm:$0xf]
        %5135 = vst [vmem:[#allocation1] ss:$4 sm:$0xff] %v4869
        %v5136 = vld.sshfl [vmem:[#allocation1] sm:$0xff pattern:$0x73625140]
        %v5137 = vshrl.u32 %v5136, 16
        %v5139 = vrot.slane %v5137, 1
        %v5157 = vunpack.c.l.b16 %v5119
        %v5158 = vunpack.c.l.b16 %v5120
        %v5159 = vunpack.c.l.b16 %v5121
        %v5160 = vunpack.c.l.b16 %v5122
        %v5161 = vunpack.c.l.b16 %v5123
        %v5162 = vunpack.c.l.b16 %v5124
        %v5163 = vunpack.c.l.b16 %v5125
        %v5164 = vunpack.c.l.b16 %v5126
        %v5165 = vunpack.c.l.b16 %v5127
        %v5166 = vunpack.c.l.b16 %v5128
        %v5167 = vunpack.c.l.b16 %v5129
        %v5168 = vunpack.c.l.b16 %v5130
        %v5169 = vunpack.c.l.b16 %v5131
        %v5170 = vunpack.c.l.b16 %v5132
        %v5171 = vunpack.c.l.b16 %v5133
        %v5172 = vunpack.c.l.b16 %v5134
        %v5173 = vpack.c.b16 %v5158, %v5157
        %v5174 = vpack.c.b16 %v5160, %v5159
        %v5175 = vpack.c.b16 %v5162, %v5161
        %v5176 = vpack.c.b16 %v5164, %v5163
        %v5177 = vpack.c.b16 %v5166, %v5165
        %v5178 = vpack.c.b16 %v5168, %v5167
        %v5179 = vpack.c.b16 %v5170, %v5169
        %v5180 = vpack.c.b16 %v5172, %v5171
        %5189 = vmatpush.bf16.msra.mxu0 %v5180
        %5190 = vmatpush.bf16.msra.mxu0 %v5179
        %5191 = vmatpush.bf16.msra.mxu0 %v5178
        %5192 = vmatpush.bf16.msra.mxu0 %v5177
        %5193 = vmatpush.bf16.msra.mxu0 %v5176
        %5194 = vmatpush.bf16.msra.mxu0 %v5175
        %5195 = vmatpush.bf16.msra.mxu0 %v5174
        %5196 = vmatpush.bf16.msra.mxu0 %v5173
        %5197 = vmatmul.bf16.gmra.mxu0 %v5139
        %v5198 = vpop.f32.mrf.mxu0
        %v5199 = vadd.f32 0.0, %v5198
        %v5200 = vpop.f32.mrf.mxu0
        %5201 = vdwg.mxu0
        %v5202 = vadd.f32 %v5117, %v5199
        %v5203 = vld [vmem:[%s8] sm:$0x1]
        %v5204 = vadd.f32 %v5202, %v5203
        %5205 = vst [vmem:[%s324] sm:$0x1] %v5204
        %s5206 = sand.u32 %s225, 1
        %s5207 = scalar_lea.sflag [#allocation7], %s5206
        %s5208 = sand.u32 %s225, 1
        %s5209 = scalar_lea.vmem [#allocation6], %s5208
        // Predicated region
        $region85: #{convnet_forward.1} parent=55 // pred_check
          %p5210 = pneg %p235
        $region86: #{convnet_forward.1} parent=55 // pred_check_branch
          %5212 = sbr.rel (%p5210) target = $region88
        $region87: #{convnet_forward.1} parent=55 // pred_region
          %5214 = vsyncadd %s5207, 0
          %s5215 = scalar_lea.hbm %s9, %s23
          %s5217 = sshll.u32 %s5209, 4
          %s5218 = int_to_ptr.vmem [resolvable:$true] %s5217
          %s5219 = sshll.u32 %s5215, 4
          %s5220 = int_to_ptr.hbm [resolvable:$true] %s5219
          %5222 = dma.vmem_to_hbm [thread:$0]  %s5218, 16, %s5220, %s5207
        $region88: #{convnet_forward.1} parent=55 // pred_fallthru
          _
      $region56: #{convnet_forward.1} parent=5 // pred_fallthru
        _
      %p5223 = scmp.le.s32.totalorder 2, %s18
      // Predicated region
      $region89: #{convnet_forward.1} parent=5 // pred_check
        %p5224 = pneg %p5223
      $region90: #{convnet_forward.1} parent=5 // pred_check_branch
        %5226 = sbr.rel (%p5224) target = $region92
      $region91: #{convnet_forward.1} parent=5 // pred_region
        %s5227 = ssub.s32 %s18, 2
        // Predicated region
        $region93: #{convnet_forward.1} parent=91 // pred_check
          %p5228 = pneg %p241
        $region94: #{convnet_forward.1} parent=91 // pred_check_branch
          %5230 = sbr.rel (%p5228) target = $region96
        $region95: #{convnet_forward.1} parent=91 // pred_region
          %s5231 = sand.u32 %s226, 1
          %s5232 = scalar_lea.sflag [#allocation7], %s5231
          %s5233 = sand.u32 %s226, 1
          %s5234 = scalar_lea.vmem [#allocation6], %s5233
          %5236 = dma.done %s5232, 16
        $region96: #{convnet_forward.1} parent=91 // pred_fallthru
          _
      $region92: #{convnet_forward.1} parent=5 // pred_fallthru
        _
    $region6: #{convnet_forward.1} parent=1 // loop_footer
      %s22 = sadd.s32 1, %s18
    $region7: #{convnet_forward.1} parent=1 // loop_footer_branch
      %17 = sbr.rel target = $region3
    $region8: #{convnet_forward.1} parent=1 // loop_exit
      _
    %5237 = vsyncpa [#allocation7], 1
    %s5238 = scalar_lea.sflag [#allocation7], 1
    %5239 = vsyncpa %s5238, 1

</llo_original>
